<compile_context>
chip_gen: v7x
topology: tpu7x:2x2x1
jax: 0.10.0
libtpu: 0.0.40
codegen_flags: <defaults>
</compile_context>

<pallas_src>
import functools

import jax
import jax.numpy as jnp
from jax.experimental import pallas as pl
from jax.experimental.pallas import tpu as pltpu


# ----------------------------- fused Pallas kernel --------------------------


def _fused_lstm_kernel(num_layers, seq_len, batch, hidden, *refs):
    """Whole forward: num_layers LSTM layers + Linear(hidden -> out_dim).

    refs layout (inputs, then output; no scratch):
      [0]          x_ref    (B*T, F0)  row-major view of (B,T,F0): row = b*T + t
      layer 0:     wih0     (F0, 4H)
                   whh0     (H, 4H)
                   b0       (1, 4H)    combined bias (b_ih + b_hh)
      layer l>=1:  wcat_l   (2H, 4H)   stacked [W_ih_l^T ; W_hh_l^T]
                   b_l      (1, 4H)
      [...]        fc_w     (H, out)
      [...]        fc_b     (1, out)
      [last]       out_ref  (B, out)
    """
    T, B, H = seq_len, batch, hidden

    idx = 0
    x_ref = refs[idx]; idx += 1
    wih0_ref = refs[idx]; idx += 1
    whh0_ref = refs[idx]; idx += 1
    b0_ref = refs[idx]; idx += 1
    upper = []
    for _ in range(num_layers - 1):
        upper.append((refs[idx], refs[idx + 1]))
        idx += 2
    fcw_ref = refs[idx]; idx += 1
    fcb_ref = refs[idx]; idx += 1
    out_ref = refs[idx]

    # Hoisted layer-0 input projection: ONE (B*T, F0) x (F0, 4H) matmul kept as
    # an SSA value (8 vregs here) -- entirely off the serial h/c chain.
    gx0 = (
        jnp.dot(x_ref[...], wih0_ref[...], preferred_element_type=jnp.float32)
        + b0_ref[...]
    )
    gx0 = gx0.reshape(B, T, 4 * H)          # [b, t, :] == gate pre-act of (b, t)

    whh0 = whh0_ref[...]                    # (H, 4H), load once
    wcats = [w_ref[...] for (w_ref, _) in upper]   # (2H, 4H) each
    bups = [b_ref[...] for (_, b_ref) in upper]    # (1, 4H) each

    def lstm_cell(gates, c_prev):
        # Two full-(B,4H)-vreg EUP passes, then cheap static lane slices.
        sig = jax.nn.sigmoid(gates)
        th = jnp.tanh(gates)
        i_g = sig[:, 0 * H:1 * H]
        f_g = sig[:, 1 * H:2 * H]
        g_g = th[:, 2 * H:3 * H]
        o_g = sig[:, 3 * H:4 * H]
        c_new = f_g * c_prev + i_g * g_g
        h_new = o_g * jnp.tanh(c_new)
        return h_new, c_new

    zeros = jnp.zeros((B, H), jnp.float32)
    h = [zeros for _ in range(num_layers)]
    c = [zeros for _ in range(num_layers)]

    # Wavefronted, fully-unrolled recurrence. Emission order is
    #   L0(t), L1(t), ..., L0(t+1), ...
    # L0(t+1) only depends on L0(t), so it can overlap with L>=1 at step t.
    # (At T=8 full unroll is right; switch to a bounded lax.fori_loop unroll
    #  if T grows past ~16 to avoid vreg spills.)
    for t in range(T):
        gates0 = gx0[:, t, :] + jnp.dot(
            h[0], whh0, preferred_element_type=jnp.float32)
        h[0], c[0] = lstm_cell(gates0, c[0])
        for l in range(1, num_layers):
            # Fused input+recurrent projection: one MXU push per step.
            inp = jnp.concatenate([h[l - 1], h[l]], axis=1)        # (B, 2H)
            gates = jnp.dot(
                inp, wcats[l - 1], preferred_element_type=jnp.float32
            ) + bups[l - 1]
            h[l], c[l] = lstm_cell(gates, c[l])

    # TODO(synk): nn.Dropout(p=0.7) is identity in eval mode; training-mode dropout not implemented.
    out_ref[...] = (
        jnp.dot(h[num_layers - 1], fcw_ref[...],
                preferred_element_type=jnp.float32)
        + fcb_ref[...]
    )


# ----------------------------- one-time weight prep --------------------------


def prepare_params(lstm_params, fc_w, fc_b):
    """One-time weight preprocessing (do NOT redo per call).

    Returns a flat tuple:
      layer 0:  W_ih^T (F0,4H), W_hh^T (H,4H), (b_ih+b_hh) (1,4H)
      layer>=1: [W_ih^T ; W_hh^T] (2H,4H), (b_ih+b_hh) (1,4H)
      head:     fc_w^T (H,out), fc_b (1,out)
    """
    prepped = []
    for layer, (w_ih, w_hh, b_ih, b_hh) in enumerate(lstm_params):
        b = (b_ih + b_hh).reshape(1, -1).astype(jnp.float32)
        if layer == 0:
            prepped.append(jnp.transpose(w_ih).astype(jnp.float32))   # (F0, 4H)
            prepped.append(jnp.transpose(w_hh).astype(jnp.float32))   # (H, 4H)
        else:
            prepped.append(jnp.concatenate(
                [jnp.transpose(w_ih), jnp.transpose(w_hh)], axis=0
            ).astype(jnp.float32))                                    # (2H, 4H)
        prepped.append(b)
    prepped.append(jnp.transpose(fc_w).astype(jnp.float32))           # (H, out)
    prepped.append(fc_b.reshape(1, -1).astype(jnp.float32))           # (1, out)
    return tuple(prepped)


# ----------------------------- wrapper ---------------------------------------


@jax.jit
def lstm_forward(x_btf, prepped):
    """Forward pass matching the PyTorch module (eval mode).

    x_btf: (B, T, input_size) batch_first.
    prepped: output of prepare_params (reused across calls).
    """
    B, T, F_in = x_btf.shape
    num_layers = (len(prepped) - 3) // 2
    H = prepped[1].shape[0]            # whh0 is (H, 4H)
    out_dim = prepped[-1].shape[-1]
    assert B % 8 == 0, "batch must be a multiple of 8 (f32 sublane width)"

    # Free row-major view (no XLA transpose before the kernel): row = b*T + t.
    x2d = x_btf.reshape(B * T, F_in).astype(jnp.float32)
    inputs = (x2d,) + tuple(prepped)

    # Rough cost hint so XLA schedules this tiny fused call sensibly.
    flops = 2 * B * H * out_dim
    flops += 2 * T * B * F_in * 4 * H                             # hoisted layer-0 proj
    flops += 2 * T * B * H * 4 * H                                # layer-0 recurrence
    flops += (num_layers - 1) * 2 * T * B * (2 * H) * 4 * H       # fused upper layers
    transcendentals = num_layers * T * B * (2 * 4 * H + H)
    bytes_accessed = 4 * (sum(int(a.size) for a in inputs) + B * out_dim)

    vmem_spec = pl.BlockSpec(memory_space=pltpu.MemorySpace.VMEM)
    return pl.pallas_call(
        functools.partial(_fused_lstm_kernel, num_layers, T, B, H),
        out_shape=jax.ShapeDtypeStruct((B, out_dim), jnp.float32),
        in_specs=[vmem_spec] * len(inputs),
        out_specs=vmem_spec,
        cost_estimate=pl.CostEstimate(
            flops=flops,
            transcendentals=transcendentals,
            bytes_accessed=bytes_accessed,
        ),
    )(*inputs)


# ----------------------------- pure-JAX reference ---------------------------


def lstm_forward_ref(x_btf, lstm_params, fc_w, fc_b):
    h_in = x_btf.astype(jnp.float32)
    B = h_in.shape[0]
    for (w_ih, w_hh, b_ih, b_hh) in lstm_params:
        H = w_hh.shape[1]

        def step(carry, x_t):
            h, c = carry
            gates = x_t @ w_ih.T + b_ih + h @ w_hh.T + b_hh
            i, f, g, o = jnp.split(gates, 4, axis=-1)
            i = jax.nn.sigmoid(i)
            f = jax.nn.sigmoid(f)
            g = jnp.tanh(g)
            o = jax.nn.sigmoid(o)
            c = f * c + i * g
            h = o * jnp.tanh(c)
            return (h, c), h

        init = (jnp.zeros((B, H), jnp.float32), jnp.zeros((B, H), jnp.float32))
        _, hs = jax.lax.scan(step, init, jnp.transpose(h_in, (1, 0, 2)))
        h_in = jnp.transpose(hs, (1, 0, 2))
    last = h_in[:, -1, :]
    return last @ fc_w.T + fc_b


# ----------------------------- main -----------------------------------------


if __name__ == "__main__":
    input_size = 16
    hidden_size = 32
    num_layers = 2
    batch_size = 8
    seq_len = 8

    key = jax.random.PRNGKey(0)
    keys = jax.random.split(key, 4 * num_layers + 3)

    # Deterministic parameter init (PyTorch default: U(-1/sqrt(H), 1/sqrt(H)))
    k = 1.0 / jnp.sqrt(hidden_size)
    lstm_params = []
    ki = 0
    for layer in range(num_layers):
        in_f = input_size if layer == 0 else hidden_size
        w_ih = jax.random.uniform(keys[ki], (4 * hidden_size, in_f), jnp.float32, -k, k); ki += 1
        w_hh = jax.random.uniform(keys[ki], (4 * hidden_size, hidden_size), jnp.float32, -k, k); ki += 1
        b_ih = jax.random.uniform(keys[ki], (4 * hidden_size,), jnp.float32, -k, k); ki += 1
        b_hh = jax.random.uniform(keys[ki], (4 * hidden_size,), jnp.float32, -k, k); ki += 1
        lstm_params.append((w_ih, w_hh, b_ih, b_hh))
    lstm_params = tuple(lstm_params)

    fc_w = jax.random.uniform(keys[ki], (2, hidden_size), jnp.float32, -k, k); ki += 1
    fc_b = jax.random.uniform(keys[ki], (2,), jnp.float32, -k, k); ki += 1

    x = jax.random.normal(keys[ki], (batch_size, seq_len, input_size), jnp.float32)

    # One-time weight preprocessing, reused across calls.
    prepped = prepare_params(lstm_params, fc_w, fc_b)

    out = lstm_forward(x, prepped)
    out = jax.block_until_ready(out)

    ref = jax.block_until_ready(lstm_forward_ref(x, lstm_params, fc_w, fc_b))
    assert out.shape == (batch_size, 2), out.shape
    assert jnp.allclose(out, ref, atol=1e-5, rtol=1e-5), (out, ref)

    print("KERNEL_OK")
</pallas_src>

<mosaic_0001>
module attributes {stable_mosaic.version = 11 : i64} {
  func.func @_fused_lstm_kernel(%arg0: memref<64x16xf32, #tpu.memory_space<vmem>>, %arg1: memref<16x128xf32, #tpu.memory_space<vmem>>, %arg2: memref<32x128xf32, #tpu.memory_space<vmem>>, %arg3: memref<1x128xf32, #tpu.memory_space<vmem>>, %arg4: memref<64x128xf32, #tpu.memory_space<vmem>>, %arg5: memref<1x128xf32, #tpu.memory_space<vmem>>, %arg6: memref<32x2xf32, #tpu.memory_space<vmem>>, %arg7: memref<1x2xf32, #tpu.memory_space<vmem>>, %arg8: memref<8x2xf32, #tpu.memory_space<vmem>>) attributes {dimension_semantics = [], scalar_prefetch = 0 : i64, scratch_operands = 0 : i64, tpu.core_type = #tpu.core_type<tc>} {
    %c0 = arith.constant 0 : index
    %c0_0 = arith.constant 0 : index
    %0 = vector.load %arg0[%c0, %c0_0] : memref<64x16xf32, #tpu.memory_space<vmem>>, vector<64x16xf32>
    %c0_1 = arith.constant 0 : index
    %c0_2 = arith.constant 0 : index
    %1 = vector.load %arg1[%c0_1, %c0_2] : memref<16x128xf32, #tpu.memory_space<vmem>>, vector<16x128xf32>
    %cst = arith.constant dense<0.000000e+00> : vector<64x128xf32>
    %2 = tpu.matmul %0, %1, %cst {dimension_numbers = #tpu.dot_dimension_numbers<[1], [0], [0], [1], [0, 0, 1, 1], [], []>} : vector<64x16xf32>, vector<16x128xf32>, vector<64x128xf32> -> vector<64x128xf32>
    %c0_3 = arith.constant 0 : index
    %c0_4 = arith.constant 0 : index
    %3 = vector.load %arg3[%c0_3, %c0_4] : memref<1x128xf32, #tpu.memory_space<vmem>>, vector<1x128xf32>
    %4 = vector.broadcast %3 : vector<1x128xf32> to vector<64x128xf32>
    %5 = arith.addf %2, %4 : vector<64x128xf32>
    %6 = vector.shape_cast %5 : vector<64x128xf32> to vector<8x8x128xf32>
    %c0_5 = arith.constant 0 : index
    %c0_6 = arith.constant 0 : index
    %7 = vector.load %arg2[%c0_5, %c0_6] : memref<32x128xf32, #tpu.memory_space<vmem>>, vector<32x128xf32>
    %c0_7 = arith.constant 0 : index
    %c0_8 = arith.constant 0 : index
    %8 = vector.load %arg4[%c0_7, %c0_8] : memref<64x128xf32, #tpu.memory_space<vmem>>, vector<64x128xf32>
    %c0_9 = arith.constant 0 : index
    %c0_10 = arith.constant 0 : index
    %9 = vector.load %arg5[%c0_9, %c0_10] : memref<1x128xf32, #tpu.memory_space<vmem>>, vector<1x128xf32>
    %cst_11 = arith.constant 0.000000e+00 : f32
    %10 = vector.broadcast %cst_11 : f32 to vector<8x32xf32>
    %11 = vector.extract_strided_slice %6 {offsets = [0, 0, 0], sizes = [8, 1, 128], strides = [1, 1, 1]} : vector<8x8x128xf32> to vector<8x1x128xf32>
    %12 = vector.shape_cast %11 : vector<8x1x128xf32> to vector<8x128xf32>
    %cst_12 = arith.constant dense<0.000000e+00> : vector<8x128xf32>
    %13 = tpu.matmul %10, %7, %cst_12 {dimension_numbers = #tpu.dot_dimension_numbers<[1], [0], [0], [1], [0, 0, 1, 1], [], []>} : vector<8x32xf32>, vector<32x128xf32>, vector<8x128xf32> -> vector<8x128xf32>
    %14 = arith.addf %12, %13 : vector<8x128xf32>
    %15 = arith.negf %14 : vector<8x128xf32>
    %16 = math.exp %15 : vector<8x128xf32>
    %cst_13 = arith.constant 1.000000e+00 : f32
    %17 = vector.broadcast %cst_13 : f32 to vector<8x128xf32>
    %18 = arith.addf %17, %16 : vector<8x128xf32>
    %19 = arith.divf %17, %18 : vector<8x128xf32>
    %20 = math.tanh %14 : vector<8x128xf32>
    %21 = vector.extract_strided_slice %19 {offsets = [0, 0], sizes = [8, 32], strides = [1, 1]} : vector<8x128xf32> to vector<8x32xf32>
    %22 = vector.extract_strided_slice %19 {offsets = [0, 32], sizes = [8, 32], strides = [1, 1]} : vector<8x128xf32> to vector<8x32xf32>
    %23 = vector.extract_strided_slice %20 {offsets = [0, 64], sizes = [8, 32], strides = [1, 1]} : vector<8x128xf32> to vector<8x32xf32>
    %24 = vector.extract_strided_slice %19 {offsets = [0, 96], sizes = [8, 32], strides = [1, 1]} : vector<8x128xf32> to vector<8x32xf32>
    %25 = arith.mulf %22, %10 : vector<8x32xf32>
    %26 = arith.mulf %21, %23 : vector<8x32xf32>
    %27 = arith.addf %25, %26 : vector<8x32xf32>
    %28 = math.tanh %27 : vector<8x32xf32>
    %29 = arith.mulf %24, %28 : vector<8x32xf32>
    %30 = tpu.concatenate %29, %10 in 1 : vector<8x32xf32>, vector<8x32xf32> -> vector<8x64xf32>
    %cst_14 = arith.constant dense<0.000000e+00> : vector<8x128xf32>
    %31 = tpu.matmul %30, %8, %cst_14 {dimension_numbers = #tpu.dot_dimension_numbers<[1], [0], [0], [1], [0, 0, 1, 1], [], []>} : vector<8x64xf32>, vector<64x128xf32>, vector<8x128xf32> -> vector<8x128xf32>
    %32 = vector.broadcast %9 : vector<1x128xf32> to vector<8x128xf32>
    %33 = arith.addf %31, %32 : vector<8x128xf32>
    %34 = arith.negf %33 : vector<8x128xf32>
    %35 = math.exp %34 : vector<8x128xf32>
    %cst_15 = arith.constant 1.000000e+00 : f32
    %36 = vector.broadcast %cst_15 : f32 to vector<8x128xf32>
    %37 = arith.addf %36, %35 : vector<8x128xf32>
    %38 = arith.divf %36, %37 : vector<8x128xf32>
    %39 = math.tanh %33 : vector<8x128xf32>
    %40 = vector.extract_strided_slice %38 {offsets = [0, 0], sizes = [8, 32], strides = [1, 1]} : vector<8x128xf32> to vector<8x32xf32>
    %41 = vector.extract_strided_slice %38 {offsets = [0, 32], sizes = [8, 32], strides = [1, 1]} : vector<8x128xf32> to vector<8x32xf32>
    %42 = vector.extract_strided_slice %39 {offsets = [0, 64], sizes = [8, 32], strides = [1, 1]} : vector<8x128xf32> to vector<8x32xf32>
    %43 = vector.extract_strided_slice %38 {offsets = [0, 96], sizes = [8, 32], strides = [1, 1]} : vector<8x128xf32> to vector<8x32xf32>
    %44 = arith.mulf %41, %10 : vector<8x32xf32>
    %45 = arith.mulf %40, %42 : vector<8x32xf32>
    %46 = arith.addf %44, %45 : vector<8x32xf32>
    %47 = math.tanh %46 : vector<8x32xf32>
    %48 = arith.mulf %43, %47 : vector<8x32xf32>
    %49 = vector.extract_strided_slice %6 {offsets = [0, 1, 0], sizes = [8, 1, 128], strides = [1, 1, 1]} : vector<8x8x128xf32> to vector<8x1x128xf32>
    %50 = vector.shape_cast %49 : vector<8x1x128xf32> to vector<8x128xf32>
    %cst_16 = arith.constant dense<0.000000e+00> : vector<8x128xf32>
    %51 = tpu.matmul %29, %7, %cst_16 {dimension_numbers = #tpu.dot_dimension_numbers<[1], [0], [0], [1], [0, 0, 1, 1], [], []>} : vector<8x32xf32>, vector<32x128xf32>, vector<8x128xf32> -> vector<8x128xf32>
    %52 = arith.addf %50, %51 : vector<8x128xf32>
    %53 = arith.negf %52 : vector<8x128xf32>
    %54 = math.exp %53 : vector<8x128xf32>
    %cst_17 = arith.constant 1.000000e+00 : f32
    %55 = vector.broadcast %cst_17 : f32 to vector<8x128xf32>
    %56 = arith.addf %55, %54 : vector<8x128xf32>
    %57 = arith.divf %55, %56 : vector<8x128xf32>
    %58 = math.tanh %52 : vector<8x128xf32>
    %59 = vector.extract_strided_slice %57 {offsets = [0, 0], sizes = [8, 32], strides = [1, 1]} : vector<8x128xf32> to vector<8x32xf32>
    %60 = vector.extract_strided_slice %57 {offsets = [0, 32], sizes = [8, 32], strides = [1, 1]} : vector<8x128xf32> to vector<8x32xf32>
    %61 = vector.extract_strided_slice %58 {offsets = [0, 64], sizes = [8, 32], strides = [1, 1]} : vector<8x128xf32> to vector<8x32xf32>
    %62 = vector.extract_strided_slice %57 {offsets = [0, 96], sizes = [8, 32], strides = [1, 1]} : vector<8x128xf32> to vector<8x32xf32>
    %63 = arith.mulf %60, %27 : vector<8x32xf32>
    %64 = arith.mulf %59, %61 : vector<8x32xf32>
    %65 = arith.addf %63, %64 : vector<8x32xf32>
    %66 = math.tanh %65 : vector<8x32xf32>
    %67 = arith.mulf %62, %66 : vector<8x32xf32>
    %68 = tpu.concatenate %67, %48 in 1 : vector<8x32xf32>, vector<8x32xf32> -> vector<8x64xf32>
    %cst_18 = arith.constant dense<0.000000e+00> : vector<8x128xf32>
    %69 = tpu.matmul %68, %8, %cst_18 {dimension_numbers = #tpu.dot_dimension_numbers<[1], [0], [0], [1], [0, 0, 1, 1], [], []>} : vector<8x64xf32>, vector<64x128xf32>, vector<8x128xf32> -> vector<8x128xf32>
    %70 = vector.broadcast %9 : vector<1x128xf32> to vector<8x128xf32>
    %71 = arith.addf %69, %70 : vector<8x128xf32>
    %72 = arith.negf %71 : vector<8x128xf32>
    %73 = math.exp %72 : vector<8x128xf32>
    %cst_19 = arith.constant 1.000000e+00 : f32
    %74 = vector.broadcast %cst_19 : f32 to vector<8x128xf32>
    %75 = arith.addf %74, %73 : vector<8x128xf32>
    %76 = arith.divf %74, %75 : vector<8x128xf32>
    %77 = math.tanh %71 : vector<8x128xf32>
    %78 = vector.extract_strided_slice %76 {offsets = [0, 0], sizes = [8, 32], strides = [1, 1]} : vector<8x128xf32> to vector<8x32xf32>
    %79 = vector.extract_strided_slice %76 {offsets = [0, 32], sizes = [8, 32], strides = [1, 1]} : vector<8x128xf32> to vector<8x32xf32>
    %80 = vector.extract_strided_slice %77 {offsets = [0, 64], sizes = [8, 32], strides = [1, 1]} : vector<8x128xf32> to vector<8x32xf32>
    %81 = vector.extract_strided_slice %76 {offsets = [0, 96], sizes = [8, 32], strides = [1, 1]} : vector<8x128xf32> to vector<8x32xf32>
    %82 = arith.mulf %79, %46 : vector<8x32xf32>
    %83 = arith.mulf %78, %80 : vector<8x32xf32>
    %84 = arith.addf %82, %83 : vector<8x32xf32>
    %85 = math.tanh %84 : vector<8x32xf32>
    %86 = arith.mulf %81, %85 : vector<8x32xf32>
    %87 = vector.extract_strided_slice %6 {offsets = [0, 2, 0], sizes = [8, 1, 128], strides = [1, 1, 1]} : vector<8x8x128xf32> to vector<8x1x128xf32>
    %88 = vector.shape_cast %87 : vector<8x1x128xf32> to vector<8x128xf32>
    %cst_20 = arith.constant dense<0.000000e+00> : vector<8x128xf32>
    %89 = tpu.matmul %67, %7, %cst_20 {dimension_numbers = #tpu.dot_dimension_numbers<[1], [0], [0], [1], [0, 0, 1, 1], [], []>} : vector<8x32xf32>, vector<32x128xf32>, vector<8x128xf32> -> vector<8x128xf32>
    %90 = arith.addf %88, %89 : vector<8x128xf32>
    %91 = arith.negf %90 : vector<8x128xf32>
    %92 = math.exp %91 : vector<8x128xf32>
    %cst_21 = arith.constant 1.000000e+00 : f32
    %93 = vector.broadcast %cst_21 : f32 to vector<8x128xf32>
    %94 = arith.addf %93, %92 : vector<8x128xf32>
    %95 = arith.divf %93, %94 : vector<8x128xf32>
    %96 = math.tanh %90 : vector<8x128xf32>
    %97 = vector.extract_strided_slice %95 {offsets = [0, 0], sizes = [8, 32], strides = [1, 1]} : vector<8x128xf32> to vector<8x32xf32>
    %98 = vector.extract_strided_slice %95 {offsets = [0, 32], sizes = [8, 32], strides = [1, 1]} : vector<8x128xf32> to vector<8x32xf32>
    %99 = vector.extract_strided_slice %96 {offsets = [0, 64], sizes = [8, 32], strides = [1, 1]} : vector<8x128xf32> to vector<8x32xf32>
    %100 = vector.extract_strided_slice %95 {offsets = [0, 96], sizes = [8, 32], strides = [1, 1]} : vector<8x128xf32> to vector<8x32xf32>
    %101 = arith.mulf %98, %65 : vector<8x32xf32>
    %102 = arith.mulf %97, %99 : vector<8x32xf32>
    %103 = arith.addf %101, %102 : vector<8x32xf32>
    %104 = math.tanh %103 : vector<8x32xf32>
    %105 = arith.mulf %100, %104 : vector<8x32xf32>
    %106 = tpu.concatenate %105, %86 in 1 : vector<8x32xf32>, vector<8x32xf32> -> vector<8x64xf32>
    %cst_22 = arith.constant dense<0.000000e+00> : vector<8x128xf32>
    %107 = tpu.matmul %106, %8, %cst_22 {dimension_numbers = #tpu.dot_dimension_numbers<[1], [0], [0], [1], [0, 0, 1, 1], [], []>} : vector<8x64xf32>, vector<64x128xf32>, vector<8x128xf32> -> vector<8x128xf32>
    %108 = vector.broadcast %9 : vector<1x128xf32> to vector<8x128xf32>
    %109 = arith.addf %107, %108 : vector<8x128xf32>
    %110 = arith.negf %109 : vector<8x128xf32>
    %111 = math.exp %110 : vector<8x128xf32>
    %cst_23 = arith.constant 1.000000e+00 : f32
    %112 = vector.broadcast %cst_23 : f32 to vector<8x128xf32>
    %113 = arith.addf %112, %111 : vector<8x128xf32>
    %114 = arith.divf %112, %113 : vector<8x128xf32>
    %115 = math.tanh %109 : vector<8x128xf32>
    %116 = vector.extract_strided_slice %114 {offsets = [0, 0], sizes = [8, 32], strides = [1, 1]} : vector<8x128xf32> to vector<8x32xf32>
    %117 = vector.extract_strided_slice %114 {offsets = [0, 32], sizes = [8, 32], strides = [1, 1]} : vector<8x128xf32> to vector<8x32xf32>
    %118 = vector.extract_strided_slice %115 {offsets = [0, 64], sizes = [8, 32], strides = [1, 1]} : vector<8x128xf32> to vector<8x32xf32>
    %119 = vector.extract_strided_slice %114 {offsets = [0, 96], sizes = [8, 32], strides = [1, 1]} : vector<8x128xf32> to vector<8x32xf32>
    %120 = arith.mulf %117, %84 : vector<8x32xf32>
    %121 = arith.mulf %116, %118 : vector<8x32xf32>
    %122 = arith.addf %120, %121 : vector<8x32xf32>
    %123 = math.tanh %122 : vector<8x32xf32>
    %124 = arith.mulf %119, %123 : vector<8x32xf32>
    %125 = vector.extract_strided_slice %6 {offsets = [0, 3, 0], sizes = [8, 1, 128], strides = [1, 1, 1]} : vector<8x8x128xf32> to vector<8x1x128xf32>
    %126 = vector.shape_cast %125 : vector<8x1x128xf32> to vector<8x128xf32>
    %cst_24 = arith.constant dense<0.000000e+00> : vector<8x128xf32>
    %127 = tpu.matmul %105, %7, %cst_24 {dimension_numbers = #tpu.dot_dimension_numbers<[1], [0], [0], [1], [0, 0, 1, 1], [], []>} : vector<8x32xf32>, vector<32x128xf32>, vector<8x128xf32> -> vector<8x128xf32>
    %128 = arith.addf %126, %127 : vector<8x128xf32>
    %129 = arith.negf %128 : vector<8x128xf32>
    %130 = math.exp %129 : vector<8x128xf32>
    %cst_25 = arith.constant 1.000000e+00 : f32
    %131 = vector.broadcast %cst_25 : f32 to vector<8x128xf32>
    %132 = arith.addf %131, %130 : vector<8x128xf32>
    %133 = arith.divf %131, %132 : vector<8x128xf32>
    %134 = math.tanh %128 : vector<8x128xf32>
    %135 = vector.extract_strided_slice %133 {offsets = [0, 0], sizes = [8, 32], strides = [1, 1]} : vector<8x128xf32> to vector<8x32xf32>
    %136 = vector.extract_strided_slice %133 {offsets = [0, 32], sizes = [8, 32], strides = [1, 1]} : vector<8x128xf32> to vector<8x32xf32>
    %137 = vector.extract_strided_slice %134 {offsets = [0, 64], sizes = [8, 32], strides = [1, 1]} : vector<8x128xf32> to vector<8x32xf32>
    %138 = vector.extract_strided_slice %133 {offsets = [0, 96], sizes = [8, 32], strides = [1, 1]} : vector<8x128xf32> to vector<8x32xf32>
    %139 = arith.mulf %136, %103 : vector<8x32xf32>
    %140 = arith.mulf %135, %137 : vector<8x32xf32>
    %141 = arith.addf %139, %140 : vector<8x32xf32>
    %142 = math.tanh %141 : vector<8x32xf32>
    %143 = arith.mulf %138, %142 : vector<8x32xf32>
    %144 = tpu.concatenate %143, %124 in 1 : vector<8x32xf32>, vector<8x32xf32> -> vector<8x64xf32>
    %cst_26 = arith.constant dense<0.000000e+00> : vector<8x128xf32>
    %145 = tpu.matmul %144, %8, %cst_26 {dimension_numbers = #tpu.dot_dimension_numbers<[1], [0], [0], [1], [0, 0, 1, 1], [], []>} : vector<8x64xf32>, vector<64x128xf32>, vector<8x128xf32> -> vector<8x128xf32>
    %146 = vector.broadcast %9 : vector<1x128xf32> to vector<8x128xf32>
    %147 = arith.addf %145, %146 : vector<8x128xf32>
    %148 = arith.negf %147 : vector<8x128xf32>
    %149 = math.exp %148 : vector<8x128xf32>
    %cst_27 = arith.constant 1.000000e+00 : f32
    %150 = vector.broadcast %cst_27 : f32 to vector<8x128xf32>
    %151 = arith.addf %150, %149 : vector<8x128xf32>
    %152 = arith.divf %150, %151 : vector<8x128xf32>
    %153 = math.tanh %147 : vector<8x128xf32>
    %154 = vector.extract_strided_slice %152 {offsets = [0, 0], sizes = [8, 32], strides = [1, 1]} : vector<8x128xf32> to vector<8x32xf32>
    %155 = vector.extract_strided_slice %152 {offsets = [0, 32], sizes = [8, 32], strides = [1, 1]} : vector<8x128xf32> to vector<8x32xf32>
    %156 = vector.extract_strided_slice %153 {offsets = [0, 64], sizes = [8, 32], strides = [1, 1]} : vector<8x128xf32> to vector<8x32xf32>
    %157 = vector.extract_strided_slice %152 {offsets = [0, 96], sizes = [8, 32], strides = [1, 1]} : vector<8x128xf32> to vector<8x32xf32>
    %158 = arith.mulf %155, %122 : vector<8x32xf32>
    %159 = arith.mulf %154, %156 : vector<8x32xf32>
    %160 = arith.addf %158, %159 : vector<8x32xf32>
    %161 = math.tanh %160 : vector<8x32xf32>
    %162 = arith.mulf %157, %161 : vector<8x32xf32>
    %163 = vector.extract_strided_slice %6 {offsets = [0, 4, 0], sizes = [8, 1, 128], strides = [1, 1, 1]} : vector<8x8x128xf32> to vector<8x1x128xf32>
    %164 = vector.shape_cast %163 : vector<8x1x128xf32> to vector<8x128xf32>
    %cst_28 = arith.constant dense<0.000000e+00> : vector<8x128xf32>
    %165 = tpu.matmul %143, %7, %cst_28 {dimension_numbers = #tpu.dot_dimension_numbers<[1], [0], [0], [1], [0, 0, 1, 1], [], []>} : vector<8x32xf32>, vector<32x128xf32>, vector<8x128xf32> -> vector<8x128xf32>
    %166 = arith.addf %164, %165 : vector<8x128xf32>
    %167 = arith.negf %166 : vector<8x128xf32>
    %168 = math.exp %167 : vector<8x128xf32>
    %cst_29 = arith.constant 1.000000e+00 : f32
    %169 = vector.broadcast %cst_29 : f32 to vector<8x128xf32>
    %170 = arith.addf %169, %168 : vector<8x128xf32>
    %171 = arith.divf %169, %170 : vector<8x128xf32>
    %172 = math.tanh %166 : vector<8x128xf32>
    %173 = vector.extract_strided_slice %171 {offsets = [0, 0], sizes = [8, 32], strides = [1, 1]} : vector<8x128xf32> to vector<8x32xf32>
    %174 = vector.extract_strided_slice %171 {offsets = [0, 32], sizes = [8, 32], strides = [1, 1]} : vector<8x128xf32> to vector<8x32xf32>
    %175 = vector.extract_strided_slice %172 {offsets = [0, 64], sizes = [8, 32], strides = [1, 1]} : vector<8x128xf32> to vector<8x32xf32>
    %176 = vector.extract_strided_slice %171 {offsets = [0, 96], sizes = [8, 32], strides = [1, 1]} : vector<8x128xf32> to vector<8x32xf32>
    %177 = arith.mulf %174, %141 : vector<8x32xf32>
    %178 = arith.mulf %173, %175 : vector<8x32xf32>
    %179 = arith.addf %177, %178 : vector<8x32xf32>
    %180 = math.tanh %179 : vector<8x32xf32>
    %181 = arith.mulf %176, %180 : vector<8x32xf32>
    %182 = tpu.concatenate %181, %162 in 1 : vector<8x32xf32>, vector<8x32xf32> -> vector<8x64xf32>
    %cst_30 = arith.constant dense<0.000000e+00> : vector<8x128xf32>
    %183 = tpu.matmul %182, %8, %cst_30 {dimension_numbers = #tpu.dot_dimension_numbers<[1], [0], [0], [1], [0, 0, 1, 1], [], []>} : vector<8x64xf32>, vector<64x128xf32>, vector<8x128xf32> -> vector<8x128xf32>
    %184 = vector.broadcast %9 : vector<1x128xf32> to vector<8x128xf32>
    %185 = arith.addf %183, %184 : vector<8x128xf32>
    %186 = arith.negf %185 : vector<8x128xf32>
    %187 = math.exp %186 : vector<8x128xf32>
    %cst_31 = arith.constant 1.000000e+00 : f32
    %188 = vector.broadcast %cst_31 : f32 to vector<8x128xf32>
    %189 = arith.addf %188, %187 : vector<8x128xf32>
    %190 = arith.divf %188, %189 : vector<8x128xf32>
    %191 = math.tanh %185 : vector<8x128xf32>
    %192 = vector.extract_strided_slice %190 {offsets = [0, 0], sizes = [8, 32], strides = [1, 1]} : vector<8x128xf32> to vector<8x32xf32>
    %193 = vector.extract_strided_slice %190 {offsets = [0, 32], sizes = [8, 32], strides = [1, 1]} : vector<8x128xf32> to vector<8x32xf32>
    %194 = vector.extract_strided_slice %191 {offsets = [0, 64], sizes = [8, 32], strides = [1, 1]} : vector<8x128xf32> to vector<8x32xf32>
    %195 = vector.extract_strided_slice %190 {offsets = [0, 96], sizes = [8, 32], strides = [1, 1]} : vector<8x128xf32> to vector<8x32xf32>
    %196 = arith.mulf %193, %160 : vector<8x32xf32>
    %197 = arith.mulf %192, %194 : vector<8x32xf32>
    %198 = arith.addf %196, %197 : vector<8x32xf32>
    %199 = math.tanh %198 : vector<8x32xf32>
    %200 = arith.mulf %195, %199 : vector<8x32xf32>
    %201 = vector.extract_strided_slice %6 {offsets = [0, 5, 0], sizes = [8, 1, 128], strides = [1, 1, 1]} : vector<8x8x128xf32> to vector<8x1x128xf32>
    %202 = vector.shape_cast %201 : vector<8x1x128xf32> to vector<8x128xf32>
    %cst_32 = arith.constant dense<0.000000e+00> : vector<8x128xf32>
    %203 = tpu.matmul %181, %7, %cst_32 {dimension_numbers = #tpu.dot_dimension_numbers<[1], [0], [0], [1], [0, 0, 1, 1], [], []>} : vector<8x32xf32>, vector<32x128xf32>, vector<8x128xf32> -> vector<8x128xf32>
    %204 = arith.addf %202, %203 : vector<8x128xf32>
    %205 = arith.negf %204 : vector<8x128xf32>
    %206 = math.exp %205 : vector<8x128xf32>
    %cst_33 = arith.constant 1.000000e+00 : f32
    %207 = vector.broadcast %cst_33 : f32 to vector<8x128xf32>
    %208 = arith.addf %207, %206 : vector<8x128xf32>
    %209 = arith.divf %207, %208 : vector<8x128xf32>
    %210 = math.tanh %204 : vector<8x128xf32>
    %211 = vector.extract_strided_slice %209 {offsets = [0, 0], sizes = [8, 32], strides = [1, 1]} : vector<8x128xf32> to vector<8x32xf32>
    %212 = vector.extract_strided_slice %209 {offsets = [0, 32], sizes = [8, 32], strides = [1, 1]} : vector<8x128xf32> to vector<8x32xf32>
    %213 = vector.extract_strided_slice %210 {offsets = [0, 64], sizes = [8, 32], strides = [1, 1]} : vector<8x128xf32> to vector<8x32xf32>
    %214 = vector.extract_strided_slice %209 {offsets = [0, 96], sizes = [8, 32], strides = [1, 1]} : vector<8x128xf32> to vector<8x32xf32>
    %215 = arith.mulf %212, %179 : vector<8x32xf32>
    %216 = arith.mulf %211, %213 : vector<8x32xf32>
    %217 = arith.addf %215, %216 : vector<8x32xf32>
    %218 = math.tanh %217 : vector<8x32xf32>
    %219 = arith.mulf %214, %218 : vector<8x32xf32>
    %220 = tpu.concatenate %219, %200 in 1 : vector<8x32xf32>, vector<8x32xf32> -> vector<8x64xf32>
    %cst_34 = arith.constant dense<0.000000e+00> : vector<8x128xf32>
    %221 = tpu.matmul %220, %8, %cst_34 {dimension_numbers = #tpu.dot_dimension_numbers<[1], [0], [0], [1], [0, 0, 1, 1], [], []>} : vector<8x64xf32>, vector<64x128xf32>, vector<8x128xf32> -> vector<8x128xf32>
    %222 = vector.broadcast %9 : vector<1x128xf32> to vector<8x128xf32>
    %223 = arith.addf %221, %222 : vector<8x128xf32>
    %224 = arith.negf %223 : vector<8x128xf32>
    %225 = math.exp %224 : vector<8x128xf32>
    %cst_35 = arith.constant 1.000000e+00 : f32
    %226 = vector.broadcast %cst_35 : f32 to vector<8x128xf32>
    %227 = arith.addf %226, %225 : vector<8x128xf32>
    %228 = arith.divf %226, %227 : vector<8x128xf32>
    %229 = math.tanh %223 : vector<8x128xf32>
    %230 = vector.extract_strided_slice %228 {offsets = [0, 0], sizes = [8, 32], strides = [1, 1]} : vector<8x128xf32> to vector<8x32xf32>
    %231 = vector.extract_strided_slice %228 {offsets = [0, 32], sizes = [8, 32], strides = [1, 1]} : vector<8x128xf32> to vector<8x32xf32>
    %232 = vector.extract_strided_slice %229 {offsets = [0, 64], sizes = [8, 32], strides = [1, 1]} : vector<8x128xf32> to vector<8x32xf32>
    %233 = vector.extract_strided_slice %228 {offsets = [0, 96], sizes = [8, 32], strides = [1, 1]} : vector<8x128xf32> to vector<8x32xf32>
    %234 = arith.mulf %231, %198 : vector<8x32xf32>
    %235 = arith.mulf %230, %232 : vector<8x32xf32>
    %236 = arith.addf %234, %235 : vector<8x32xf32>
    %237 = math.tanh %236 : vector<8x32xf32>
    %238 = arith.mulf %233, %237 : vector<8x32xf32>
    %239 = vector.extract_strided_slice %6 {offsets = [0, 6, 0], sizes = [8, 1, 128], strides = [1, 1, 1]} : vector<8x8x128xf32> to vector<8x1x128xf32>
    %240 = vector.shape_cast %239 : vector<8x1x128xf32> to vector<8x128xf32>
    %cst_36 = arith.constant dense<0.000000e+00> : vector<8x128xf32>
    %241 = tpu.matmul %219, %7, %cst_36 {dimension_numbers = #tpu.dot_dimension_numbers<[1], [0], [0], [1], [0, 0, 1, 1], [], []>} : vector<8x32xf32>, vector<32x128xf32>, vector<8x128xf32> -> vector<8x128xf32>
    %242 = arith.addf %240, %241 : vector<8x128xf32>
    %243 = arith.negf %242 : vector<8x128xf32>
    %244 = math.exp %243 : vector<8x128xf32>
    %cst_37 = arith.constant 1.000000e+00 : f32
    %245 = vector.broadcast %cst_37 : f32 to vector<8x128xf32>
    %246 = arith.addf %245, %244 : vector<8x128xf32>
    %247 = arith.divf %245, %246 : vector<8x128xf32>
    %248 = math.tanh %242 : vector<8x128xf32>
    %249 = vector.extract_strided_slice %247 {offsets = [0, 0], sizes = [8, 32], strides = [1, 1]} : vector<8x128xf32> to vector<8x32xf32>
    %250 = vector.extract_strided_slice %247 {offsets = [0, 32], sizes = [8, 32], strides = [1, 1]} : vector<8x128xf32> to vector<8x32xf32>
    %251 = vector.extract_strided_slice %248 {offsets = [0, 64], sizes = [8, 32], strides = [1, 1]} : vector<8x128xf32> to vector<8x32xf32>
    %252 = vector.extract_strided_slice %247 {offsets = [0, 96], sizes = [8, 32], strides = [1, 1]} : vector<8x128xf32> to vector<8x32xf32>
    %253 = arith.mulf %250, %217 : vector<8x32xf32>
    %254 = arith.mulf %249, %251 : vector<8x32xf32>
    %255 = arith.addf %253, %254 : vector<8x32xf32>
    %256 = math.tanh %255 : vector<8x32xf32>
    %257 = arith.mulf %252, %256 : vector<8x32xf32>
    %258 = tpu.concatenate %257, %238 in 1 : vector<8x32xf32>, vector<8x32xf32> -> vector<8x64xf32>
    %cst_38 = arith.constant dense<0.000000e+00> : vector<8x128xf32>
    %259 = tpu.matmul %258, %8, %cst_38 {dimension_numbers = #tpu.dot_dimension_numbers<[1], [0], [0], [1], [0, 0, 1, 1], [], []>} : vector<8x64xf32>, vector<64x128xf32>, vector<8x128xf32> -> vector<8x128xf32>
    %260 = vector.broadcast %9 : vector<1x128xf32> to vector<8x128xf32>
    %261 = arith.addf %259, %260 : vector<8x128xf32>
    %262 = arith.negf %261 : vector<8x128xf32>
    %263 = math.exp %262 : vector<8x128xf32>
    %cst_39 = arith.constant 1.000000e+00 : f32
    %264 = vector.broadcast %cst_39 : f32 to vector<8x128xf32>
    %265 = arith.addf %264, %263 : vector<8x128xf32>
    %266 = arith.divf %264, %265 : vector<8x128xf32>
    %267 = math.tanh %261 : vector<8x128xf32>
    %268 = vector.extract_strided_slice %266 {offsets = [0, 0], sizes = [8, 32], strides = [1, 1]} : vector<8x128xf32> to vector<8x32xf32>
    %269 = vector.extract_strided_slice %266 {offsets = [0, 32], sizes = [8, 32], strides = [1, 1]} : vector<8x128xf32> to vector<8x32xf32>
    %270 = vector.extract_strided_slice %267 {offsets = [0, 64], sizes = [8, 32], strides = [1, 1]} : vector<8x128xf32> to vector<8x32xf32>
    %271 = vector.extract_strided_slice %266 {offsets = [0, 96], sizes = [8, 32], strides = [1, 1]} : vector<8x128xf32> to vector<8x32xf32>
    %272 = arith.mulf %269, %236 : vector<8x32xf32>
    %273 = arith.mulf %268, %270 : vector<8x32xf32>
    %274 = arith.addf %272, %273 : vector<8x32xf32>
    %275 = math.tanh %274 : vector<8x32xf32>
    %276 = arith.mulf %271, %275 : vector<8x32xf32>
    %277 = vector.extract_strided_slice %6 {offsets = [0, 7, 0], sizes = [8, 1, 128], strides = [1, 1, 1]} : vector<8x8x128xf32> to vector<8x1x128xf32>
    %278 = vector.shape_cast %277 : vector<8x1x128xf32> to vector<8x128xf32>
    %cst_40 = arith.constant dense<0.000000e+00> : vector<8x128xf32>
    %279 = tpu.matmul %257, %7, %cst_40 {dimension_numbers = #tpu.dot_dimension_numbers<[1], [0], [0], [1], [0, 0, 1, 1], [], []>} : vector<8x32xf32>, vector<32x128xf32>, vector<8x128xf32> -> vector<8x128xf32>
    %280 = arith.addf %278, %279 : vector<8x128xf32>
    %281 = arith.negf %280 : vector<8x128xf32>
    %282 = math.exp %281 : vector<8x128xf32>
    %cst_41 = arith.constant 1.000000e+00 : f32
    %283 = vector.broadcast %cst_41 : f32 to vector<8x128xf32>
    %284 = arith.addf %283, %282 : vector<8x128xf32>
    %285 = arith.divf %283, %284 : vector<8x128xf32>
    %286 = math.tanh %280 : vector<8x128xf32>
    %287 = vector.extract_strided_slice %285 {offsets = [0, 0], sizes = [8, 32], strides = [1, 1]} : vector<8x128xf32> to vector<8x32xf32>
    %288 = vector.extract_strided_slice %285 {offsets = [0, 32], sizes = [8, 32], strides = [1, 1]} : vector<8x128xf32> to vector<8x32xf32>
    %289 = vector.extract_strided_slice %286 {offsets = [0, 64], sizes = [8, 32], strides = [1, 1]} : vector<8x128xf32> to vector<8x32xf32>
    %290 = vector.extract_strided_slice %285 {offsets = [0, 96], sizes = [8, 32], strides = [1, 1]} : vector<8x128xf32> to vector<8x32xf32>
    %291 = arith.mulf %288, %255 : vector<8x32xf32>
    %292 = arith.mulf %287, %289 : vector<8x32xf32>
    %293 = arith.addf %291, %292 : vector<8x32xf32>
    %294 = math.tanh %293 : vector<8x32xf32>
    %295 = arith.mulf %290, %294 : vector<8x32xf32>
    %296 = tpu.concatenate %295, %276 in 1 : vector<8x32xf32>, vector<8x32xf32> -> vector<8x64xf32>
    %cst_42 = arith.constant dense<0.000000e+00> : vector<8x128xf32>
    %297 = tpu.matmul %296, %8, %cst_42 {dimension_numbers = #tpu.dot_dimension_numbers<[1], [0], [0], [1], [0, 0, 1, 1], [], []>} : vector<8x64xf32>, vector<64x128xf32>, vector<8x128xf32> -> vector<8x128xf32>
    %298 = vector.broadcast %9 : vector<1x128xf32> to vector<8x128xf32>
    %299 = arith.addf %297, %298 : vector<8x128xf32>
    %300 = arith.negf %299 : vector<8x128xf32>
    %301 = math.exp %300 : vector<8x128xf32>
    %cst_43 = arith.constant 1.000000e+00 : f32
    %302 = vector.broadcast %cst_43 : f32 to vector<8x128xf32>
    %303 = arith.addf %302, %301 : vector<8x128xf32>
    %304 = arith.divf %302, %303 : vector<8x128xf32>
    %305 = math.tanh %299 : vector<8x128xf32>
    %306 = vector.extract_strided_slice %304 {offsets = [0, 0], sizes = [8, 32], strides = [1, 1]} : vector<8x128xf32> to vector<8x32xf32>
    %307 = vector.extract_strided_slice %304 {offsets = [0, 32], sizes = [8, 32], strides = [1, 1]} : vector<8x128xf32> to vector<8x32xf32>
    %308 = vector.extract_strided_slice %305 {offsets = [0, 64], sizes = [8, 32], strides = [1, 1]} : vector<8x128xf32> to vector<8x32xf32>
    %309 = vector.extract_strided_slice %304 {offsets = [0, 96], sizes = [8, 32], strides = [1, 1]} : vector<8x128xf32> to vector<8x32xf32>
    %310 = arith.mulf %307, %274 : vector<8x32xf32>
    %311 = arith.mulf %306, %308 : vector<8x32xf32>
    %312 = arith.addf %310, %311 : vector<8x32xf32>
    %313 = math.tanh %312 : vector<8x32xf32>
    %314 = arith.mulf %309, %313 : vector<8x32xf32>
    %c0_44 = arith.constant 0 : index
    %c0_45 = arith.constant 0 : index
    %315 = vector.load %arg6[%c0_44, %c0_45] : memref<32x2xf32, #tpu.memory_space<vmem>>, vector<32x2xf32>
    %cst_46 = arith.constant dense<0.000000e+00> : vector<8x2xf32>
    %316 = tpu.matmul %314, %315, %cst_46 {dimension_numbers = #tpu.dot_dimension_numbers<[1], [0], [0], [1], [0, 0, 1, 1], [], []>} : vector<8x32xf32>, vector<32x2xf32>, vector<8x2xf32> -> vector<8x2xf32>
    %c0_47 = arith.constant 0 : index
    %c0_48 = arith.constant 0 : index
    %317 = vector.load %arg7[%c0_47, %c0_48] : memref<1x2xf32, #tpu.memory_space<vmem>>, vector<1x2xf32>
    %318 = vector.broadcast %317 : vector<1x2xf32> to vector<8x2xf32>
    %319 = arith.addf %316, %318 : vector<8x2xf32>
    %c0_49 = arith.constant 0 : index
    %c0_50 = arith.constant 0 : index
    %320 = vector.load %arg8[%c0_49, %c0_50] : memref<8x2xf32, #tpu.memory_space<vmem>>, vector<8x2xf32>
    tpu.vector_store %arg8[%c0_49, %c0_50], %319 {strides = array<i32>} : memref<8x2xf32, #tpu.memory_space<vmem>>, vector<8x2xf32>,
    return
  }
}

</mosaic_0001>

<llo_original>
// kernel: lstm_forward.1
$region0: #{lstm_forward.1}
  #allocation0 [shape = 'u32[]', space=smem, size = 0x4, offset = 0x4, fixed_abs, tag = 'smem constant byte address 0x4 - core index']
  #allocation1 [shape = 'u32[144,128]{1,0:T(1,128)}', space=vmem, size = 0x12000, scoped, tag = 'internal scratch']
  %s0 = inlined_call_operand.hbm [shape: f32[64,16], index: 0, kind: input, shape index: {}]
  %s1 = inlined_call_operand.hbm [shape: f32[16,128], index: 1, kind: input, shape index: {}]
  %s2 = inlined_call_operand.vmem [shape: f32[32,128], index: 2, kind: input, shape index: {}]
  %s3 = inlined_call_operand.vmem [shape: f32[1,128], index: 3, kind: input, shape index: {}]
  %s4 = inlined_call_operand.hbm [shape: f32[64,128], index: 4, kind: input, shape index: {}]
  %s5 = inlined_call_operand.vmem [shape: f32[1,128], index: 5, kind: input, shape index: {}]
  %s6 = inlined_call_operand.vmem [shape: f32[32,2], index: 6, kind: input, shape index: {}]
  %s7 = inlined_call_operand.vmem [shape: f32[1,2], index: 7, kind: input, shape index: {}]
  %s8 = inlined_call_operand.vmem [shape: f32[8,2], index: 8, kind: output, shape index: {}]
  %s9 = sld [smem:[#allocation0]]
  $region54: #{lstm_forward.1} parent=0
    _
  %s11 = ssub.s32 1, %s9
  %s12 = scalar_select 0, %s11, %s9
  $region1: #{lstm_forward.1} parent=0
    #allocation2 [shape = 'u8[32768]{0}', space=vmem, size = 0x8000, scoped, tag = 'input window, operand 0, single buffered']
    #allocation3 [shape = 's32[1]{0}', space=sflag, size = 0x4, scoped, tag = 'scoped memory for lstm_forward.1']
    #allocation4 [shape = 'u8[8192]{0}', space=vmem, size = 0x2000, scoped, tag = 'input window, operand 1, single buffered']
    #allocation5 [shape = 's32[1]{0}', space=sflag, size = 0x4, scoped, tag = 'scoped memory for lstm_forward.1']
    #allocation6 [shape = 'u8[32768]{0}', space=vmem, size = 0x8000, scoped, tag = 'input window, operand 4, single buffered']
    %13 = vsyncpa [#allocation3], 0
    %14 = vsyncpa [#allocation5], 0
    // Predicated region
    $region2: #{lstm_forward.1} parent=1 // pred_check
      _
    $region3: #{lstm_forward.1} parent=1 // pred_check_branch
      %16 = sbr.rel (0) target = $region5
    $region4: #{lstm_forward.1} parent=1 // pred_region
      %s18 = ssub.s32 1024, 1024
      %19 = vsyncadd [#allocation3], %s18
      %s20 = sshll.u32 [#allocation2], 4
      %s21 = int_to_ptr.vmem [resolvable:$true] %s20
      %26 = dma.hbm_to_vmem [thread:$0]  %s0, 1024, %s21, [#allocation3], 128, 128, 8
    $region5: #{lstm_forward.1} parent=1 // pred_fallthru
      _
    // Predicated region
    $region6: #{lstm_forward.1} parent=1 // pred_check
      _
    $region7: #{lstm_forward.1} parent=1 // pred_check_branch
      %28 = sbr.rel (0) target = $region9
    $region8: #{lstm_forward.1} parent=1 // pred_region
      %s30 = ssub.s32 256, 256
      %31 = vsyncadd [#allocation5], %s30
      %s32 = sshll.u32 [#allocation4], 4
      %s33 = int_to_ptr.vmem [resolvable:$true] %s32
      %38 = dma.hbm_to_vmem [thread:$0]  %s1, 256, %s33, [#allocation5], 128, 128, 8
    $region9: #{lstm_forward.1} parent=1 // pred_fallthru
      _
    // Predicated region
    $region10: #{lstm_forward.1} parent=1 // pred_check
      _
    $region11: #{lstm_forward.1} parent=1 // pred_check_branch
      %40 = sbr.rel (0) target = $region13
    $region12: #{lstm_forward.1} parent=1 // pred_region
      _
    $region13: #{lstm_forward.1} parent=1 // pred_fallthru
      _
    // Predicated region
    $region14: #{lstm_forward.1} parent=1 // pred_check
      _
    $region15: #{lstm_forward.1} parent=1 // pred_check_branch
      %42 = sbr.rel (0) target = $region17
    $region16: #{lstm_forward.1} parent=1 // pred_region
      _
    $region17: #{lstm_forward.1} parent=1 // pred_fallthru
      _
    // Predicated region
    $region18: #{lstm_forward.1} parent=1 // pred_check
      _
    $region19: #{lstm_forward.1} parent=1 // pred_check_branch
      %44 = sbr.rel (0) target = $region21
    $region20: #{lstm_forward.1} parent=1 // pred_region
      %s46 = ssub.s32 1024, 1024
      %47 = vsyncadd [#allocation5], %s46
      %s48 = sshll.u32 [#allocation6], 4
      %s49 = int_to_ptr.vmem [resolvable:$true] %s48
      %54 = dma.hbm_to_vmem [thread:$0]  %s4, 1024, %s49, [#allocation5], 128, 128, 8
    $region21: #{lstm_forward.1} parent=1 // pred_fallthru
      _
    // Predicated region
    $region22: #{lstm_forward.1} parent=1 // pred_check
      _
    $region23: #{lstm_forward.1} parent=1 // pred_check_branch
      %56 = sbr.rel (0) target = $region25
    $region24: #{lstm_forward.1} parent=1 // pred_region
      _
    $region25: #{lstm_forward.1} parent=1 // pred_fallthru
      _
    // Predicated region
    $region26: #{lstm_forward.1} parent=1 // pred_check
      _
    $region27: #{lstm_forward.1} parent=1 // pred_check_branch
      %58 = sbr.rel (0) target = $region29
    $region28: #{lstm_forward.1} parent=1 // pred_region
      _
    $region29: #{lstm_forward.1} parent=1 // pred_fallthru
      _
    // Predicated region
    $region30: #{lstm_forward.1} parent=1 // pred_check
      _
    $region31: #{lstm_forward.1} parent=1 // pred_check_branch
      %60 = sbr.rel (0) target = $region33
    $region32: #{lstm_forward.1} parent=1 // pred_region
      _
    $region33: #{lstm_forward.1} parent=1 // pred_fallthru
      _
    // Predicated region
    $region34: #{lstm_forward.1} parent=1 // pred_check
      _
    $region35: #{lstm_forward.1} parent=1 // pred_check_branch
      %62 = sbr.rel (0) target = $region37
    $region36: #{lstm_forward.1} parent=1 // pred_region
      %63 = dma.done [#allocation3], 1024
    $region37: #{lstm_forward.1} parent=1 // pred_fallthru
      _
    // Predicated region
    $region38: #{lstm_forward.1} parent=1 // pred_check
      _
    $region39: #{lstm_forward.1} parent=1 // pred_check_branch
      %65 = sbr.rel (0) target = $region41
    $region40: #{lstm_forward.1} parent=1 // pred_region
      %66 = dma.done [#allocation5], 256
    $region41: #{lstm_forward.1} parent=1 // pred_fallthru
      _
    // Predicated region
    $region42: #{lstm_forward.1} parent=1 // pred_check
      _
    $region43: #{lstm_forward.1} parent=1 // pred_check_branch
      %68 = sbr.rel (0) target = $region45
    $region44: #{lstm_forward.1} parent=1 // pred_region
      %69 = dma.done [#allocation5], 1024
    $region45: #{lstm_forward.1} parent=1 // pred_fallthru
      _
    %v70 = vld [vmem:[#allocation2] sm:$0xff]
    %v71 = vld [vmem:[#allocation2 + $0x8] sm:$0xff]
    %v72 = vld [vmem:[#allocation2 + $0x10] sm:$0xff]
    %v73 = vld [vmem:[#allocation2 + $0x18] sm:$0xff]
    %v74 = vld [vmem:[#allocation2 + $0x20] sm:$0xff]
    %v75 = vld [vmem:[#allocation2 + $0x28] sm:$0xff]
    %v76 = vld [vmem:[#allocation2 + $0x30] sm:$0xff]
    %v77 = vld [vmem:[#allocation2 + $0x38] sm:$0xff]
    %v78 = vld [vmem:[#allocation4] sm:$0xff]
    %v79 = vld [vmem:[#allocation4 + $0x8] sm:$0xff]
    %v80 = vld [vmem:[%s3] sm:$0x1]
    %v82 = vlaneseq
    %v83 = vshrl.u32 %v82, 7
    %v84 = vsub.s32 0, %v83
    %v85 = vrot.slane %v80, %v84
    %vm87 = vcmask 130048
    %v89 = vsel %vm87, %v70, 0
    %v92 = vsel %vm87, %v71, 0
    %v95 = vsel %vm87, %v72, 0
    %v98 = vsel %vm87, %v73, 0
    %v101 = vsel %vm87, %v74, 0
    %v104 = vsel %vm87, %v75, 0
    %v107 = vsel %vm87, %v76, 0
    %v110 = vsel %vm87, %v77, 0
    %112 = vmatprep.subr.mxu0 0.0
    %113 = vmatpush1.msra.mxu0 %v78
    %114 = vmatprep.subr.mxu0 0.0
    %115 = vmatpush1.msra.mxu0 %v79
    %116 = vmatprep.subr.mxu0 0.0
    %117 = vmatpush1.msra.mxu0 0.0
    %118 = vmatprep.subr.mxu0 0.0
    %119 = vmatpush1.msra.mxu0 0.0
    %120 = vmatprep.subr.mxu0 0.0
    %121 = vmatpush1.msra.mxu0 0.0
    %122 = vmatprep.subr.mxu0 0.0
    %123 = vmatpush1.msra.mxu0 0.0
    %124 = vmatprep.subr.mxu0 0.0
    %125 = vmatpush1.msra.mxu0 0.0
    %126 = vmatprep.subr.mxu0 0.0
    %127 = vmatpush1.msra.mxu0 0.0
    %128 = vmatprep.subr.mxu0 0.0
    %129 = vmatpush1.msra.mxu0 0.0
    %130 = vmatprep.subr.mxu0 0.0
    %131 = vmatpush1.msra.mxu0 0.0
    %132 = vmatprep.subr.mxu0 0.0
    %133 = vmatpush1.msra.mxu0 0.0
    %134 = vmatprep.subr.mxu0 0.0
    %135 = vmatpush1.msra.mxu0 0.0
    %136 = vmatprep.subr.mxu0 0.0
    %137 = vmatpush1.msra.mxu0 0.0
    %138 = vmatprep.subr.mxu0 0.0
    %139 = vmatpush1.msra.mxu0 0.0
    %140 = vmatprep.subr.mxu0 0.0
    %141 = vmatpush1.msra.mxu0 0.0
    %142 = vmatprep.subr.mxu0 0.0
    %143 = vmatpush1.msra.mxu0 0.0
    %144 = vmatprep.subr.mxu0 0.0
    %145 = vmatpush1.msra.mxu0 0.0
    %146 = vmatprep.subr.mxu0 0.0
    %147 = vmatpush1.msra.mxu0 0.0
    %148 = vmatprep.subr.mxu0 0.0
    %149 = vmatpush1.msra.mxu0 0.0
    %150 = vmatprep.subr.mxu0 0.0
    %151 = vmatpush1.msra.mxu0 0.0
    %152 = vmatprep.subr.mxu0 0.0
    %153 = vmatpush1.msra.mxu0 0.0
    %154 = vmatprep.subr.mxu0 0.0
    %155 = vmatpush1.msra.mxu0 0.0
    %156 = vmatprep.subr.mxu0 0.0
    %157 = vmatpush1.msra.mxu0 0.0
    %158 = vmatprep.subr.mxu0 0.0
    %159 = vmatpush1.msra.mxu0 0.0
    %160 = vmatprep.subr.mxu0 0.0
    %161 = vmatpush1.msra.mxu0 0.0
    %162 = vmatprep.subr.mxu0 0.0
    %163 = vmatpush1.msra.mxu0 0.0
    %164 = vmatprep.subr.mxu0 0.0
    %165 = vmatpush1.msra.mxu0 0.0
    %166 = vmatprep.subr.mxu0 0.0
    %167 = vmatpush1.msra.mxu0 0.0
    %168 = vmatprep.subr.mxu0 0.0
    %169 = vmatpush1.msra.mxu0 0.0
    %170 = vmatprep.subr.mxu0 0.0
    %171 = vmatpush1.msra.mxu0 0.0
    %172 = vmatprep.subr.mxu0 0.0
    %173 = vmatpush1.msra.mxu0 0.0
    %174 = vmatprep.subr.mxu0 0.0
    %175 = vmatpush1.msra.mxu0 0.0
    %176 = vmatprep.mubr.f32.mxu0 0.0
    %177 = vmatmul.mubr.f32.gmra.mrb[0].mxu0 %v89
    %v178 = vpop.f32.mrb[0].mxu0
    %v179 = vadd.f32 %v85, %v178
    %v180 = vpop.f32.mrb[0].mxu0
    %181 = vmatprep.mubr.f32.mxu0 0.0
    %182 = vmatmul.mubr.f32.gmra.mrb[0].mxu0 %v92
    %v183 = vpop.f32.mrb[0].mxu0
    %v184 = vadd.f32 %v85, %v183
    %v185 = vpop.f32.mrb[0].mxu0
    %186 = vmatprep.mubr.f32.mxu0 0.0
    %187 = vmatmul.mubr.f32.gmra.mrb[0].mxu0 %v95
    %v188 = vpop.f32.mrb[0].mxu0
    %v189 = vadd.f32 %v85, %v188
    %v190 = vpop.f32.mrb[0].mxu0
    %191 = vmatprep.mubr.f32.mxu0 0.0
    %192 = vmatmul.mubr.f32.gmra.mrb[0].mxu0 %v98
    %v193 = vpop.f32.mrb[0].mxu0
    %v194 = vadd.f32 %v85, %v193
    %v195 = vpop.f32.mrb[0].mxu0
    %196 = vmatprep.mubr.f32.mxu0 0.0
    %197 = vmatmul.mubr.f32.gmra.mrb[0].mxu0 %v101
    %v198 = vpop.f32.mrb[0].mxu0
    %v199 = vadd.f32 %v85, %v198
    %v200 = vpop.f32.mrb[0].mxu0
    %201 = vmatprep.mubr.f32.mxu0 0.0
    %202 = vmatmul.mubr.f32.gmra.mrb[0].mxu0 %v104
    %v203 = vpop.f32.mrb[0].mxu0
    %v204 = vadd.f32 %v85, %v203
    %v205 = vpop.f32.mrb[0].mxu0
    %206 = vmatprep.mubr.f32.mxu0 0.0
    %207 = vmatmul.mubr.f32.gmra.mrb[0].mxu0 %v107
    %v208 = vpop.f32.mrb[0].mxu0
    %v209 = vadd.f32 %v85, %v208
    %v210 = vpop.f32.mrb[0].mxu0
    %211 = vmatprep.mubr.f32.mxu0 0.0
    %212 = vmatmul.mubr.f32.gmra.mrb[0].mxu0 %v110
    %v213 = vpop.f32.mrb[0].mxu0
    %v214 = vadd.f32 %v85, %v213
    %v215 = vpop.f32.mrb[0].mxu0
    %216 = vdwg.mxu0
    %v217 = vld [vmem:[%s2] sm:$0xff]
    %v218 = vld [vmem:[%s2 + $0x8] sm:$0xff]
    %v219 = vld [vmem:[%s2 + $0x10] sm:$0xff]
    %v220 = vld [vmem:[%s2 + $0x18] sm:$0xff]
    %v221 = vld [vmem:[#allocation6] sm:$0xff]
    %v222 = vld [vmem:[#allocation6 + $0x8] sm:$0xff]
    %v223 = vld [vmem:[#allocation6 + $0x10] sm:$0xff]
    %v224 = vld [vmem:[#allocation6 + $0x18] sm:$0xff]
    %v225 = vld [vmem:[#allocation6 + $0x20] sm:$0xff]
    %v226 = vld [vmem:[#allocation6 + $0x28] sm:$0xff]
    %v227 = vld [vmem:[#allocation6 + $0x30] sm:$0xff]
    %v228 = vld [vmem:[#allocation6 + $0x38] sm:$0xff]
    %v229 = vld [vmem:[%s5] sm:$0x1]
    %vm230 = vcmask 261120
    %v232 = vsel %vm230, 0.0, 0
    %234 = vmatprep.subr.mxu0 0.0
    %235 = vmatpush1.msra.mxu0 %v217
    %236 = vmatprep.subr.mxu0 0.0
    %237 = vmatpush1.msra.mxu0 %v218
    %238 = vmatprep.subr.mxu0 0.0
    %239 = vmatpush1.msra.mxu0 %v219
    %240 = vmatprep.subr.mxu0 0.0
    %241 = vmatpush1.msra.mxu0 %v220
    %242 = vmatprep.subr.mxu0 0.0
    %243 = vmatpush1.msra.mxu0 0.0
    %244 = vmatprep.subr.mxu0 0.0
    %245 = vmatpush1.msra.mxu0 0.0
    %246 = vmatprep.subr.mxu0 0.0
    %247 = vmatpush1.msra.mxu0 0.0
    %248 = vmatprep.subr.mxu0 0.0
    %249 = vmatpush1.msra.mxu0 0.0
    %250 = vmatprep.subr.mxu0 0.0
    %251 = vmatpush1.msra.mxu0 0.0
    %252 = vmatprep.subr.mxu0 0.0
    %253 = vmatpush1.msra.mxu0 0.0
    %254 = vmatprep.subr.mxu0 0.0
    %255 = vmatpush1.msra.mxu0 0.0
    %256 = vmatprep.subr.mxu0 0.0
    %257 = vmatpush1.msra.mxu0 0.0
    %258 = vmatprep.subr.mxu0 0.0
    %259 = vmatpush1.msra.mxu0 0.0
    %260 = vmatprep.subr.mxu0 0.0
    %261 = vmatpush1.msra.mxu0 0.0
    %262 = vmatprep.subr.mxu0 0.0
    %263 = vmatpush1.msra.mxu0 0.0
    %264 = vmatprep.subr.mxu0 0.0
    %265 = vmatpush1.msra.mxu0 0.0
    %266 = vmatprep.subr.mxu0 0.0
    %267 = vmatpush1.msra.mxu0 0.0
    %268 = vmatprep.subr.mxu0 0.0
    %269 = vmatpush1.msra.mxu0 0.0
    %270 = vmatprep.subr.mxu0 0.0
    %271 = vmatpush1.msra.mxu0 0.0
    %272 = vmatprep.subr.mxu0 0.0
    %273 = vmatpush1.msra.mxu0 0.0
    %274 = vmatprep.subr.mxu0 0.0
    %275 = vmatpush1.msra.mxu0 0.0
    %276 = vmatprep.subr.mxu0 0.0
    %277 = vmatpush1.msra.mxu0 0.0
    %278 = vmatprep.subr.mxu0 0.0
    %279 = vmatpush1.msra.mxu0 0.0
    %280 = vmatprep.subr.mxu0 0.0
    %281 = vmatpush1.msra.mxu0 0.0
    %282 = vmatprep.subr.mxu0 0.0
    %283 = vmatpush1.msra.mxu0 0.0
    %284 = vmatprep.subr.mxu0 0.0
    %285 = vmatpush1.msra.mxu0 0.0
    %286 = vmatprep.subr.mxu0 0.0
    %287 = vmatpush1.msra.mxu0 0.0
    %288 = vmatprep.subr.mxu0 0.0
    %289 = vmatpush1.msra.mxu0 0.0
    %290 = vmatprep.subr.mxu0 0.0
    %291 = vmatpush1.msra.mxu0 0.0
    %292 = vmatprep.subr.mxu0 0.0
    %293 = vmatpush1.msra.mxu0 0.0
    %294 = vmatprep.subr.mxu0 0.0
    %295 = vmatpush1.msra.mxu0 0.0
    %296 = vmatprep.subr.mxu0 0.0
    %297 = vmatpush1.msra.mxu0 0.0
    %298 = vmatprep.mubr.f32.mxu0 0.0
    %299 = vmatmul.mubr.f32.gmra.mrb[0].mxu0 %v232
    %v300 = vpop.f32.mrb[0].mxu0
    %v301 = vadd.f32 0.0, %v300
    %v302 = vpop.f32.mrb[0].mxu0
    %303 = vdwg.mxu0
    %v305 = vrot.slane %v301, 1
    %v306 = vrot.slane %v301, 2
    %v307 = vrot.slane %v301, 3
    %v308 = vrot.slane %v301, 4
    %v309 = vrot.slane %v301, 5
    %v310 = vrot.slane %v301, 6
    %v311 = vrot.slane %v301, 7
    %v320 = vadd.f32 %v179, %v301
    %v321 = vadd.f32 %v184, %v305
    %v322 = vadd.f32 %v189, %v306
    %v323 = vadd.f32 %v194, %v307
    %v324 = vadd.f32 %v199, %v308
    %v325 = vadd.f32 %v204, %v309
    %v326 = vadd.f32 %v209, %v310
    %v327 = vadd.f32 %v214, %v311
    %v328 = vxor.u32 %v320, 2147483648
    %v329 = vxor.u32 %v321, 2147483648
    %v330 = vxor.u32 %v322, 2147483648
    %v331 = vxor.u32 %v323, 2147483648
    %v332 = vxor.u32 %v324, 2147483648
    %v333 = vxor.u32 %v325, 2147483648
    %v334 = vxor.u32 %v326, 2147483648
    %v335 = vxor.u32 %v327, 2147483648
    %v336 = vmul.f32 %v328, 1.442695
    %v337 = vpow.pop %v336
    %v338 = vmul.f32 %v329, 1.442695
    %v339 = vpow.pop %v338
    %v340 = vmul.f32 %v330, 1.442695
    %v341 = vpow.pop %v340
    %v342 = vmul.f32 %v331, 1.442695
    %v343 = vpow.pop %v342
    %v344 = vmul.f32 %v332, 1.442695
    %v345 = vpow.pop %v344
    %v346 = vmul.f32 %v333, 1.442695
    %v347 = vpow.pop %v346
    %v348 = vmul.f32 %v334, 1.442695
    %v349 = vpow.pop %v348
    %v350 = vmul.f32 %v335, 1.442695
    %v351 = vpow.pop %v350
    %v352 = vadd.f32 %v337, 1.0
    %v353 = vadd.f32 %v339, 1.0
    %v354 = vadd.f32 %v341, 1.0
    %v355 = vadd.f32 %v343, 1.0
    %v356 = vadd.f32 %v345, 1.0
    %v357 = vadd.f32 %v347, 1.0
    %v358 = vadd.f32 %v349, 1.0
    %v359 = vadd.f32 %v351, 1.0
    %v360 = vrcp.pop %v352
    %v361 = vmul.f32 1.0, %v360
    %v362 = vrcp.pop %v353
    %v363 = vmul.f32 1.0, %v362
    %v364 = vrcp.pop %v354
    %v365 = vmul.f32 1.0, %v364
    %v366 = vrcp.pop %v355
    %v367 = vmul.f32 1.0, %v366
    %v368 = vrcp.pop %v356
    %v369 = vmul.f32 1.0, %v368
    %v370 = vrcp.pop %v357
    %v371 = vmul.f32 1.0, %v370
    %v372 = vrcp.pop %v358
    %v373 = vmul.f32 1.0, %v372
    %v374 = vrcp.pop %v359
    %v375 = vmul.f32 1.0, %v374
    %v376 = vtanh.pop %v320
    %v377 = vtanh.pop %v321
    %v378 = vtanh.pop %v322
    %v379 = vtanh.pop %v323
    %v380 = vtanh.pop %v324
    %v381 = vtanh.pop %v325
    %v382 = vtanh.pop %v326
    %v383 = vtanh.pop %v327
    %v384 = vmul.f32 %v361, 0.0
    %v385 = vmul.f32 %v363, 0.0
    %v386 = vmul.f32 %v365, 0.0
    %v387 = vmul.f32 %v367, 0.0
    %v388 = vmul.f32 %v369, 0.0
    %v389 = vmul.f32 %v371, 0.0
    %v390 = vmul.f32 %v373, 0.0
    %v391 = vmul.f32 %v375, 0.0
    %400 = vrot.lane.b32.xlu0 %v376, 64
    %v401 = vpop.permute.xlu0 %400
    %402 = vrot.lane.b32.xlu0 %v377, 64
    %v403 = vpop.permute.xlu0 %402
    %404 = vrot.lane.b32.xlu0 %v378, 64
    %v405 = vpop.permute.xlu0 %404
    %406 = vrot.lane.b32.xlu0 %v379, 64
    %v407 = vpop.permute.xlu0 %406
    %408 = vrot.lane.b32.xlu0 %v380, 64
    %v409 = vpop.permute.xlu0 %408
    %410 = vrot.lane.b32.xlu0 %v381, 64
    %v411 = vpop.permute.xlu0 %410
    %412 = vrot.lane.b32.xlu0 %v382, 64
    %v413 = vpop.permute.xlu0 %412
    %414 = vrot.lane.b32.xlu0 %v383, 64
    %v415 = vpop.permute.xlu0 %414
    %v424 = vmul.f32 %v361, %v401
    %v425 = vmul.f32 %v363, %v403
    %v426 = vmul.f32 %v365, %v405
    %v427 = vmul.f32 %v367, %v407
    %v428 = vmul.f32 %v369, %v409
    %v429 = vmul.f32 %v371, %v411
    %v430 = vmul.f32 %v373, %v413
    %v431 = vmul.f32 %v375, %v415
    %440 = vrot.lane.b32.xlu0 %v424, 32
    %v441 = vpop.permute.xlu0 %440
    %442 = vrot.lane.b32.xlu0 %v425, 32
    %v443 = vpop.permute.xlu0 %442
    %444 = vrot.lane.b32.xlu0 %v426, 32
    %v445 = vpop.permute.xlu0 %444
    %446 = vrot.lane.b32.xlu0 %v427, 32
    %v447 = vpop.permute.xlu0 %446
    %448 = vrot.lane.b32.xlu0 %v428, 32
    %v449 = vpop.permute.xlu0 %448
    %450 = vrot.lane.b32.xlu0 %v429, 32
    %v451 = vpop.permute.xlu0 %450
    %452 = vrot.lane.b32.xlu0 %v430, 32
    %v453 = vpop.permute.xlu0 %452
    %454 = vrot.lane.b32.xlu0 %v431, 32
    %v455 = vpop.permute.xlu0 %454
    %v464 = vadd.f32 %v384, %v441
    %v465 = vadd.f32 %v385, %v443
    %v466 = vadd.f32 %v386, %v445
    %v467 = vadd.f32 %v387, %v447
    %v468 = vadd.f32 %v388, %v449
    %v469 = vadd.f32 %v389, %v451
    %v470 = vadd.f32 %v390, %v453
    %v471 = vadd.f32 %v391, %v455
    %v472 = vtanh.pop %v464
    %v473 = vtanh.pop %v465
    %v474 = vtanh.pop %v466
    %v475 = vtanh.pop %v467
    %v476 = vtanh.pop %v468
    %v477 = vtanh.pop %v469
    %v478 = vtanh.pop %v470
    %v479 = vtanh.pop %v471
    %488 = vrot.lane.b32.xlu0 %v472, 64
    %v489 = vpop.permute.xlu0 %488
    %490 = vrot.lane.b32.xlu0 %v473, 64
    %v491 = vpop.permute.xlu0 %490
    %492 = vrot.lane.b32.xlu0 %v474, 64
    %v493 = vpop.permute.xlu0 %492
    %494 = vrot.lane.b32.xlu0 %v475, 64
    %v495 = vpop.permute.xlu0 %494
    %496 = vrot.lane.b32.xlu0 %v476, 64
    %v497 = vpop.permute.xlu0 %496
    %498 = vrot.lane.b32.xlu0 %v477, 64
    %v499 = vpop.permute.xlu0 %498
    %500 = vrot.lane.b32.xlu0 %v478, 64
    %v501 = vpop.permute.xlu0 %500
    %502 = vrot.lane.b32.xlu0 %v479, 64
    %v503 = vpop.permute.xlu0 %502
    %v512 = vmul.f32 %v361, %v489
    %v513 = vmul.f32 %v363, %v491
    %v514 = vmul.f32 %v365, %v493
    %v515 = vmul.f32 %v367, %v495
    %v516 = vmul.f32 %v369, %v497
    %v517 = vmul.f32 %v371, %v499
    %v518 = vmul.f32 %v373, %v501
    %v519 = vmul.f32 %v375, %v503
    %v528 = vrot.slane %v513, 7
    %vm529 = vcmask 1041409
    %v530 = vsel %vm529, %v528, %v512
    %v531 = vrot.slane %v514, 6
    %vm532 = vcmask 1042434
    %v533 = vsel %vm532, %v531, %v530
    %v534 = vrot.slane %v515, 5
    %vm535 = vcmask 1043459
    %v536 = vsel %vm535, %v534, %v533
    %v537 = vrot.slane %v516, 4
    %vm538 = vcmask 1044484
    %v539 = vsel %vm538, %v537, %v536
    %v540 = vrot.slane %v517, 3
    %vm541 = vcmask 1045509
    %v542 = vsel %vm541, %v540, %v539
    %v543 = vrot.slane %v518, 2
    %vm544 = vcmask 1046534
    %v545 = vsel %vm544, %v543, %v542
    %v546 = vrot.slane %v519, 1
    %vm547 = vcmask 1047559
    %v548 = vsel %vm547, %v546, %v545
    %549 = vrot.lane.b32.xlu0 %v548, 32
    %v550 = vpop.permute.xlu0 %549
    %v552 = vsel %vm230, %v550, 0.0
    %v554 = vlaneseq
    %v555 = vshrl.u32 %v554, 7
    %v556 = vsub.s32 0, %v555
    %v557 = vrot.slane %v229, %v556
    %vm559 = vcmask 523264
    %v561 = vsel %vm559, %v552, 0
    %563 = vmatprep.subr.mxu0 0.0
    %564 = vmatpush1.msra.mxu0 %v221
    %565 = vmatprep.subr.mxu0 0.0
    %566 = vmatpush1.msra.mxu0 %v222
    %567 = vmatprep.subr.mxu0 0.0
    %568 = vmatpush1.msra.mxu0 %v223
    %569 = vmatprep.subr.mxu0 0.0
    %570 = vmatpush1.msra.mxu0 %v224
    %571 = vmatprep.subr.mxu0 0.0
    %572 = vmatpush1.msra.mxu0 %v225
    %573 = vmatprep.subr.mxu0 0.0
    %574 = vmatpush1.msra.mxu0 %v226
    %575 = vmatprep.subr.mxu0 0.0
    %576 = vmatpush1.msra.mxu0 %v227
    %577 = vmatprep.subr.mxu0 0.0
    %578 = vmatpush1.msra.mxu0 %v228
    %579 = vmatprep.subr.mxu0 0.0
    %580 = vmatpush1.msra.mxu0 0.0
    %581 = vmatprep.subr.mxu0 0.0
    %582 = vmatpush1.msra.mxu0 0.0
    %583 = vmatprep.subr.mxu0 0.0
    %584 = vmatpush1.msra.mxu0 0.0
    %585 = vmatprep.subr.mxu0 0.0
    %586 = vmatpush1.msra.mxu0 0.0
    %587 = vmatprep.subr.mxu0 0.0
    %588 = vmatpush1.msra.mxu0 0.0
    %589 = vmatprep.subr.mxu0 0.0
    %590 = vmatpush1.msra.mxu0 0.0
    %591 = vmatprep.subr.mxu0 0.0
    %592 = vmatpush1.msra.mxu0 0.0
    %593 = vmatprep.subr.mxu0 0.0
    %594 = vmatpush1.msra.mxu0 0.0
    %595 = vmatprep.subr.mxu0 0.0
    %596 = vmatpush1.msra.mxu0 0.0
    %597 = vmatprep.subr.mxu0 0.0
    %598 = vmatpush1.msra.mxu0 0.0
    %599 = vmatprep.subr.mxu0 0.0
    %600 = vmatpush1.msra.mxu0 0.0
    %601 = vmatprep.subr.mxu0 0.0
    %602 = vmatpush1.msra.mxu0 0.0
    %603 = vmatprep.subr.mxu0 0.0
    %604 = vmatpush1.msra.mxu0 0.0
    %605 = vmatprep.subr.mxu0 0.0
    %606 = vmatpush1.msra.mxu0 0.0
    %607 = vmatprep.subr.mxu0 0.0
    %608 = vmatpush1.msra.mxu0 0.0
    %609 = vmatprep.subr.mxu0 0.0
    %610 = vmatpush1.msra.mxu0 0.0
    %611 = vmatprep.subr.mxu0 0.0
    %612 = vmatpush1.msra.mxu0 0.0
    %613 = vmatprep.subr.mxu0 0.0
    %614 = vmatpush1.msra.mxu0 0.0
    %615 = vmatprep.subr.mxu0 0.0
    %616 = vmatpush1.msra.mxu0 0.0
    %617 = vmatprep.subr.mxu0 0.0
    %618 = vmatpush1.msra.mxu0 0.0
    %619 = vmatprep.subr.mxu0 0.0
    %620 = vmatpush1.msra.mxu0 0.0
    %621 = vmatprep.subr.mxu0 0.0
    %622 = vmatpush1.msra.mxu0 0.0
    %623 = vmatprep.subr.mxu0 0.0
    %624 = vmatpush1.msra.mxu0 0.0
    %625 = vmatprep.subr.mxu0 0.0
    %626 = vmatpush1.msra.mxu0 0.0
    %627 = vmatprep.mubr.f32.mxu0 0.0
    %628 = vmatmul.mubr.f32.gmra.mrb[0].mxu0 %v561
    %v629 = vpop.f32.mrb[0].mxu0
    %v630 = vadd.f32 %v557, %v629
    %v631 = vpop.f32.mrb[0].mxu0
    %632 = vdwg.mxu0
    %v633 = vxor.u32 %v630, 2147483648
    %v634 = vmul.f32 %v633, 1.442695
    %v635 = vpow.pop %v634
    %v636 = vadd.f32 %v635, 1.0
    %v637 = vrcp.pop %v636
    %v638 = vmul.f32 1.0, %v637
    %v639 = vtanh.pop %v630
    %v640 = vmul.f32 %v638, 0.0
    %642 = vrot.lane.b32.xlu0 %v639, 64
    %v643 = vpop.permute.xlu0 %642
    %v645 = vmul.f32 %v638, %v643
    %647 = vrot.lane.b32.xlu0 %v645, 32
    %v648 = vpop.permute.xlu0 %647
    %v650 = vadd.f32 %v640, %v648
    %v651 = vtanh.pop %v650
    %653 = vrot.lane.b32.xlu0 %v651, 64
    %v654 = vpop.permute.xlu0 %653
    %v656 = vmul.f32 %v638, %v654
    %v657 = vsel %vm230, %v550, 0
    %659 = vmatprep.subr.mxu0 0.0
    %660 = vmatpush1.msra.mxu0 %v217
    %661 = vmatprep.subr.mxu0 0.0
    %662 = vmatpush1.msra.mxu0 %v218
    %663 = vmatprep.subr.mxu0 0.0
    %664 = vmatpush1.msra.mxu0 %v219
    %665 = vmatprep.subr.mxu0 0.0
    %666 = vmatpush1.msra.mxu0 %v220
    %667 = vmatprep.subr.mxu0 0.0
    %668 = vmatpush1.msra.mxu0 0.0
    %669 = vmatprep.subr.mxu0 0.0
    %670 = vmatpush1.msra.mxu0 0.0
    %671 = vmatprep.subr.mxu0 0.0
    %672 = vmatpush1.msra.mxu0 0.0
    %673 = vmatprep.subr.mxu0 0.0
    %674 = vmatpush1.msra.mxu0 0.0
    %675 = vmatprep.subr.mxu0 0.0
    %676 = vmatpush1.msra.mxu0 0.0
    %677 = vmatprep.subr.mxu0 0.0
    %678 = vmatpush1.msra.mxu0 0.0
    %679 = vmatprep.subr.mxu0 0.0
    %680 = vmatpush1.msra.mxu0 0.0
    %681 = vmatprep.subr.mxu0 0.0
    %682 = vmatpush1.msra.mxu0 0.0
    %683 = vmatprep.subr.mxu0 0.0
    %684 = vmatpush1.msra.mxu0 0.0
    %685 = vmatprep.subr.mxu0 0.0
    %686 = vmatpush1.msra.mxu0 0.0
    %687 = vmatprep.subr.mxu0 0.0
    %688 = vmatpush1.msra.mxu0 0.0
    %689 = vmatprep.subr.mxu0 0.0
    %690 = vmatpush1.msra.mxu0 0.0
    %691 = vmatprep.subr.mxu0 0.0
    %692 = vmatpush1.msra.mxu0 0.0
    %693 = vmatprep.subr.mxu0 0.0
    %694 = vmatpush1.msra.mxu0 0.0
    %695 = vmatprep.subr.mxu0 0.0
    %696 = vmatpush1.msra.mxu0 0.0
    %697 = vmatprep.subr.mxu0 0.0
    %698 = vmatpush1.msra.mxu0 0.0
    %699 = vmatprep.subr.mxu0 0.0
    %700 = vmatpush1.msra.mxu0 0.0
    %701 = vmatprep.subr.mxu0 0.0
    %702 = vmatpush1.msra.mxu0 0.0
    %703 = vmatprep.subr.mxu0 0.0
    %704 = vmatpush1.msra.mxu0 0.0
    %705 = vmatprep.subr.mxu0 0.0
    %706 = vmatpush1.msra.mxu0 0.0
    %707 = vmatprep.subr.mxu0 0.0
    %708 = vmatpush1.msra.mxu0 0.0
    %709 = vmatprep.subr.mxu0 0.0
    %710 = vmatpush1.msra.mxu0 0.0
    %711 = vmatprep.subr.mxu0 0.0
    %712 = vmatpush1.msra.mxu0 0.0
    %713 = vmatprep.subr.mxu0 0.0
    %714 = vmatpush1.msra.mxu0 0.0
    %715 = vmatprep.subr.mxu0 0.0
    %716 = vmatpush1.msra.mxu0 0.0
    %717 = vmatprep.subr.mxu0 0.0
    %718 = vmatpush1.msra.mxu0 0.0
    %719 = vmatprep.subr.mxu0 0.0
    %720 = vmatpush1.msra.mxu0 0.0
    %721 = vmatprep.subr.mxu0 0.0
    %722 = vmatpush1.msra.mxu0 0.0
    %723 = vmatprep.mubr.f32.mxu0 0.0
    %724 = vmatmul.mubr.f32.gmra.mrb[0].mxu0 %v657
    %v725 = vpop.f32.mrb[0].mxu0
    %v726 = vadd.f32 0.0, %v725
    %v727 = vpop.f32.mrb[0].mxu0
    %728 = vdwg.mxu0
    %v730 = vrot.slane %v726, 7
    %v731 = vrot.slane %v726, 1
    %v732 = vrot.slane %v726, 2
    %v733 = vrot.slane %v726, 3
    %v734 = vrot.slane %v726, 4
    %v735 = vrot.slane %v726, 5
    %v736 = vrot.slane %v726, 6
    %v745 = vadd.f32 %v179, %v730
    %v746 = vadd.f32 %v184, %v726
    %v747 = vadd.f32 %v189, %v731
    %v748 = vadd.f32 %v194, %v732
    %v749 = vadd.f32 %v199, %v733
    %v750 = vadd.f32 %v204, %v734
    %v751 = vadd.f32 %v209, %v735
    %v752 = vadd.f32 %v214, %v736
    %v753 = vxor.u32 %v745, 2147483648
    %v754 = vxor.u32 %v746, 2147483648
    %v755 = vxor.u32 %v747, 2147483648
    %v756 = vxor.u32 %v748, 2147483648
    %v757 = vxor.u32 %v749, 2147483648
    %v758 = vxor.u32 %v750, 2147483648
    %v759 = vxor.u32 %v751, 2147483648
    %v760 = vxor.u32 %v752, 2147483648
    %v761 = vmul.f32 %v753, 1.442695
    %v762 = vpow.pop %v761
    %v763 = vmul.f32 %v754, 1.442695
    %v764 = vpow.pop %v763
    %v765 = vmul.f32 %v755, 1.442695
    %v766 = vpow.pop %v765
    %v767 = vmul.f32 %v756, 1.442695
    %v768 = vpow.pop %v767
    %v769 = vmul.f32 %v757, 1.442695
    %v770 = vpow.pop %v769
    %v771 = vmul.f32 %v758, 1.442695
    %v772 = vpow.pop %v771
    %v773 = vmul.f32 %v759, 1.442695
    %v774 = vpow.pop %v773
    %v775 = vmul.f32 %v760, 1.442695
    %v776 = vpow.pop %v775
    %v777 = vadd.f32 %v762, 1.0
    %v778 = vadd.f32 %v764, 1.0
    %v779 = vadd.f32 %v766, 1.0
    %v780 = vadd.f32 %v768, 1.0
    %v781 = vadd.f32 %v770, 1.0
    %v782 = vadd.f32 %v772, 1.0
    %v783 = vadd.f32 %v774, 1.0
    %v784 = vadd.f32 %v776, 1.0
    %v785 = vrcp.pop %v777
    %v786 = vmul.f32 1.0, %v785
    %v787 = vrcp.pop %v778
    %v788 = vmul.f32 1.0, %v787
    %v789 = vrcp.pop %v779
    %v790 = vmul.f32 1.0, %v789
    %v791 = vrcp.pop %v780
    %v792 = vmul.f32 1.0, %v791
    %v793 = vrcp.pop %v781
    %v794 = vmul.f32 1.0, %v793
    %v795 = vrcp.pop %v782
    %v796 = vmul.f32 1.0, %v795
    %v797 = vrcp.pop %v783
    %v798 = vmul.f32 1.0, %v797
    %v799 = vrcp.pop %v784
    %v800 = vmul.f32 1.0, %v799
    %v801 = vtanh.pop %v745
    %v802 = vtanh.pop %v746
    %v803 = vtanh.pop %v747
    %v804 = vtanh.pop %v748
    %v805 = vtanh.pop %v749
    %v806 = vtanh.pop %v750
    %v807 = vtanh.pop %v751
    %v808 = vtanh.pop %v752
    %v817 = vrot.slane %v464, 7
    %v818 = vrot.slane %v465, 7
    %v819 = vrot.slane %v466, 7
    %v820 = vrot.slane %v467, 7
    %v821 = vrot.slane %v468, 7
    %v822 = vrot.slane %v469, 7
    %v823 = vrot.slane %v470, 7
    %v824 = vrot.slane %v471, 7
    %v833 = vmul.f32 %v786, %v817
    %v834 = vmul.f32 %v788, %v818
    %v835 = vmul.f32 %v790, %v819
    %v836 = vmul.f32 %v792, %v820
    %v837 = vmul.f32 %v794, %v821
    %v838 = vmul.f32 %v796, %v822
    %v839 = vmul.f32 %v798, %v823
    %v840 = vmul.f32 %v800, %v824
    %849 = vrot.lane.b32.xlu0 %v801, 64
    %v850 = vpop.permute.xlu0 %849
    %851 = vrot.lane.b32.xlu0 %v802, 64
    %v852 = vpop.permute.xlu0 %851
    %853 = vrot.lane.b32.xlu0 %v803, 64
    %v854 = vpop.permute.xlu0 %853
    %855 = vrot.lane.b32.xlu0 %v804, 64
    %v856 = vpop.permute.xlu0 %855
    %857 = vrot.lane.b32.xlu0 %v805, 64
    %v858 = vpop.permute.xlu0 %857
    %859 = vrot.lane.b32.xlu0 %v806, 64
    %v860 = vpop.permute.xlu0 %859
    %861 = vrot.lane.b32.xlu0 %v807, 64
    %v862 = vpop.permute.xlu0 %861
    %863 = vrot.lane.b32.xlu0 %v808, 64
    %v864 = vpop.permute.xlu0 %863
    %v873 = vmul.f32 %v786, %v850
    %v874 = vmul.f32 %v788, %v852
    %v875 = vmul.f32 %v790, %v854
    %v876 = vmul.f32 %v792, %v856
    %v877 = vmul.f32 %v794, %v858
    %v878 = vmul.f32 %v796, %v860
    %v879 = vmul.f32 %v798, %v862
    %v880 = vmul.f32 %v800, %v864
    %889 = vrot.lane.b32.xlu0 %v873, 32
    %v890 = vpop.permute.xlu0 %889
    %891 = vrot.lane.b32.xlu0 %v874, 32
    %v892 = vpop.permute.xlu0 %891
    %893 = vrot.lane.b32.xlu0 %v875, 32
    %v894 = vpop.permute.xlu0 %893
    %895 = vrot.lane.b32.xlu0 %v876, 32
    %v896 = vpop.permute.xlu0 %895
    %897 = vrot.lane.b32.xlu0 %v877, 32
    %v898 = vpop.permute.xlu0 %897
    %899 = vrot.lane.b32.xlu0 %v878, 32
    %v900 = vpop.permute.xlu0 %899
    %901 = vrot.lane.b32.xlu0 %v879, 32
    %v902 = vpop.permute.xlu0 %901
    %903 = vrot.lane.b32.xlu0 %v880, 32
    %v904 = vpop.permute.xlu0 %903
    %v913 = vadd.f32 %v833, %v890
    %v914 = vadd.f32 %v834, %v892
    %v915 = vadd.f32 %v835, %v894
    %v916 = vadd.f32 %v836, %v896
    %v917 = vadd.f32 %v837, %v898
    %v918 = vadd.f32 %v838, %v900
    %v919 = vadd.f32 %v839, %v902
    %v920 = vadd.f32 %v840, %v904
    %v921 = vtanh.pop %v913
    %v922 = vtanh.pop %v914
    %v923 = vtanh.pop %v915
    %v924 = vtanh.pop %v916
    %v925 = vtanh.pop %v917
    %v926 = vtanh.pop %v918
    %v927 = vtanh.pop %v919
    %v928 = vtanh.pop %v920
    %937 = vrot.lane.b32.xlu0 %v921, 64
    %v938 = vpop.permute.xlu0 %937
    %939 = vrot.lane.b32.xlu0 %v922, 64
    %v940 = vpop.permute.xlu0 %939
    %941 = vrot.lane.b32.xlu0 %v923, 64
    %v942 = vpop.permute.xlu0 %941
    %943 = vrot.lane.b32.xlu0 %v924, 64
    %v944 = vpop.permute.xlu0 %943
    %945 = vrot.lane.b32.xlu0 %v925, 64
    %v946 = vpop.permute.xlu0 %945
    %947 = vrot.lane.b32.xlu0 %v926, 64
    %v948 = vpop.permute.xlu0 %947
    %949 = vrot.lane.b32.xlu0 %v927, 64
    %v950 = vpop.permute.xlu0 %949
    %951 = vrot.lane.b32.xlu0 %v928, 64
    %v952 = vpop.permute.xlu0 %951
    %v961 = vmul.f32 %v786, %v938
    %v962 = vmul.f32 %v788, %v940
    %v963 = vmul.f32 %v790, %v942
    %v964 = vmul.f32 %v792, %v944
    %v965 = vmul.f32 %v794, %v946
    %v966 = vmul.f32 %v796, %v948
    %v967 = vmul.f32 %v798, %v950
    %v968 = vmul.f32 %v800, %v952
    %v977 = vrot.slane %v962, 7
    %v978 = vsel %vm532, %v977, %v961
    %v979 = vrot.slane %v963, 6
    %v980 = vsel %vm535, %v979, %v978
    %v981 = vrot.slane %v964, 5
    %v982 = vsel %vm538, %v981, %v980
    %v983 = vrot.slane %v965, 4
    %v984 = vsel %vm541, %v983, %v982
    %v985 = vrot.slane %v966, 3
    %v986 = vsel %vm544, %v985, %v984
    %v987 = vrot.slane %v967, 2
    %v988 = vsel %vm547, %v987, %v986
    %v989 = vrot.slane %v968, 1
    %990 = vrot.lane.b32.xlu0 %v988, 32
    %v991 = vpop.permute.xlu0 %990
    %992 = vrot.lane.b32.xlu0 %v989, 32
    %v993 = vpop.permute.xlu0 %992
    %v997 = vrot.slane %v656, 7
    %998 = vrot.lane.b32.xlu0 %v997, 64
    %v999 = vpop.permute.xlu0 %998
    %v1001 = vsel %vm230, %v991, %v999
    %v1002 = vsel %vm230, %v993, %v999
    %vm1005 = vcmask 1046528
    %v1006 = vrot.slane %v1001, 1
    %v1007 = vrot.slane %v1002, 1
    %v1008 = vsel %vm1005, %v1006, %v1007
    %v1009 = vsel %vm559, %v1008, 0
    %1011 = vmatprep.subr.mxu0 0.0
    %1012 = vmatpush1.msra.mxu0 %v221
    %1013 = vmatprep.subr.mxu0 0.0
    %1014 = vmatpush1.msra.mxu0 %v222
    %1015 = vmatprep.subr.mxu0 0.0
    %1016 = vmatpush1.msra.mxu0 %v223
    %1017 = vmatprep.subr.mxu0 0.0
    %1018 = vmatpush1.msra.mxu0 %v224
    %1019 = vmatprep.subr.mxu0 0.0
    %1020 = vmatpush1.msra.mxu0 %v225
    %1021 = vmatprep.subr.mxu0 0.0
    %1022 = vmatpush1.msra.mxu0 %v226
    %1023 = vmatprep.subr.mxu0 0.0
    %1024 = vmatpush1.msra.mxu0 %v227
    %1025 = vmatprep.subr.mxu0 0.0
    %1026 = vmatpush1.msra.mxu0 %v228
    %1027 = vmatprep.subr.mxu0 0.0
    %1028 = vmatpush1.msra.mxu0 0.0
    %1029 = vmatprep.subr.mxu0 0.0
    %1030 = vmatpush1.msra.mxu0 0.0
    %1031 = vmatprep.subr.mxu0 0.0
    %1032 = vmatpush1.msra.mxu0 0.0
    %1033 = vmatprep.subr.mxu0 0.0
    %1034 = vmatpush1.msra.mxu0 0.0
    %1035 = vmatprep.subr.mxu0 0.0
    %1036 = vmatpush1.msra.mxu0 0.0
    %1037 = vmatprep.subr.mxu0 0.0
    %1038 = vmatpush1.msra.mxu0 0.0
    %1039 = vmatprep.subr.mxu0 0.0
    %1040 = vmatpush1.msra.mxu0 0.0
    %1041 = vmatprep.subr.mxu0 0.0
    %1042 = vmatpush1.msra.mxu0 0.0
    %1043 = vmatprep.subr.mxu0 0.0
    %1044 = vmatpush1.msra.mxu0 0.0
    %1045 = vmatprep.subr.mxu0 0.0
    %1046 = vmatpush1.msra.mxu0 0.0
    %1047 = vmatprep.subr.mxu0 0.0
    %1048 = vmatpush1.msra.mxu0 0.0
    %1049 = vmatprep.subr.mxu0 0.0
    %1050 = vmatpush1.msra.mxu0 0.0
    %1051 = vmatprep.subr.mxu0 0.0
    %1052 = vmatpush1.msra.mxu0 0.0
    %1053 = vmatprep.subr.mxu0 0.0
    %1054 = vmatpush1.msra.mxu0 0.0
    %1055 = vmatprep.subr.mxu0 0.0
    %1056 = vmatpush1.msra.mxu0 0.0
    %1057 = vmatprep.subr.mxu0 0.0
    %1058 = vmatpush1.msra.mxu0 0.0
    %1059 = vmatprep.subr.mxu0 0.0
    %1060 = vmatpush1.msra.mxu0 0.0
    %1061 = vmatprep.subr.mxu0 0.0
    %1062 = vmatpush1.msra.mxu0 0.0
    %1063 = vmatprep.subr.mxu0 0.0
    %1064 = vmatpush1.msra.mxu0 0.0
    %1065 = vmatprep.subr.mxu0 0.0
    %1066 = vmatpush1.msra.mxu0 0.0
    %1067 = vmatprep.subr.mxu0 0.0
    %1068 = vmatpush1.msra.mxu0 0.0
    %1069 = vmatprep.subr.mxu0 0.0
    %1070 = vmatpush1.msra.mxu0 0.0
    %1071 = vmatprep.subr.mxu0 0.0
    %1072 = vmatpush1.msra.mxu0 0.0
    %1073 = vmatprep.subr.mxu0 0.0
    %1074 = vmatpush1.msra.mxu0 0.0
    %1075 = vmatprep.mubr.f32.mxu0 0.0
    %1076 = vmatmul.mubr.f32.gmra.mrb[0].mxu0 %v1009
    %v1077 = vpop.f32.mrb[0].mxu0
    %v1078 = vadd.f32 %v557, %v1077
    %v1079 = vpop.f32.mrb[0].mxu0
    %1080 = vdwg.mxu0
    %v1081 = vxor.u32 %v1078, 2147483648
    %v1082 = vmul.f32 %v1081, 1.442695
    %v1083 = vpow.pop %v1082
    %v1084 = vadd.f32 %v1083, 1.0
    %v1085 = vrcp.pop %v1084
    %v1086 = vmul.f32 1.0, %v1085
    %v1087 = vtanh.pop %v1078
    %v1088 = vmul.f32 %v1086, %v650
    %1090 = vrot.lane.b32.xlu0 %v1087, 64
    %v1091 = vpop.permute.xlu0 %1090
    %v1093 = vmul.f32 %v1086, %v1091
    %1095 = vrot.lane.b32.xlu0 %v1093, 32
    %v1096 = vpop.permute.xlu0 %1095
    %v1098 = vadd.f32 %v1088, %v1096
    %v1099 = vtanh.pop %v1098
    %1101 = vrot.lane.b32.xlu0 %v1099, 64
    %v1102 = vpop.permute.xlu0 %1101
    %v1104 = vmul.f32 %v1086, %v1102
    %v1105 = vrot.slane %v961, 1
    %v1106 = vsel %vm529, %v962, %v1105
    %v1107 = vrot.slane %v963, 7
    %v1108 = vsel %vm532, %v1107, %v1106
    %v1109 = vrot.slane %v964, 6
    %v1110 = vsel %vm535, %v1109, %v1108
    %v1111 = vrot.slane %v965, 5
    %v1112 = vsel %vm538, %v1111, %v1110
    %v1113 = vrot.slane %v966, 4
    %v1114 = vsel %vm541, %v1113, %v1112
    %v1115 = vrot.slane %v967, 3
    %v1116 = vsel %vm544, %v1115, %v1114
    %v1117 = vrot.slane %v968, 2
    %v1118 = vsel %vm547, %v1117, %v1116
    %1119 = vrot.lane.b32.xlu0 %v1118, 32
    %v1120 = vpop.permute.xlu0 %1119
    %v1121 = vsel %vm230, %v1120, 0
    %1123 = vmatprep.subr.mxu0 0.0
    %1124 = vmatpush1.msra.mxu0 %v217
    %1125 = vmatprep.subr.mxu0 0.0
    %1126 = vmatpush1.msra.mxu0 %v218
    %1127 = vmatprep.subr.mxu0 0.0
    %1128 = vmatpush1.msra.mxu0 %v219
    %1129 = vmatprep.subr.mxu0 0.0
    %1130 = vmatpush1.msra.mxu0 %v220
    %1131 = vmatprep.subr.mxu0 0.0
    %1132 = vmatpush1.msra.mxu0 0.0
    %1133 = vmatprep.subr.mxu0 0.0
    %1134 = vmatpush1.msra.mxu0 0.0
    %1135 = vmatprep.subr.mxu0 0.0
    %1136 = vmatpush1.msra.mxu0 0.0
    %1137 = vmatprep.subr.mxu0 0.0
    %1138 = vmatpush1.msra.mxu0 0.0
    %1139 = vmatprep.subr.mxu0 0.0
    %1140 = vmatpush1.msra.mxu0 0.0
    %1141 = vmatprep.subr.mxu0 0.0
    %1142 = vmatpush1.msra.mxu0 0.0
    %1143 = vmatprep.subr.mxu0 0.0
    %1144 = vmatpush1.msra.mxu0 0.0
    %1145 = vmatprep.subr.mxu0 0.0
    %1146 = vmatpush1.msra.mxu0 0.0
    %1147 = vmatprep.subr.mxu0 0.0
    %1148 = vmatpush1.msra.mxu0 0.0
    %1149 = vmatprep.subr.mxu0 0.0
    %1150 = vmatpush1.msra.mxu0 0.0
    %1151 = vmatprep.subr.mxu0 0.0
    %1152 = vmatpush1.msra.mxu0 0.0
    %1153 = vmatprep.subr.mxu0 0.0
    %1154 = vmatpush1.msra.mxu0 0.0
    %1155 = vmatprep.subr.mxu0 0.0
    %1156 = vmatpush1.msra.mxu0 0.0
    %1157 = vmatprep.subr.mxu0 0.0
    %1158 = vmatpush1.msra.mxu0 0.0
    %1159 = vmatprep.subr.mxu0 0.0
    %1160 = vmatpush1.msra.mxu0 0.0
    %1161 = vmatprep.subr.mxu0 0.0
    %1162 = vmatpush1.msra.mxu0 0.0
    %1163 = vmatprep.subr.mxu0 0.0
    %1164 = vmatpush1.msra.mxu0 0.0
    %1165 = vmatprep.subr.mxu0 0.0
    %1166 = vmatpush1.msra.mxu0 0.0
    %1167 = vmatprep.subr.mxu0 0.0
    %1168 = vmatpush1.msra.mxu0 0.0
    %1169 = vmatprep.subr.mxu0 0.0
    %1170 = vmatpush1.msra.mxu0 0.0
    %1171 = vmatprep.subr.mxu0 0.0
    %1172 = vmatpush1.msra.mxu0 0.0
    %1173 = vmatprep.subr.mxu0 0.0
    %1174 = vmatpush1.msra.mxu0 0.0
    %1175 = vmatprep.subr.mxu0 0.0
    %1176 = vmatpush1.msra.mxu0 0.0
    %1177 = vmatprep.subr.mxu0 0.0
    %1178 = vmatpush1.msra.mxu0 0.0
    %1179 = vmatprep.subr.mxu0 0.0
    %1180 = vmatpush1.msra.mxu0 0.0
    %1181 = vmatprep.subr.mxu0 0.0
    %1182 = vmatpush1.msra.mxu0 0.0
    %1183 = vmatprep.subr.mxu0 0.0
    %1184 = vmatpush1.msra.mxu0 0.0
    %1185 = vmatprep.subr.mxu0 0.0
    %1186 = vmatpush1.msra.mxu0 0.0
    %1187 = vmatprep.mubr.f32.mxu0 0.0
    %1188 = vmatmul.mubr.f32.gmra.mrb[0].mxu0 %v1121
    %v1189 = vpop.f32.mrb[0].mxu0
    %v1190 = vadd.f32 0.0, %v1189
    %v1191 = vpop.f32.mrb[0].mxu0
    %1192 = vdwg.mxu0
    %v1194 = vrot.slane %v1190, 6
    %v1195 = vrot.slane %v1190, 7
    %v1196 = vrot.slane %v1190, 1
    %v1197 = vrot.slane %v1190, 2
    %v1198 = vrot.slane %v1190, 3
    %v1199 = vrot.slane %v1190, 4
    %v1200 = vrot.slane %v1190, 5
    %v1209 = vadd.f32 %v179, %v1194
    %v1210 = vadd.f32 %v184, %v1195
    %v1211 = vadd.f32 %v189, %v1190
    %v1212 = vadd.f32 %v194, %v1196
    %v1213 = vadd.f32 %v199, %v1197
    %v1214 = vadd.f32 %v204, %v1198
    %v1215 = vadd.f32 %v209, %v1199
    %v1216 = vadd.f32 %v214, %v1200
    %v1217 = vxor.u32 %v1209, 2147483648
    %v1218 = vxor.u32 %v1210, 2147483648
    %v1219 = vxor.u32 %v1211, 2147483648
    %v1220 = vxor.u32 %v1212, 2147483648
    %v1221 = vxor.u32 %v1213, 2147483648
    %v1222 = vxor.u32 %v1214, 2147483648
    %v1223 = vxor.u32 %v1215, 2147483648
    %v1224 = vxor.u32 %v1216, 2147483648
    %v1225 = vmul.f32 %v1217, 1.442695
    %v1226 = vpow.pop %v1225
    %v1227 = vmul.f32 %v1218, 1.442695
    %v1228 = vpow.pop %v1227
    %v1229 = vmul.f32 %v1219, 1.442695
    %v1230 = vpow.pop %v1229
    %v1231 = vmul.f32 %v1220, 1.442695
    %v1232 = vpow.pop %v1231
    %v1233 = vmul.f32 %v1221, 1.442695
    %v1234 = vpow.pop %v1233
    %v1235 = vmul.f32 %v1222, 1.442695
    %v1236 = vpow.pop %v1235
    %v1237 = vmul.f32 %v1223, 1.442695
    %v1238 = vpow.pop %v1237
    %v1239 = vmul.f32 %v1224, 1.442695
    %v1240 = vpow.pop %v1239
    %v1241 = vadd.f32 %v1226, 1.0
    %v1242 = vadd.f32 %v1228, 1.0
    %v1243 = vadd.f32 %v1230, 1.0
    %v1244 = vadd.f32 %v1232, 1.0
    %v1245 = vadd.f32 %v1234, 1.0
    %v1246 = vadd.f32 %v1236, 1.0
    %v1247 = vadd.f32 %v1238, 1.0
    %v1248 = vadd.f32 %v1240, 1.0
    %v1249 = vrcp.pop %v1241
    %v1250 = vmul.f32 1.0, %v1249
    %v1251 = vrcp.pop %v1242
    %v1252 = vmul.f32 1.0, %v1251
    %v1253 = vrcp.pop %v1243
    %v1254 = vmul.f32 1.0, %v1253
    %v1255 = vrcp.pop %v1244
    %v1256 = vmul.f32 1.0, %v1255
    %v1257 = vrcp.pop %v1245
    %v1258 = vmul.f32 1.0, %v1257
    %v1259 = vrcp.pop %v1246
    %v1260 = vmul.f32 1.0, %v1259
    %v1261 = vrcp.pop %v1247
    %v1262 = vmul.f32 1.0, %v1261
    %v1263 = vrcp.pop %v1248
    %v1264 = vmul.f32 1.0, %v1263
    %v1265 = vtanh.pop %v1209
    %v1266 = vtanh.pop %v1210
    %v1267 = vtanh.pop %v1211
    %v1268 = vtanh.pop %v1212
    %v1269 = vtanh.pop %v1213
    %v1270 = vtanh.pop %v1214
    %v1271 = vtanh.pop %v1215
    %v1272 = vtanh.pop %v1216
    %v1281 = vrot.slane %v913, 7
    %v1282 = vrot.slane %v914, 7
    %v1283 = vrot.slane %v915, 7
    %v1284 = vrot.slane %v916, 7
    %v1285 = vrot.slane %v917, 7
    %v1286 = vrot.slane %v918, 7
    %v1287 = vrot.slane %v919, 7
    %v1288 = vrot.slane %v920, 7
    %v1297 = vmul.f32 %v1250, %v1281
    %v1298 = vmul.f32 %v1252, %v1282
    %v1299 = vmul.f32 %v1254, %v1283
    %v1300 = vmul.f32 %v1256, %v1284
    %v1301 = vmul.f32 %v1258, %v1285
    %v1302 = vmul.f32 %v1260, %v1286
    %v1303 = vmul.f32 %v1262, %v1287
    %v1304 = vmul.f32 %v1264, %v1288
    %1313 = vrot.lane.b32.xlu0 %v1265, 64
    %v1314 = vpop.permute.xlu0 %1313
    %1315 = vrot.lane.b32.xlu0 %v1266, 64
    %v1316 = vpop.permute.xlu0 %1315
    %1317 = vrot.lane.b32.xlu0 %v1267, 64
    %v1318 = vpop.permute.xlu0 %1317
    %1319 = vrot.lane.b32.xlu0 %v1268, 64
    %v1320 = vpop.permute.xlu0 %1319
    %1321 = vrot.lane.b32.xlu0 %v1269, 64
    %v1322 = vpop.permute.xlu0 %1321
    %1323 = vrot.lane.b32.xlu0 %v1270, 64
    %v1324 = vpop.permute.xlu0 %1323
    %1325 = vrot.lane.b32.xlu0 %v1271, 64
    %v1326 = vpop.permute.xlu0 %1325
    %1327 = vrot.lane.b32.xlu0 %v1272, 64
    %v1328 = vpop.permute.xlu0 %1327
    %v1337 = vmul.f32 %v1250, %v1314
    %v1338 = vmul.f32 %v1252, %v1316
    %v1339 = vmul.f32 %v1254, %v1318
    %v1340 = vmul.f32 %v1256, %v1320
    %v1341 = vmul.f32 %v1258, %v1322
    %v1342 = vmul.f32 %v1260, %v1324
    %v1343 = vmul.f32 %v1262, %v1326
    %v1344 = vmul.f32 %v1264, %v1328
    %1353 = vrot.lane.b32.xlu0 %v1337, 32
    %v1354 = vpop.permute.xlu0 %1353
    %1355 = vrot.lane.b32.xlu0 %v1338, 32
    %v1356 = vpop.permute.xlu0 %1355
    %1357 = vrot.lane.b32.xlu0 %v1339, 32
    %v1358 = vpop.permute.xlu0 %1357
    %1359 = vrot.lane.b32.xlu0 %v1340, 32
    %v1360 = vpop.permute.xlu0 %1359
    %1361 = vrot.lane.b32.xlu0 %v1341, 32
    %v1362 = vpop.permute.xlu0 %1361
    %1363 = vrot.lane.b32.xlu0 %v1342, 32
    %v1364 = vpop.permute.xlu0 %1363
    %1365 = vrot.lane.b32.xlu0 %v1343, 32
    %v1366 = vpop.permute.xlu0 %1365
    %1367 = vrot.lane.b32.xlu0 %v1344, 32
    %v1368 = vpop.permute.xlu0 %1367
    %v1377 = vadd.f32 %v1297, %v1354
    %v1378 = vadd.f32 %v1298, %v1356
    %v1379 = vadd.f32 %v1299, %v1358
    %v1380 = vadd.f32 %v1300, %v1360
    %v1381 = vadd.f32 %v1301, %v1362
    %v1382 = vadd.f32 %v1302, %v1364
    %v1383 = vadd.f32 %v1303, %v1366
    %v1384 = vadd.f32 %v1304, %v1368
    %v1385 = vtanh.pop %v1377
    %v1386 = vtanh.pop %v1378
    %v1387 = vtanh.pop %v1379
    %v1388 = vtanh.pop %v1380
    %v1389 = vtanh.pop %v1381
    %v1390 = vtanh.pop %v1382
    %v1391 = vtanh.pop %v1383
    %v1392 = vtanh.pop %v1384
    %1401 = vrot.lane.b32.xlu0 %v1385, 64
    %v1402 = vpop.permute.xlu0 %1401
    %1403 = vrot.lane.b32.xlu0 %v1386, 64
    %v1404 = vpop.permute.xlu0 %1403
    %1405 = vrot.lane.b32.xlu0 %v1387, 64
    %v1406 = vpop.permute.xlu0 %1405
    %1407 = vrot.lane.b32.xlu0 %v1388, 64
    %v1408 = vpop.permute.xlu0 %1407
    %1409 = vrot.lane.b32.xlu0 %v1389, 64
    %v1410 = vpop.permute.xlu0 %1409
    %1411 = vrot.lane.b32.xlu0 %v1390, 64
    %v1412 = vpop.permute.xlu0 %1411
    %1413 = vrot.lane.b32.xlu0 %v1391, 64
    %v1414 = vpop.permute.xlu0 %1413
    %1415 = vrot.lane.b32.xlu0 %v1392, 64
    %v1416 = vpop.permute.xlu0 %1415
    %v1425 = vmul.f32 %v1250, %v1402
    %v1426 = vmul.f32 %v1252, %v1404
    %v1427 = vmul.f32 %v1254, %v1406
    %v1428 = vmul.f32 %v1256, %v1408
    %v1429 = vmul.f32 %v1258, %v1410
    %v1430 = vmul.f32 %v1260, %v1412
    %v1431 = vmul.f32 %v1262, %v1414
    %v1432 = vmul.f32 %v1264, %v1416
    %v1441 = vrot.slane %v1426, 7
    %v1442 = vsel %vm535, %v1441, %v1425
    %v1443 = vrot.slane %v1427, 6
    %v1444 = vsel %vm538, %v1443, %v1442
    %v1445 = vrot.slane %v1428, 5
    %v1446 = vsel %vm541, %v1445, %v1444
    %v1447 = vrot.slane %v1429, 4
    %v1448 = vsel %vm544, %v1447, %v1446
    %v1449 = vrot.slane %v1430, 3
    %v1450 = vsel %vm547, %v1449, %v1448
    %v1451 = vrot.slane %v1431, 2
    %v1452 = vrot.slane %v1432, 1
    %v1453 = vsel %vm529, %v1452, %v1451
    %1454 = vrot.lane.b32.xlu0 %v1450, 32
    %v1455 = vpop.permute.xlu0 %1454
    %1456 = vrot.lane.b32.xlu0 %v1453, 32
    %v1457 = vpop.permute.xlu0 %1456
    %v1461 = vrot.slane %v1104, 6
    %1462 = vrot.lane.b32.xlu0 %v1461, 64
    %v1463 = vpop.permute.xlu0 %1462
    %v1465 = vsel %vm230, %v1455, %v1463
    %v1466 = vsel %vm230, %v1457, %v1463
    %vm1469 = vcmask 1045504
    %v1470 = vrot.slane %v1465, 2
    %v1471 = vrot.slane %v1466, 2
    %v1472 = vsel %vm1469, %v1470, %v1471
    %v1473 = vsel %vm559, %v1472, 0
    %1475 = vmatprep.subr.mxu0 0.0
    %1476 = vmatpush1.msra.mxu0 %v221
    %1477 = vmatprep.subr.mxu0 0.0
    %1478 = vmatpush1.msra.mxu0 %v222
    %1479 = vmatprep.subr.mxu0 0.0
    %1480 = vmatpush1.msra.mxu0 %v223
    %1481 = vmatprep.subr.mxu0 0.0
    %1482 = vmatpush1.msra.mxu0 %v224
    %1483 = vmatprep.subr.mxu0 0.0
    %1484 = vmatpush1.msra.mxu0 %v225
    %1485 = vmatprep.subr.mxu0 0.0
    %1486 = vmatpush1.msra.mxu0 %v226
    %1487 = vmatprep.subr.mxu0 0.0
    %1488 = vmatpush1.msra.mxu0 %v227
    %1489 = vmatprep.subr.mxu0 0.0
    %1490 = vmatpush1.msra.mxu0 %v228
    %1491 = vmatprep.subr.mxu0 0.0
    %1492 = vmatpush1.msra.mxu0 0.0
    %1493 = vmatprep.subr.mxu0 0.0
    %1494 = vmatpush1.msra.mxu0 0.0
    %1495 = vmatprep.subr.mxu0 0.0
    %1496 = vmatpush1.msra.mxu0 0.0
    %1497 = vmatprep.subr.mxu0 0.0
    %1498 = vmatpush1.msra.mxu0 0.0
    %1499 = vmatprep.subr.mxu0 0.0
    %1500 = vmatpush1.msra.mxu0 0.0
    %1501 = vmatprep.subr.mxu0 0.0
    %1502 = vmatpush1.msra.mxu0 0.0
    %1503 = vmatprep.subr.mxu0 0.0
    %1504 = vmatpush1.msra.mxu0 0.0
    %1505 = vmatprep.subr.mxu0 0.0
    %1506 = vmatpush1.msra.mxu0 0.0
    %1507 = vmatprep.subr.mxu0 0.0
    %1508 = vmatpush1.msra.mxu0 0.0
    %1509 = vmatprep.subr.mxu0 0.0
    %1510 = vmatpush1.msra.mxu0 0.0
    %1511 = vmatprep.subr.mxu0 0.0
    %1512 = vmatpush1.msra.mxu0 0.0
    %1513 = vmatprep.subr.mxu0 0.0
    %1514 = vmatpush1.msra.mxu0 0.0
    %1515 = vmatprep.subr.mxu0 0.0
    %1516 = vmatpush1.msra.mxu0 0.0
    %1517 = vmatprep.subr.mxu0 0.0
    %1518 = vmatpush1.msra.mxu0 0.0
    %1519 = vmatprep.subr.mxu0 0.0
    %1520 = vmatpush1.msra.mxu0 0.0
    %1521 = vmatprep.subr.mxu0 0.0
    %1522 = vmatpush1.msra.mxu0 0.0
    %1523 = vmatprep.subr.mxu0 0.0
    %1524 = vmatpush1.msra.mxu0 0.0
    %1525 = vmatprep.subr.mxu0 0.0
    %1526 = vmatpush1.msra.mxu0 0.0
    %1527 = vmatprep.subr.mxu0 0.0
    %1528 = vmatpush1.msra.mxu0 0.0
    %1529 = vmatprep.subr.mxu0 0.0
    %1530 = vmatpush1.msra.mxu0 0.0
    %1531 = vmatprep.subr.mxu0 0.0
    %1532 = vmatpush1.msra.mxu0 0.0
    %1533 = vmatprep.subr.mxu0 0.0
    %1534 = vmatpush1.msra.mxu0 0.0
    %1535 = vmatprep.subr.mxu0 0.0
    %1536 = vmatpush1.msra.mxu0 0.0
    %1537 = vmatprep.subr.mxu0 0.0
    %1538 = vmatpush1.msra.mxu0 0.0
    %1539 = vmatprep.mubr.f32.mxu0 0.0
    %1540 = vmatmul.mubr.f32.gmra.mrb[0].mxu0 %v1473
    %v1541 = vpop.f32.mrb[0].mxu0
    %v1542 = vadd.f32 %v557, %v1541
    %v1543 = vpop.f32.mrb[0].mxu0
    %1544 = vdwg.mxu0
    %v1545 = vxor.u32 %v1542, 2147483648
    %v1546 = vmul.f32 %v1545, 1.442695
    %v1547 = vpow.pop %v1546
    %v1548 = vadd.f32 %v1547, 1.0
    %v1549 = vrcp.pop %v1548
    %v1550 = vmul.f32 1.0, %v1549
    %v1551 = vtanh.pop %v1542
    %v1552 = vmul.f32 %v1550, %v1098
    %1554 = vrot.lane.b32.xlu0 %v1551, 64
    %v1555 = vpop.permute.xlu0 %1554
    %v1557 = vmul.f32 %v1550, %v1555
    %1559 = vrot.lane.b32.xlu0 %v1557, 32
    %v1560 = vpop.permute.xlu0 %1559
    %v1562 = vadd.f32 %v1552, %v1560
    %v1563 = vtanh.pop %v1562
    %1565 = vrot.lane.b32.xlu0 %v1563, 64
    %v1566 = vpop.permute.xlu0 %1565
    %v1568 = vmul.f32 %v1550, %v1566
    %v1569 = vrot.slane %v1425, 2
    %v1570 = vrot.slane %v1426, 1
    %v1571 = vsel %vm529, %v1570, %v1569
    %v1572 = vsel %vm532, %v1427, %v1571
    %v1573 = vrot.slane %v1428, 7
    %v1574 = vsel %vm535, %v1573, %v1572
    %v1575 = vrot.slane %v1429, 6
    %v1576 = vsel %vm538, %v1575, %v1574
    %v1577 = vrot.slane %v1430, 5
    %v1578 = vsel %vm541, %v1577, %v1576
    %v1579 = vrot.slane %v1431, 4
    %v1580 = vsel %vm544, %v1579, %v1578
    %v1581 = vrot.slane %v1432, 3
    %v1582 = vsel %vm547, %v1581, %v1580
    %1583 = vrot.lane.b32.xlu0 %v1582, 32
    %v1584 = vpop.permute.xlu0 %1583
    %v1585 = vsel %vm230, %v1584, 0
    %1587 = vmatprep.subr.mxu0 0.0
    %1588 = vmatpush1.msra.mxu0 %v217
    %1589 = vmatprep.subr.mxu0 0.0
    %1590 = vmatpush1.msra.mxu0 %v218
    %1591 = vmatprep.subr.mxu0 0.0
    %1592 = vmatpush1.msra.mxu0 %v219
    %1593 = vmatprep.subr.mxu0 0.0
    %1594 = vmatpush1.msra.mxu0 %v220
    %1595 = vmatprep.subr.mxu0 0.0
    %1596 = vmatpush1.msra.mxu0 0.0
    %1597 = vmatprep.subr.mxu0 0.0
    %1598 = vmatpush1.msra.mxu0 0.0
    %1599 = vmatprep.subr.mxu0 0.0
    %1600 = vmatpush1.msra.mxu0 0.0
    %1601 = vmatprep.subr.mxu0 0.0
    %1602 = vmatpush1.msra.mxu0 0.0
    %1603 = vmatprep.subr.mxu0 0.0
    %1604 = vmatpush1.msra.mxu0 0.0
    %1605 = vmatprep.subr.mxu0 0.0
    %1606 = vmatpush1.msra.mxu0 0.0
    %1607 = vmatprep.subr.mxu0 0.0
    %1608 = vmatpush1.msra.mxu0 0.0
    %1609 = vmatprep.subr.mxu0 0.0
    %1610 = vmatpush1.msra.mxu0 0.0
    %1611 = vmatprep.subr.mxu0 0.0
    %1612 = vmatpush1.msra.mxu0 0.0
    %1613 = vmatprep.subr.mxu0 0.0
    %1614 = vmatpush1.msra.mxu0 0.0
    %1615 = vmatprep.subr.mxu0 0.0
    %1616 = vmatpush1.msra.mxu0 0.0
    %1617 = vmatprep.subr.mxu0 0.0
    %1618 = vmatpush1.msra.mxu0 0.0
    %1619 = vmatprep.subr.mxu0 0.0
    %1620 = vmatpush1.msra.mxu0 0.0
    %1621 = vmatprep.subr.mxu0 0.0
    %1622 = vmatpush1.msra.mxu0 0.0
    %1623 = vmatprep.subr.mxu0 0.0
    %1624 = vmatpush1.msra.mxu0 0.0
    %1625 = vmatprep.subr.mxu0 0.0
    %1626 = vmatpush1.msra.mxu0 0.0
    %1627 = vmatprep.subr.mxu0 0.0
    %1628 = vmatpush1.msra.mxu0 0.0
    %1629 = vmatprep.subr.mxu0 0.0
    %1630 = vmatpush1.msra.mxu0 0.0
    %1631 = vmatprep.subr.mxu0 0.0
    %1632 = vmatpush1.msra.mxu0 0.0
    %1633 = vmatprep.subr.mxu0 0.0
    %1634 = vmatpush1.msra.mxu0 0.0
    %1635 = vmatprep.subr.mxu0 0.0
    %1636 = vmatpush1.msra.mxu0 0.0
    %1637 = vmatprep.subr.mxu0 0.0
    %1638 = vmatpush1.msra.mxu0 0.0
    %1639 = vmatprep.subr.mxu0 0.0
    %1640 = vmatpush1.msra.mxu0 0.0
    %1641 = vmatprep.subr.mxu0 0.0
    %1642 = vmatpush1.msra.mxu0 0.0
    %1643 = vmatprep.subr.mxu0 0.0
    %1644 = vmatpush1.msra.mxu0 0.0
    %1645 = vmatprep.subr.mxu0 0.0
    %1646 = vmatpush1.msra.mxu0 0.0
    %1647 = vmatprep.subr.mxu0 0.0
    %1648 = vmatpush1.msra.mxu0 0.0
    %1649 = vmatprep.subr.mxu0 0.0
    %1650 = vmatpush1.msra.mxu0 0.0
    %1651 = vmatprep.mubr.f32.mxu0 0.0
    %1652 = vmatmul.mubr.f32.gmra.mrb[0].mxu0 %v1585
    %v1653 = vpop.f32.mrb[0].mxu0
    %v1654 = vadd.f32 0.0, %v1653
    %v1655 = vpop.f32.mrb[0].mxu0
    %1656 = vdwg.mxu0
    %v1658 = vrot.slane %v1654, 5
    %v1659 = vrot.slane %v1654, 6
    %v1660 = vrot.slane %v1654, 7
    %v1661 = vrot.slane %v1654, 1
    %v1662 = vrot.slane %v1654, 2
    %v1663 = vrot.slane %v1654, 3
    %v1664 = vrot.slane %v1654, 4
    %v1673 = vadd.f32 %v179, %v1658
    %v1674 = vadd.f32 %v184, %v1659
    %v1675 = vadd.f32 %v189, %v1660
    %v1676 = vadd.f32 %v194, %v1654
    %v1677 = vadd.f32 %v199, %v1661
    %v1678 = vadd.f32 %v204, %v1662
    %v1679 = vadd.f32 %v209, %v1663
    %v1680 = vadd.f32 %v214, %v1664
    %v1681 = vxor.u32 %v1673, 2147483648
    %v1682 = vxor.u32 %v1674, 2147483648
    %v1683 = vxor.u32 %v1675, 2147483648
    %v1684 = vxor.u32 %v1676, 2147483648
    %v1685 = vxor.u32 %v1677, 2147483648
    %v1686 = vxor.u32 %v1678, 2147483648
    %v1687 = vxor.u32 %v1679, 2147483648
    %v1688 = vxor.u32 %v1680, 2147483648
    %v1689 = vmul.f32 %v1681, 1.442695
    %v1690 = vpow.pop %v1689
    %v1691 = vmul.f32 %v1682, 1.442695
    %v1692 = vpow.pop %v1691
    %v1693 = vmul.f32 %v1683, 1.442695
    %v1694 = vpow.pop %v1693
    %v1695 = vmul.f32 %v1684, 1.442695
    %v1696 = vpow.pop %v1695
    %v1697 = vmul.f32 %v1685, 1.442695
    %v1698 = vpow.pop %v1697
    %v1699 = vmul.f32 %v1686, 1.442695
    %v1700 = vpow.pop %v1699
    %v1701 = vmul.f32 %v1687, 1.442695
    %v1702 = vpow.pop %v1701
    %v1703 = vmul.f32 %v1688, 1.442695
    %v1704 = vpow.pop %v1703
    %v1705 = vadd.f32 %v1690, 1.0
    %v1706 = vadd.f32 %v1692, 1.0
    %v1707 = vadd.f32 %v1694, 1.0
    %v1708 = vadd.f32 %v1696, 1.0
    %v1709 = vadd.f32 %v1698, 1.0
    %v1710 = vadd.f32 %v1700, 1.0
    %v1711 = vadd.f32 %v1702, 1.0
    %v1712 = vadd.f32 %v1704, 1.0
    %v1713 = vrcp.pop %v1705
    %v1714 = vmul.f32 1.0, %v1713
    %v1715 = vrcp.pop %v1706
    %v1716 = vmul.f32 1.0, %v1715
    %v1717 = vrcp.pop %v1707
    %v1718 = vmul.f32 1.0, %v1717
    %v1719 = vrcp.pop %v1708
    %v1720 = vmul.f32 1.0, %v1719
    %v1721 = vrcp.pop %v1709
    %v1722 = vmul.f32 1.0, %v1721
    %v1723 = vrcp.pop %v1710
    %v1724 = vmul.f32 1.0, %v1723
    %v1725 = vrcp.pop %v1711
    %v1726 = vmul.f32 1.0, %v1725
    %v1727 = vrcp.pop %v1712
    %v1728 = vmul.f32 1.0, %v1727
    %v1729 = vtanh.pop %v1673
    %v1730 = vtanh.pop %v1674
    %v1731 = vtanh.pop %v1675
    %v1732 = vtanh.pop %v1676
    %v1733 = vtanh.pop %v1677
    %v1734 = vtanh.pop %v1678
    %v1735 = vtanh.pop %v1679
    %v1736 = vtanh.pop %v1680
    %v1745 = vrot.slane %v1377, 7
    %v1746 = vrot.slane %v1378, 7
    %v1747 = vrot.slane %v1379, 7
    %v1748 = vrot.slane %v1380, 7
    %v1749 = vrot.slane %v1381, 7
    %v1750 = vrot.slane %v1382, 7
    %v1751 = vrot.slane %v1383, 7
    %v1752 = vrot.slane %v1384, 7
    %v1761 = vmul.f32 %v1714, %v1745
    %v1762 = vmul.f32 %v1716, %v1746
    %v1763 = vmul.f32 %v1718, %v1747
    %v1764 = vmul.f32 %v1720, %v1748
    %v1765 = vmul.f32 %v1722, %v1749
    %v1766 = vmul.f32 %v1724, %v1750
    %v1767 = vmul.f32 %v1726, %v1751
    %v1768 = vmul.f32 %v1728, %v1752
    %1777 = vrot.lane.b32.xlu0 %v1729, 64
    %v1778 = vpop.permute.xlu0 %1777
    %1779 = vrot.lane.b32.xlu0 %v1730, 64
    %v1780 = vpop.permute.xlu0 %1779
    %1781 = vrot.lane.b32.xlu0 %v1731, 64
    %v1782 = vpop.permute.xlu0 %1781
    %1783 = vrot.lane.b32.xlu0 %v1732, 64
    %v1784 = vpop.permute.xlu0 %1783
    %1785 = vrot.lane.b32.xlu0 %v1733, 64
    %v1786 = vpop.permute.xlu0 %1785
    %1787 = vrot.lane.b32.xlu0 %v1734, 64
    %v1788 = vpop.permute.xlu0 %1787
    %1789 = vrot.lane.b32.xlu0 %v1735, 64
    %v1790 = vpop.permute.xlu0 %1789
    %1791 = vrot.lane.b32.xlu0 %v1736, 64
    %v1792 = vpop.permute.xlu0 %1791
    %v1801 = vmul.f32 %v1714, %v1778
    %v1802 = vmul.f32 %v1716, %v1780
    %v1803 = vmul.f32 %v1718, %v1782
    %v1804 = vmul.f32 %v1720, %v1784
    %v1805 = vmul.f32 %v1722, %v1786
    %v1806 = vmul.f32 %v1724, %v1788
    %v1807 = vmul.f32 %v1726, %v1790
    %v1808 = vmul.f32 %v1728, %v1792
    %1817 = vrot.lane.b32.xlu0 %v1801, 32
    %v1818 = vpop.permute.xlu0 %1817
    %1819 = vrot.lane.b32.xlu0 %v1802, 32
    %v1820 = vpop.permute.xlu0 %1819
    %1821 = vrot.lane.b32.xlu0 %v1803, 32
    %v1822 = vpop.permute.xlu0 %1821
    %1823 = vrot.lane.b32.xlu0 %v1804, 32
    %v1824 = vpop.permute.xlu0 %1823
    %1825 = vrot.lane.b32.xlu0 %v1805, 32
    %v1826 = vpop.permute.xlu0 %1825
    %1827 = vrot.lane.b32.xlu0 %v1806, 32
    %v1828 = vpop.permute.xlu0 %1827
    %1829 = vrot.lane.b32.xlu0 %v1807, 32
    %v1830 = vpop.permute.xlu0 %1829
    %1831 = vrot.lane.b32.xlu0 %v1808, 32
    %v1832 = vpop.permute.xlu0 %1831
    %v1841 = vadd.f32 %v1761, %v1818
    %v1842 = vadd.f32 %v1762, %v1820
    %v1843 = vadd.f32 %v1763, %v1822
    %v1844 = vadd.f32 %v1764, %v1824
    %v1845 = vadd.f32 %v1765, %v1826
    %v1846 = vadd.f32 %v1766, %v1828
    %v1847 = vadd.f32 %v1767, %v1830
    %v1848 = vadd.f32 %v1768, %v1832
    %v1849 = vtanh.pop %v1841
    %v1850 = vtanh.pop %v1842
    %v1851 = vtanh.pop %v1843
    %v1852 = vtanh.pop %v1844
    %v1853 = vtanh.pop %v1845
    %v1854 = vtanh.pop %v1846
    %v1855 = vtanh.pop %v1847
    %v1856 = vtanh.pop %v1848
    %1865 = vrot.lane.b32.xlu0 %v1849, 64
    %v1866 = vpop.permute.xlu0 %1865
    %1867 = vrot.lane.b32.xlu0 %v1850, 64
    %v1868 = vpop.permute.xlu0 %1867
    %1869 = vrot.lane.b32.xlu0 %v1851, 64
    %v1870 = vpop.permute.xlu0 %1869
    %1871 = vrot.lane.b32.xlu0 %v1852, 64
    %v1872 = vpop.permute.xlu0 %1871
    %1873 = vrot.lane.b32.xlu0 %v1853, 64
    %v1874 = vpop.permute.xlu0 %1873
    %1875 = vrot.lane.b32.xlu0 %v1854, 64
    %v1876 = vpop.permute.xlu0 %1875
    %1877 = vrot.lane.b32.xlu0 %v1855, 64
    %v1878 = vpop.permute.xlu0 %1877
    %1879 = vrot.lane.b32.xlu0 %v1856, 64
    %v1880 = vpop.permute.xlu0 %1879
    %v1889 = vmul.f32 %v1714, %v1866
    %v1890 = vmul.f32 %v1716, %v1868
    %v1891 = vmul.f32 %v1718, %v1870
    %v1892 = vmul.f32 %v1720, %v1872
    %v1893 = vmul.f32 %v1722, %v1874
    %v1894 = vmul.f32 %v1724, %v1876
    %v1895 = vmul.f32 %v1726, %v1878
    %v1896 = vmul.f32 %v1728, %v1880
    %v1905 = vrot.slane %v1890, 7
    %v1906 = vsel %vm538, %v1905, %v1889
    %v1907 = vrot.slane %v1891, 6
    %v1908 = vsel %vm541, %v1907, %v1906
    %v1909 = vrot.slane %v1892, 5
    %v1910 = vsel %vm544, %v1909, %v1908
    %v1911 = vrot.slane %v1893, 4
    %v1912 = vsel %vm547, %v1911, %v1910
    %v1913 = vrot.slane %v1894, 3
    %v1914 = vrot.slane %v1895, 2
    %v1915 = vsel %vm529, %v1914, %v1913
    %v1916 = vrot.slane %v1896, 1
    %v1917 = vsel %vm532, %v1916, %v1915
    %1918 = vrot.lane.b32.xlu0 %v1912, 32
    %v1919 = vpop.permute.xlu0 %1918
    %1920 = vrot.lane.b32.xlu0 %v1917, 32
    %v1921 = vpop.permute.xlu0 %1920
    %v1925 = vrot.slane %v1568, 5
    %1926 = vrot.lane.b32.xlu0 %v1925, 64
    %v1927 = vpop.permute.xlu0 %1926
    %v1929 = vsel %vm230, %v1919, %v1927
    %v1930 = vsel %vm230, %v1921, %v1927
    %vm1933 = vcmask 1044480
    %v1934 = vrot.slane %v1929, 3
    %v1935 = vrot.slane %v1930, 3
    %v1936 = vsel %vm1933, %v1934, %v1935
    %v1937 = vsel %vm559, %v1936, 0
    %1939 = vmatprep.subr.mxu0 0.0
    %1940 = vmatpush1.msra.mxu0 %v221
    %1941 = vmatprep.subr.mxu0 0.0
    %1942 = vmatpush1.msra.mxu0 %v222
    %1943 = vmatprep.subr.mxu0 0.0
    %1944 = vmatpush1.msra.mxu0 %v223
    %1945 = vmatprep.subr.mxu0 0.0
    %1946 = vmatpush1.msra.mxu0 %v224
    %1947 = vmatprep.subr.mxu0 0.0
    %1948 = vmatpush1.msra.mxu0 %v225
    %1949 = vmatprep.subr.mxu0 0.0
    %1950 = vmatpush1.msra.mxu0 %v226
    %1951 = vmatprep.subr.mxu0 0.0
    %1952 = vmatpush1.msra.mxu0 %v227
    %1953 = vmatprep.subr.mxu0 0.0
    %1954 = vmatpush1.msra.mxu0 %v228
    %1955 = vmatprep.subr.mxu0 0.0
    %1956 = vmatpush1.msra.mxu0 0.0
    %1957 = vmatprep.subr.mxu0 0.0
    %1958 = vmatpush1.msra.mxu0 0.0
    %1959 = vmatprep.subr.mxu0 0.0
    %1960 = vmatpush1.msra.mxu0 0.0
    %1961 = vmatprep.subr.mxu0 0.0
    %1962 = vmatpush1.msra.mxu0 0.0
    %1963 = vmatprep.subr.mxu0 0.0
    %1964 = vmatpush1.msra.mxu0 0.0
    %1965 = vmatprep.subr.mxu0 0.0
    %1966 = vmatpush1.msra.mxu0 0.0
    %1967 = vmatprep.subr.mxu0 0.0
    %1968 = vmatpush1.msra.mxu0 0.0
    %1969 = vmatprep.subr.mxu0 0.0
    %1970 = vmatpush1.msra.mxu0 0.0
    %1971 = vmatprep.subr.mxu0 0.0
    %1972 = vmatpush1.msra.mxu0 0.0
    %1973 = vmatprep.subr.mxu0 0.0
    %1974 = vmatpush1.msra.mxu0 0.0
    %1975 = vmatprep.subr.mxu0 0.0
    %1976 = vmatpush1.msra.mxu0 0.0
    %1977 = vmatprep.subr.mxu0 0.0
    %1978 = vmatpush1.msra.mxu0 0.0
    %1979 = vmatprep.subr.mxu0 0.0
    %1980 = vmatpush1.msra.mxu0 0.0
    %1981 = vmatprep.subr.mxu0 0.0
    %1982 = vmatpush1.msra.mxu0 0.0
    %1983 = vmatprep.subr.mxu0 0.0
    %1984 = vmatpush1.msra.mxu0 0.0
    %1985 = vmatprep.subr.mxu0 0.0
    %1986 = vmatpush1.msra.mxu0 0.0
    %1987 = vmatprep.subr.mxu0 0.0
    %1988 = vmatpush1.msra.mxu0 0.0
    %1989 = vmatprep.subr.mxu0 0.0
    %1990 = vmatpush1.msra.mxu0 0.0
    %1991 = vmatprep.subr.mxu0 0.0
    %1992 = vmatpush1.msra.mxu0 0.0
    %1993 = vmatprep.subr.mxu0 0.0
    %1994 = vmatpush1.msra.mxu0 0.0
    %1995 = vmatprep.subr.mxu0 0.0
    %1996 = vmatpush1.msra.mxu0 0.0
    %1997 = vmatprep.subr.mxu0 0.0
    %1998 = vmatpush1.msra.mxu0 0.0
    %1999 = vmatprep.subr.mxu0 0.0
    %2000 = vmatpush1.msra.mxu0 0.0
    %2001 = vmatprep.subr.mxu0 0.0
    %2002 = vmatpush1.msra.mxu0 0.0
    %2003 = vmatprep.mubr.f32.mxu0 0.0
    %2004 = vmatmul.mubr.f32.gmra.mrb[0].mxu0 %v1937
    %v2005 = vpop.f32.mrb[0].mxu0
    %v2006 = vadd.f32 %v557, %v2005
    %v2007 = vpop.f32.mrb[0].mxu0
    %2008 = vdwg.mxu0
    %v2009 = vxor.u32 %v2006, 2147483648
    %v2010 = vmul.f32 %v2009, 1.442695
    %v2011 = vpow.pop %v2010
    %v2012 = vadd.f32 %v2011, 1.0
    %v2013 = vrcp.pop %v2012
    %v2014 = vmul.f32 1.0, %v2013
    %v2015 = vtanh.pop %v2006
    %v2016 = vmul.f32 %v2014, %v1562
    %2018 = vrot.lane.b32.xlu0 %v2015, 64
    %v2019 = vpop.permute.xlu0 %2018
    %v2021 = vmul.f32 %v2014, %v2019
    %2023 = vrot.lane.b32.xlu0 %v2021, 32
    %v2024 = vpop.permute.xlu0 %2023
    %v2026 = vadd.f32 %v2016, %v2024
    %v2027 = vtanh.pop %v2026
    %2029 = vrot.lane.b32.xlu0 %v2027, 64
    %v2030 = vpop.permute.xlu0 %2029
    %v2032 = vmul.f32 %v2014, %v2030
    %v2033 = vrot.slane %v1889, 3
    %v2034 = vrot.slane %v1890, 2
    %v2035 = vsel %vm529, %v2034, %v2033
    %v2036 = vrot.slane %v1891, 1
    %v2037 = vsel %vm532, %v2036, %v2035
    %v2038 = vsel %vm535, %v1892, %v2037
    %v2039 = vrot.slane %v1893, 7
    %v2040 = vsel %vm538, %v2039, %v2038
    %v2041 = vrot.slane %v1894, 6
    %v2042 = vsel %vm541, %v2041, %v2040
    %v2043 = vrot.slane %v1895, 5
    %v2044 = vsel %vm544, %v2043, %v2042
    %v2045 = vrot.slane %v1896, 4
    %v2046 = vsel %vm547, %v2045, %v2044
    %2047 = vrot.lane.b32.xlu0 %v2046, 32
    %v2048 = vpop.permute.xlu0 %2047
    %v2049 = vsel %vm230, %v2048, 0
    %2051 = vmatprep.subr.mxu0 0.0
    %2052 = vmatpush1.msra.mxu0 %v217
    %2053 = vmatprep.subr.mxu0 0.0
    %2054 = vmatpush1.msra.mxu0 %v218
    %2055 = vmatprep.subr.mxu0 0.0
    %2056 = vmatpush1.msra.mxu0 %v219
    %2057 = vmatprep.subr.mxu0 0.0
    %2058 = vmatpush1.msra.mxu0 %v220
    %2059 = vmatprep.subr.mxu0 0.0
    %2060 = vmatpush1.msra.mxu0 0.0
    %2061 = vmatprep.subr.mxu0 0.0
    %2062 = vmatpush1.msra.mxu0 0.0
    %2063 = vmatprep.subr.mxu0 0.0
    %2064 = vmatpush1.msra.mxu0 0.0
    %2065 = vmatprep.subr.mxu0 0.0
    %2066 = vmatpush1.msra.mxu0 0.0
    %2067 = vmatprep.subr.mxu0 0.0
    %2068 = vmatpush1.msra.mxu0 0.0
    %2069 = vmatprep.subr.mxu0 0.0
    %2070 = vmatpush1.msra.mxu0 0.0
    %2071 = vmatprep.subr.mxu0 0.0
    %2072 = vmatpush1.msra.mxu0 0.0
    %2073 = vmatprep.subr.mxu0 0.0
    %2074 = vmatpush1.msra.mxu0 0.0
    %2075 = vmatprep.subr.mxu0 0.0
    %2076 = vmatpush1.msra.mxu0 0.0
    %2077 = vmatprep.subr.mxu0 0.0
    %2078 = vmatpush1.msra.mxu0 0.0
    %2079 = vmatprep.subr.mxu0 0.0
    %2080 = vmatpush1.msra.mxu0 0.0
    %2081 = vmatprep.subr.mxu0 0.0
    %2082 = vmatpush1.msra.mxu0 0.0
    %2083 = vmatprep.subr.mxu0 0.0
    %2084 = vmatpush1.msra.mxu0 0.0
    %2085 = vmatprep.subr.mxu0 0.0
    %2086 = vmatpush1.msra.mxu0 0.0
    %2087 = vmatprep.subr.mxu0 0.0
    %2088 = vmatpush1.msra.mxu0 0.0
    %2089 = vmatprep.subr.mxu0 0.0
    %2090 = vmatpush1.msra.mxu0 0.0
    %2091 = vmatprep.subr.mxu0 0.0
    %2092 = vmatpush1.msra.mxu0 0.0
    %2093 = vmatprep.subr.mxu0 0.0
    %2094 = vmatpush1.msra.mxu0 0.0
    %2095 = vmatprep.subr.mxu0 0.0
    %2096 = vmatpush1.msra.mxu0 0.0
    %2097 = vmatprep.subr.mxu0 0.0
    %2098 = vmatpush1.msra.mxu0 0.0
    %2099 = vmatprep.subr.mxu0 0.0
    %2100 = vmatpush1.msra.mxu0 0.0
    %2101 = vmatprep.subr.mxu0 0.0
    %2102 = vmatpush1.msra.mxu0 0.0
    %2103 = vmatprep.subr.mxu0 0.0
    %2104 = vmatpush1.msra.mxu0 0.0
    %2105 = vmatprep.subr.mxu0 0.0
    %2106 = vmatpush1.msra.mxu0 0.0
    %2107 = vmatprep.subr.mxu0 0.0
    %2108 = vmatpush1.msra.mxu0 0.0
    %2109 = vmatprep.subr.mxu0 0.0
    %2110 = vmatpush1.msra.mxu0 0.0
    %2111 = vmatprep.subr.mxu0 0.0
    %2112 = vmatpush1.msra.mxu0 0.0
    %2113 = vmatprep.subr.mxu0 0.0
    %2114 = vmatpush1.msra.mxu0 0.0
    %2115 = vmatprep.mubr.f32.mxu0 0.0
    %2116 = vmatmul.mubr.f32.gmra.mrb[0].mxu0 %v2049
    %v2117 = vpop.f32.mrb[0].mxu0
    %v2118 = vadd.f32 0.0, %v2117
    %v2119 = vpop.f32.mrb[0].mxu0
    %2120 = vdwg.mxu0
    %v2122 = vrot.slane %v2118, 4
    %v2123 = vrot.slane %v2118, 5
    %v2124 = vrot.slane %v2118, 6
    %v2125 = vrot.slane %v2118, 7
    %v2126 = vrot.slane %v2118, 1
    %v2127 = vrot.slane %v2118, 2
    %v2128 = vrot.slane %v2118, 3
    %v2137 = vadd.f32 %v179, %v2122
    %v2138 = vadd.f32 %v184, %v2123
    %v2139 = vadd.f32 %v189, %v2124
    %v2140 = vadd.f32 %v194, %v2125
    %v2141 = vadd.f32 %v199, %v2118
    %v2142 = vadd.f32 %v204, %v2126
    %v2143 = vadd.f32 %v209, %v2127
    %v2144 = vadd.f32 %v214, %v2128
    %v2145 = vxor.u32 %v2137, 2147483648
    %v2146 = vxor.u32 %v2138, 2147483648
    %v2147 = vxor.u32 %v2139, 2147483648
    %v2148 = vxor.u32 %v2140, 2147483648
    %v2149 = vxor.u32 %v2141, 2147483648
    %v2150 = vxor.u32 %v2142, 2147483648
    %v2151 = vxor.u32 %v2143, 2147483648
    %v2152 = vxor.u32 %v2144, 2147483648
    %v2153 = vmul.f32 %v2145, 1.442695
    %v2154 = vpow.pop %v2153
    %v2155 = vmul.f32 %v2146, 1.442695
    %v2156 = vpow.pop %v2155
    %v2157 = vmul.f32 %v2147, 1.442695
    %v2158 = vpow.pop %v2157
    %v2159 = vmul.f32 %v2148, 1.442695
    %v2160 = vpow.pop %v2159
    %v2161 = vmul.f32 %v2149, 1.442695
    %v2162 = vpow.pop %v2161
    %v2163 = vmul.f32 %v2150, 1.442695
    %v2164 = vpow.pop %v2163
    %v2165 = vmul.f32 %v2151, 1.442695
    %v2166 = vpow.pop %v2165
    %v2167 = vmul.f32 %v2152, 1.442695
    %v2168 = vpow.pop %v2167
    %v2169 = vadd.f32 %v2154, 1.0
    %v2170 = vadd.f32 %v2156, 1.0
    %v2171 = vadd.f32 %v2158, 1.0
    %v2172 = vadd.f32 %v2160, 1.0
    %v2173 = vadd.f32 %v2162, 1.0
    %v2174 = vadd.f32 %v2164, 1.0
    %v2175 = vadd.f32 %v2166, 1.0
    %v2176 = vadd.f32 %v2168, 1.0
    %v2177 = vrcp.pop %v2169
    %v2178 = vmul.f32 1.0, %v2177
    %v2179 = vrcp.pop %v2170
    %v2180 = vmul.f32 1.0, %v2179
    %v2181 = vrcp.pop %v2171
    %v2182 = vmul.f32 1.0, %v2181
    %v2183 = vrcp.pop %v2172
    %v2184 = vmul.f32 1.0, %v2183
    %v2185 = vrcp.pop %v2173
    %v2186 = vmul.f32 1.0, %v2185
    %v2187 = vrcp.pop %v2174
    %v2188 = vmul.f32 1.0, %v2187
    %v2189 = vrcp.pop %v2175
    %v2190 = vmul.f32 1.0, %v2189
    %v2191 = vrcp.pop %v2176
    %v2192 = vmul.f32 1.0, %v2191
    %v2193 = vtanh.pop %v2137
    %v2194 = vtanh.pop %v2138
    %v2195 = vtanh.pop %v2139
    %v2196 = vtanh.pop %v2140
    %v2197 = vtanh.pop %v2141
    %v2198 = vtanh.pop %v2142
    %v2199 = vtanh.pop %v2143
    %v2200 = vtanh.pop %v2144
    %v2209 = vrot.slane %v1841, 7
    %v2210 = vrot.slane %v1842, 7
    %v2211 = vrot.slane %v1843, 7
    %v2212 = vrot.slane %v1844, 7
    %v2213 = vrot.slane %v1845, 7
    %v2214 = vrot.slane %v1846, 7
    %v2215 = vrot.slane %v1847, 7
    %v2216 = vrot.slane %v1848, 7
    %v2225 = vmul.f32 %v2178, %v2209
    %v2226 = vmul.f32 %v2180, %v2210
    %v2227 = vmul.f32 %v2182, %v2211
    %v2228 = vmul.f32 %v2184, %v2212
    %v2229 = vmul.f32 %v2186, %v2213
    %v2230 = vmul.f32 %v2188, %v2214
    %v2231 = vmul.f32 %v2190, %v2215
    %v2232 = vmul.f32 %v2192, %v2216
    %2241 = vrot.lane.b32.xlu0 %v2193, 64
    %v2242 = vpop.permute.xlu0 %2241
    %2243 = vrot.lane.b32.xlu0 %v2194, 64
    %v2244 = vpop.permute.xlu0 %2243
    %2245 = vrot.lane.b32.xlu0 %v2195, 64
    %v2246 = vpop.permute.xlu0 %2245
    %2247 = vrot.lane.b32.xlu0 %v2196, 64
    %v2248 = vpop.permute.xlu0 %2247
    %2249 = vrot.lane.b32.xlu0 %v2197, 64
    %v2250 = vpop.permute.xlu0 %2249
    %2251 = vrot.lane.b32.xlu0 %v2198, 64
    %v2252 = vpop.permute.xlu0 %2251
    %2253 = vrot.lane.b32.xlu0 %v2199, 64
    %v2254 = vpop.permute.xlu0 %2253
    %2255 = vrot.lane.b32.xlu0 %v2200, 64
    %v2256 = vpop.permute.xlu0 %2255
    %v2265 = vmul.f32 %v2178, %v2242
    %v2266 = vmul.f32 %v2180, %v2244
    %v2267 = vmul.f32 %v2182, %v2246
    %v2268 = vmul.f32 %v2184, %v2248
    %v2269 = vmul.f32 %v2186, %v2250
    %v2270 = vmul.f32 %v2188, %v2252
    %v2271 = vmul.f32 %v2190, %v2254
    %v2272 = vmul.f32 %v2192, %v2256
    %2281 = vrot.lane.b32.xlu0 %v2265, 32
    %v2282 = vpop.permute.xlu0 %2281
    %2283 = vrot.lane.b32.xlu0 %v2266, 32
    %v2284 = vpop.permute.xlu0 %2283
    %2285 = vrot.lane.b32.xlu0 %v2267, 32
    %v2286 = vpop.permute.xlu0 %2285
    %2287 = vrot.lane.b32.xlu0 %v2268, 32
    %v2288 = vpop.permute.xlu0 %2287
    %2289 = vrot.lane.b32.xlu0 %v2269, 32
    %v2290 = vpop.permute.xlu0 %2289
    %2291 = vrot.lane.b32.xlu0 %v2270, 32
    %v2292 = vpop.permute.xlu0 %2291
    %2293 = vrot.lane.b32.xlu0 %v2271, 32
    %v2294 = vpop.permute.xlu0 %2293
    %2295 = vrot.lane.b32.xlu0 %v2272, 32
    %v2296 = vpop.permute.xlu0 %2295
    %v2305 = vadd.f32 %v2225, %v2282
    %v2306 = vadd.f32 %v2226, %v2284
    %v2307 = vadd.f32 %v2227, %v2286
    %v2308 = vadd.f32 %v2228, %v2288
    %v2309 = vadd.f32 %v2229, %v2290
    %v2310 = vadd.f32 %v2230, %v2292
    %v2311 = vadd.f32 %v2231, %v2294
    %v2312 = vadd.f32 %v2232, %v2296
    %v2313 = vtanh.pop %v2305
    %v2314 = vtanh.pop %v2306
    %v2315 = vtanh.pop %v2307
    %v2316 = vtanh.pop %v2308
    %v2317 = vtanh.pop %v2309
    %v2318 = vtanh.pop %v2310
    %v2319 = vtanh.pop %v2311
    %v2320 = vtanh.pop %v2312
    %2329 = vrot.lane.b32.xlu0 %v2313, 64
    %v2330 = vpop.permute.xlu0 %2329
    %2331 = vrot.lane.b32.xlu0 %v2314, 64
    %v2332 = vpop.permute.xlu0 %2331
    %2333 = vrot.lane.b32.xlu0 %v2315, 64
    %v2334 = vpop.permute.xlu0 %2333
    %2335 = vrot.lane.b32.xlu0 %v2316, 64
    %v2336 = vpop.permute.xlu0 %2335
    %2337 = vrot.lane.b32.xlu0 %v2317, 64
    %v2338 = vpop.permute.xlu0 %2337
    %2339 = vrot.lane.b32.xlu0 %v2318, 64
    %v2340 = vpop.permute.xlu0 %2339
    %2341 = vrot.lane.b32.xlu0 %v2319, 64
    %v2342 = vpop.permute.xlu0 %2341
    %2343 = vrot.lane.b32.xlu0 %v2320, 64
    %v2344 = vpop.permute.xlu0 %2343
    %v2353 = vmul.f32 %v2178, %v2330
    %v2354 = vmul.f32 %v2180, %v2332
    %v2355 = vmul.f32 %v2182, %v2334
    %v2356 = vmul.f32 %v2184, %v2336
    %v2357 = vmul.f32 %v2186, %v2338
    %v2358 = vmul.f32 %v2188, %v2340
    %v2359 = vmul.f32 %v2190, %v2342
    %v2360 = vmul.f32 %v2192, %v2344
    %v2369 = vrot.slane %v2354, 7
    %v2370 = vsel %vm541, %v2369, %v2353
    %v2371 = vrot.slane %v2355, 6
    %v2372 = vsel %vm544, %v2371, %v2370
    %v2373 = vrot.slane %v2356, 5
    %v2374 = vsel %vm547, %v2373, %v2372
    %v2375 = vrot.slane %v2357, 4
    %v2376 = vrot.slane %v2358, 3
    %v2377 = vsel %vm529, %v2376, %v2375
    %v2378 = vrot.slane %v2359, 2
    %v2379 = vsel %vm532, %v2378, %v2377
    %v2380 = vrot.slane %v2360, 1
    %v2381 = vsel %vm535, %v2380, %v2379
    %2382 = vrot.lane.b32.xlu0 %v2374, 32
    %v2383 = vpop.permute.xlu0 %2382
    %2384 = vrot.lane.b32.xlu0 %v2381, 32
    %v2385 = vpop.permute.xlu0 %2384
    %v2389 = vrot.slane %v2032, 4
    %2390 = vrot.lane.b32.xlu0 %v2389, 64
    %v2391 = vpop.permute.xlu0 %2390
    %v2393 = vsel %vm230, %v2383, %v2391
    %v2394 = vsel %vm230, %v2385, %v2391
    %vm2397 = vcmask 1043456
    %v2398 = vrot.slane %v2393, 4
    %v2399 = vrot.slane %v2394, 4
    %v2400 = vsel %vm2397, %v2398, %v2399
    %v2401 = vsel %vm559, %v2400, 0
    %2403 = vmatprep.subr.mxu0 0.0
    %2404 = vmatpush1.msra.mxu0 %v221
    %2405 = vmatprep.subr.mxu0 0.0
    %2406 = vmatpush1.msra.mxu0 %v222
    %2407 = vmatprep.subr.mxu0 0.0
    %2408 = vmatpush1.msra.mxu0 %v223
    %2409 = vmatprep.subr.mxu0 0.0
    %2410 = vmatpush1.msra.mxu0 %v224
    %2411 = vmatprep.subr.mxu0 0.0
    %2412 = vmatpush1.msra.mxu0 %v225
    %2413 = vmatprep.subr.mxu0 0.0
    %2414 = vmatpush1.msra.mxu0 %v226
    %2415 = vmatprep.subr.mxu0 0.0
    %2416 = vmatpush1.msra.mxu0 %v227
    %2417 = vmatprep.subr.mxu0 0.0
    %2418 = vmatpush1.msra.mxu0 %v228
    %2419 = vmatprep.subr.mxu0 0.0
    %2420 = vmatpush1.msra.mxu0 0.0
    %2421 = vmatprep.subr.mxu0 0.0
    %2422 = vmatpush1.msra.mxu0 0.0
    %2423 = vmatprep.subr.mxu0 0.0
    %2424 = vmatpush1.msra.mxu0 0.0
    %2425 = vmatprep.subr.mxu0 0.0
    %2426 = vmatpush1.msra.mxu0 0.0
    %2427 = vmatprep.subr.mxu0 0.0
    %2428 = vmatpush1.msra.mxu0 0.0
    %2429 = vmatprep.subr.mxu0 0.0
    %2430 = vmatpush1.msra.mxu0 0.0
    %2431 = vmatprep.subr.mxu0 0.0
    %2432 = vmatpush1.msra.mxu0 0.0
    %2433 = vmatprep.subr.mxu0 0.0
    %2434 = vmatpush1.msra.mxu0 0.0
    %2435 = vmatprep.subr.mxu0 0.0
    %2436 = vmatpush1.msra.mxu0 0.0
    %2437 = vmatprep.subr.mxu0 0.0
    %2438 = vmatpush1.msra.mxu0 0.0
    %2439 = vmatprep.subr.mxu0 0.0
    %2440 = vmatpush1.msra.mxu0 0.0
    %2441 = vmatprep.subr.mxu0 0.0
    %2442 = vmatpush1.msra.mxu0 0.0
    %2443 = vmatprep.subr.mxu0 0.0
    %2444 = vmatpush1.msra.mxu0 0.0
    %2445 = vmatprep.subr.mxu0 0.0
    %2446 = vmatpush1.msra.mxu0 0.0
    %2447 = vmatprep.subr.mxu0 0.0
    %2448 = vmatpush1.msra.mxu0 0.0
    %2449 = vmatprep.subr.mxu0 0.0
    %2450 = vmatpush1.msra.mxu0 0.0
    %2451 = vmatprep.subr.mxu0 0.0
    %2452 = vmatpush1.msra.mxu0 0.0
    %2453 = vmatprep.subr.mxu0 0.0
    %2454 = vmatpush1.msra.mxu0 0.0
    %2455 = vmatprep.subr.mxu0 0.0
    %2456 = vmatpush1.msra.mxu0 0.0
    %2457 = vmatprep.subr.mxu0 0.0
    %2458 = vmatpush1.msra.mxu0 0.0
    %2459 = vmatprep.subr.mxu0 0.0
    %2460 = vmatpush1.msra.mxu0 0.0
    %2461 = vmatprep.subr.mxu0 0.0
    %2462 = vmatpush1.msra.mxu0 0.0
    %2463 = vmatprep.subr.mxu0 0.0
    %2464 = vmatpush1.msra.mxu0 0.0
    %2465 = vmatprep.subr.mxu0 0.0
    %2466 = vmatpush1.msra.mxu0 0.0
    %2467 = vmatprep.mubr.f32.mxu0 0.0
    %2468 = vmatmul.mubr.f32.gmra.mrb[0].mxu0 %v2401
    %v2469 = vpop.f32.mrb[0].mxu0
    %v2470 = vadd.f32 %v557, %v2469
    %v2471 = vpop.f32.mrb[0].mxu0
    %2472 = vdwg.mxu0
    %v2473 = vxor.u32 %v2470, 2147483648
    %v2474 = vmul.f32 %v2473, 1.442695
    %v2475 = vpow.pop %v2474
    %v2476 = vadd.f32 %v2475, 1.0
    %v2477 = vrcp.pop %v2476
    %v2478 = vmul.f32 1.0, %v2477
    %v2479 = vtanh.pop %v2470
    %v2480 = vmul.f32 %v2478, %v2026
    %2482 = vrot.lane.b32.xlu0 %v2479, 64
    %v2483 = vpop.permute.xlu0 %2482
    %v2485 = vmul.f32 %v2478, %v2483
    %2487 = vrot.lane.b32.xlu0 %v2485, 32
    %v2488 = vpop.permute.xlu0 %2487
    %v2490 = vadd.f32 %v2480, %v2488
    %v2491 = vtanh.pop %v2490
    %2493 = vrot.lane.b32.xlu0 %v2491, 64
    %v2494 = vpop.permute.xlu0 %2493
    %v2496 = vmul.f32 %v2478, %v2494
    %v2497 = vrot.slane %v2353, 4
    %v2498 = vrot.slane %v2354, 3
    %v2499 = vsel %vm529, %v2498, %v2497
    %v2500 = vrot.slane %v2355, 2
    %v2501 = vsel %vm532, %v2500, %v2499
    %v2502 = vrot.slane %v2356, 1
    %v2503 = vsel %vm535, %v2502, %v2501
    %v2504 = vsel %vm538, %v2357, %v2503
    %v2505 = vrot.slane %v2358, 7
    %v2506 = vsel %vm541, %v2505, %v2504
    %v2507 = vrot.slane %v2359, 6
    %v2508 = vsel %vm544, %v2507, %v2506
    %v2509 = vrot.slane %v2360, 5
    %v2510 = vsel %vm547, %v2509, %v2508
    %2511 = vrot.lane.b32.xlu0 %v2510, 32
    %v2512 = vpop.permute.xlu0 %2511
    %v2513 = vsel %vm230, %v2512, 0
    %2515 = vmatprep.subr.mxu0 0.0
    %2516 = vmatpush1.msra.mxu0 %v217
    %2517 = vmatprep.subr.mxu0 0.0
    %2518 = vmatpush1.msra.mxu0 %v218
    %2519 = vmatprep.subr.mxu0 0.0
    %2520 = vmatpush1.msra.mxu0 %v219
    %2521 = vmatprep.subr.mxu0 0.0
    %2522 = vmatpush1.msra.mxu0 %v220
    %2523 = vmatprep.subr.mxu0 0.0
    %2524 = vmatpush1.msra.mxu0 0.0
    %2525 = vmatprep.subr.mxu0 0.0
    %2526 = vmatpush1.msra.mxu0 0.0
    %2527 = vmatprep.subr.mxu0 0.0
    %2528 = vmatpush1.msra.mxu0 0.0
    %2529 = vmatprep.subr.mxu0 0.0
    %2530 = vmatpush1.msra.mxu0 0.0
    %2531 = vmatprep.subr.mxu0 0.0
    %2532 = vmatpush1.msra.mxu0 0.0
    %2533 = vmatprep.subr.mxu0 0.0
    %2534 = vmatpush1.msra.mxu0 0.0
    %2535 = vmatprep.subr.mxu0 0.0
    %2536 = vmatpush1.msra.mxu0 0.0
    %2537 = vmatprep.subr.mxu0 0.0
    %2538 = vmatpush1.msra.mxu0 0.0
    %2539 = vmatprep.subr.mxu0 0.0
    %2540 = vmatpush1.msra.mxu0 0.0
    %2541 = vmatprep.subr.mxu0 0.0
    %2542 = vmatpush1.msra.mxu0 0.0
    %2543 = vmatprep.subr.mxu0 0.0
    %2544 = vmatpush1.msra.mxu0 0.0
    %2545 = vmatprep.subr.mxu0 0.0
    %2546 = vmatpush1.msra.mxu0 0.0
    %2547 = vmatprep.subr.mxu0 0.0
    %2548 = vmatpush1.msra.mxu0 0.0
    %2549 = vmatprep.subr.mxu0 0.0
    %2550 = vmatpush1.msra.mxu0 0.0
    %2551 = vmatprep.subr.mxu0 0.0
    %2552 = vmatpush1.msra.mxu0 0.0
    %2553 = vmatprep.subr.mxu0 0.0
    %2554 = vmatpush1.msra.mxu0 0.0
    %2555 = vmatprep.subr.mxu0 0.0
    %2556 = vmatpush1.msra.mxu0 0.0
    %2557 = vmatprep.subr.mxu0 0.0
    %2558 = vmatpush1.msra.mxu0 0.0
    %2559 = vmatprep.subr.mxu0 0.0
    %2560 = vmatpush1.msra.mxu0 0.0
    %2561 = vmatprep.subr.mxu0 0.0
    %2562 = vmatpush1.msra.mxu0 0.0
    %2563 = vmatprep.subr.mxu0 0.0
    %2564 = vmatpush1.msra.mxu0 0.0
    %2565 = vmatprep.subr.mxu0 0.0
    %2566 = vmatpush1.msra.mxu0 0.0
    %2567 = vmatprep.subr.mxu0 0.0
    %2568 = vmatpush1.msra.mxu0 0.0
    %2569 = vmatprep.subr.mxu0 0.0
    %2570 = vmatpush1.msra.mxu0 0.0
    %2571 = vmatprep.subr.mxu0 0.0
    %2572 = vmatpush1.msra.mxu0 0.0
    %2573 = vmatprep.subr.mxu0 0.0
    %2574 = vmatpush1.msra.mxu0 0.0
    %2575 = vmatprep.subr.mxu0 0.0
    %2576 = vmatpush1.msra.mxu0 0.0
    %2577 = vmatprep.subr.mxu0 0.0
    %2578 = vmatpush1.msra.mxu0 0.0
    %2579 = vmatprep.mubr.f32.mxu0 0.0
    %2580 = vmatmul.mubr.f32.gmra.mrb[0].mxu0 %v2513
    %v2581 = vpop.f32.mrb[0].mxu0
    %v2582 = vadd.f32 0.0, %v2581
    %v2583 = vpop.f32.mrb[0].mxu0
    %2584 = vdwg.mxu0
    %v2586 = vrot.slane %v2582, 3
    %v2587 = vrot.slane %v2582, 4
    %v2588 = vrot.slane %v2582, 5
    %v2589 = vrot.slane %v2582, 6
    %v2590 = vrot.slane %v2582, 7
    %v2591 = vrot.slane %v2582, 1
    %v2592 = vrot.slane %v2582, 2
    %v2601 = vadd.f32 %v179, %v2586
    %v2602 = vadd.f32 %v184, %v2587
    %v2603 = vadd.f32 %v189, %v2588
    %v2604 = vadd.f32 %v194, %v2589
    %v2605 = vadd.f32 %v199, %v2590
    %v2606 = vadd.f32 %v204, %v2582
    %v2607 = vadd.f32 %v209, %v2591
    %v2608 = vadd.f32 %v214, %v2592
    %v2609 = vxor.u32 %v2601, 2147483648
    %v2610 = vxor.u32 %v2602, 2147483648
    %v2611 = vxor.u32 %v2603, 2147483648
    %v2612 = vxor.u32 %v2604, 2147483648
    %v2613 = vxor.u32 %v2605, 2147483648
    %v2614 = vxor.u32 %v2606, 2147483648
    %v2615 = vxor.u32 %v2607, 2147483648
    %v2616 = vxor.u32 %v2608, 2147483648
    %v2617 = vmul.f32 %v2609, 1.442695
    %v2618 = vpow.pop %v2617
    %v2619 = vmul.f32 %v2610, 1.442695
    %v2620 = vpow.pop %v2619
    %v2621 = vmul.f32 %v2611, 1.442695
    %v2622 = vpow.pop %v2621
    %v2623 = vmul.f32 %v2612, 1.442695
    %v2624 = vpow.pop %v2623
    %v2625 = vmul.f32 %v2613, 1.442695
    %v2626 = vpow.pop %v2625
    %v2627 = vmul.f32 %v2614, 1.442695
    %v2628 = vpow.pop %v2627
    %v2629 = vmul.f32 %v2615, 1.442695
    %v2630 = vpow.pop %v2629
    %v2631 = vmul.f32 %v2616, 1.442695
    %v2632 = vpow.pop %v2631
    %v2633 = vadd.f32 %v2618, 1.0
    %v2634 = vadd.f32 %v2620, 1.0
    %v2635 = vadd.f32 %v2622, 1.0
    %v2636 = vadd.f32 %v2624, 1.0
    %v2637 = vadd.f32 %v2626, 1.0
    %v2638 = vadd.f32 %v2628, 1.0
    %v2639 = vadd.f32 %v2630, 1.0
    %v2640 = vadd.f32 %v2632, 1.0
    %v2641 = vrcp.pop %v2633
    %v2642 = vmul.f32 1.0, %v2641
    %v2643 = vrcp.pop %v2634
    %v2644 = vmul.f32 1.0, %v2643
    %v2645 = vrcp.pop %v2635
    %v2646 = vmul.f32 1.0, %v2645
    %v2647 = vrcp.pop %v2636
    %v2648 = vmul.f32 1.0, %v2647
    %v2649 = vrcp.pop %v2637
    %v2650 = vmul.f32 1.0, %v2649
    %v2651 = vrcp.pop %v2638
    %v2652 = vmul.f32 1.0, %v2651
    %v2653 = vrcp.pop %v2639
    %v2654 = vmul.f32 1.0, %v2653
    %v2655 = vrcp.pop %v2640
    %v2656 = vmul.f32 1.0, %v2655
    %v2657 = vtanh.pop %v2601
    %v2658 = vtanh.pop %v2602
    %v2659 = vtanh.pop %v2603
    %v2660 = vtanh.pop %v2604
    %v2661 = vtanh.pop %v2605
    %v2662 = vtanh.pop %v2606
    %v2663 = vtanh.pop %v2607
    %v2664 = vtanh.pop %v2608
    %v2673 = vrot.slane %v2305, 7
    %v2674 = vrot.slane %v2306, 7
    %v2675 = vrot.slane %v2307, 7
    %v2676 = vrot.slane %v2308, 7
    %v2677 = vrot.slane %v2309, 7
    %v2678 = vrot.slane %v2310, 7
    %v2679 = vrot.slane %v2311, 7
    %v2680 = vrot.slane %v2312, 7
    %v2689 = vmul.f32 %v2642, %v2673
    %v2690 = vmul.f32 %v2644, %v2674
    %v2691 = vmul.f32 %v2646, %v2675
    %v2692 = vmul.f32 %v2648, %v2676
    %v2693 = vmul.f32 %v2650, %v2677
    %v2694 = vmul.f32 %v2652, %v2678
    %v2695 = vmul.f32 %v2654, %v2679
    %v2696 = vmul.f32 %v2656, %v2680
    %2705 = vrot.lane.b32.xlu0 %v2657, 64
    %v2706 = vpop.permute.xlu0 %2705
    %2707 = vrot.lane.b32.xlu0 %v2658, 64
    %v2708 = vpop.permute.xlu0 %2707
    %2709 = vrot.lane.b32.xlu0 %v2659, 64
    %v2710 = vpop.permute.xlu0 %2709
    %2711 = vrot.lane.b32.xlu0 %v2660, 64
    %v2712 = vpop.permute.xlu0 %2711
    %2713 = vrot.lane.b32.xlu0 %v2661, 64
    %v2714 = vpop.permute.xlu0 %2713
    %2715 = vrot.lane.b32.xlu0 %v2662, 64
    %v2716 = vpop.permute.xlu0 %2715
    %2717 = vrot.lane.b32.xlu0 %v2663, 64
    %v2718 = vpop.permute.xlu0 %2717
    %2719 = vrot.lane.b32.xlu0 %v2664, 64
    %v2720 = vpop.permute.xlu0 %2719
    %v2729 = vmul.f32 %v2642, %v2706
    %v2730 = vmul.f32 %v2644, %v2708
    %v2731 = vmul.f32 %v2646, %v2710
    %v2732 = vmul.f32 %v2648, %v2712
    %v2733 = vmul.f32 %v2650, %v2714
    %v2734 = vmul.f32 %v2652, %v2716
    %v2735 = vmul.f32 %v2654, %v2718
    %v2736 = vmul.f32 %v2656, %v2720
    %2745 = vrot.lane.b32.xlu0 %v2729, 32
    %v2746 = vpop.permute.xlu0 %2745
    %2747 = vrot.lane.b32.xlu0 %v2730, 32
    %v2748 = vpop.permute.xlu0 %2747
    %2749 = vrot.lane.b32.xlu0 %v2731, 32
    %v2750 = vpop.permute.xlu0 %2749
    %2751 = vrot.lane.b32.xlu0 %v2732, 32
    %v2752 = vpop.permute.xlu0 %2751
    %2753 = vrot.lane.b32.xlu0 %v2733, 32
    %v2754 = vpop.permute.xlu0 %2753
    %2755 = vrot.lane.b32.xlu0 %v2734, 32
    %v2756 = vpop.permute.xlu0 %2755
    %2757 = vrot.lane.b32.xlu0 %v2735, 32
    %v2758 = vpop.permute.xlu0 %2757
    %2759 = vrot.lane.b32.xlu0 %v2736, 32
    %v2760 = vpop.permute.xlu0 %2759
    %v2769 = vadd.f32 %v2689, %v2746
    %v2770 = vadd.f32 %v2690, %v2748
    %v2771 = vadd.f32 %v2691, %v2750
    %v2772 = vadd.f32 %v2692, %v2752
    %v2773 = vadd.f32 %v2693, %v2754
    %v2774 = vadd.f32 %v2694, %v2756
    %v2775 = vadd.f32 %v2695, %v2758
    %v2776 = vadd.f32 %v2696, %v2760
    %v2777 = vtanh.pop %v2769
    %v2778 = vtanh.pop %v2770
    %v2779 = vtanh.pop %v2771
    %v2780 = vtanh.pop %v2772
    %v2781 = vtanh.pop %v2773
    %v2782 = vtanh.pop %v2774
    %v2783 = vtanh.pop %v2775
    %v2784 = vtanh.pop %v2776
    %2793 = vrot.lane.b32.xlu0 %v2777, 64
    %v2794 = vpop.permute.xlu0 %2793
    %2795 = vrot.lane.b32.xlu0 %v2778, 64
    %v2796 = vpop.permute.xlu0 %2795
    %2797 = vrot.lane.b32.xlu0 %v2779, 64
    %v2798 = vpop.permute.xlu0 %2797
    %2799 = vrot.lane.b32.xlu0 %v2780, 64
    %v2800 = vpop.permute.xlu0 %2799
    %2801 = vrot.lane.b32.xlu0 %v2781, 64
    %v2802 = vpop.permute.xlu0 %2801
    %2803 = vrot.lane.b32.xlu0 %v2782, 64
    %v2804 = vpop.permute.xlu0 %2803
    %2805 = vrot.lane.b32.xlu0 %v2783, 64
    %v2806 = vpop.permute.xlu0 %2805
    %2807 = vrot.lane.b32.xlu0 %v2784, 64
    %v2808 = vpop.permute.xlu0 %2807
    %v2817 = vmul.f32 %v2642, %v2794
    %v2818 = vmul.f32 %v2644, %v2796
    %v2819 = vmul.f32 %v2646, %v2798
    %v2820 = vmul.f32 %v2648, %v2800
    %v2821 = vmul.f32 %v2650, %v2802
    %v2822 = vmul.f32 %v2652, %v2804
    %v2823 = vmul.f32 %v2654, %v2806
    %v2824 = vmul.f32 %v2656, %v2808
    %v2833 = vrot.slane %v2818, 7
    %v2834 = vsel %vm544, %v2833, %v2817
    %v2835 = vrot.slane %v2819, 6
    %v2836 = vsel %vm547, %v2835, %v2834
    %v2837 = vrot.slane %v2820, 5
    %v2838 = vrot.slane %v2821, 4
    %v2839 = vsel %vm529, %v2838, %v2837
    %v2840 = vrot.slane %v2822, 3
    %v2841 = vsel %vm532, %v2840, %v2839
    %v2842 = vrot.slane %v2823, 2
    %v2843 = vsel %vm535, %v2842, %v2841
    %v2844 = vrot.slane %v2824, 1
    %v2845 = vsel %vm538, %v2844, %v2843
    %2846 = vrot.lane.b32.xlu0 %v2836, 32
    %v2847 = vpop.permute.xlu0 %2846
    %2848 = vrot.lane.b32.xlu0 %v2845, 32
    %v2849 = vpop.permute.xlu0 %2848
    %v2853 = vrot.slane %v2496, 3
    %2854 = vrot.lane.b32.xlu0 %v2853, 64
    %v2855 = vpop.permute.xlu0 %2854
    %v2857 = vsel %vm230, %v2847, %v2855
    %v2858 = vsel %vm230, %v2849, %v2855
    %vm2861 = vcmask 1042432
    %v2862 = vrot.slane %v2857, 5
    %v2863 = vrot.slane %v2858, 5
    %v2864 = vsel %vm2861, %v2862, %v2863
    %v2865 = vsel %vm559, %v2864, 0
    %2867 = vmatprep.subr.mxu0 0.0
    %2868 = vmatpush1.msra.mxu0 %v221
    %2869 = vmatprep.subr.mxu0 0.0
    %2870 = vmatpush1.msra.mxu0 %v222
    %2871 = vmatprep.subr.mxu0 0.0
    %2872 = vmatpush1.msra.mxu0 %v223
    %2873 = vmatprep.subr.mxu0 0.0
    %2874 = vmatpush1.msra.mxu0 %v224
    %2875 = vmatprep.subr.mxu0 0.0
    %2876 = vmatpush1.msra.mxu0 %v225
    %2877 = vmatprep.subr.mxu0 0.0
    %2878 = vmatpush1.msra.mxu0 %v226
    %2879 = vmatprep.subr.mxu0 0.0
    %2880 = vmatpush1.msra.mxu0 %v227
    %2881 = vmatprep.subr.mxu0 0.0
    %2882 = vmatpush1.msra.mxu0 %v228
    %2883 = vmatprep.subr.mxu0 0.0
    %2884 = vmatpush1.msra.mxu0 0.0
    %2885 = vmatprep.subr.mxu0 0.0
    %2886 = vmatpush1.msra.mxu0 0.0
    %2887 = vmatprep.subr.mxu0 0.0
    %2888 = vmatpush1.msra.mxu0 0.0
    %2889 = vmatprep.subr.mxu0 0.0
    %2890 = vmatpush1.msra.mxu0 0.0
    %2891 = vmatprep.subr.mxu0 0.0
    %2892 = vmatpush1.msra.mxu0 0.0
    %2893 = vmatprep.subr.mxu0 0.0
    %2894 = vmatpush1.msra.mxu0 0.0
    %2895 = vmatprep.subr.mxu0 0.0
    %2896 = vmatpush1.msra.mxu0 0.0
    %2897 = vmatprep.subr.mxu0 0.0
    %2898 = vmatpush1.msra.mxu0 0.0
    %2899 = vmatprep.subr.mxu0 0.0
    %2900 = vmatpush1.msra.mxu0 0.0
    %2901 = vmatprep.subr.mxu0 0.0
    %2902 = vmatpush1.msra.mxu0 0.0
    %2903 = vmatprep.subr.mxu0 0.0
    %2904 = vmatpush1.msra.mxu0 0.0
    %2905 = vmatprep.subr.mxu0 0.0
    %2906 = vmatpush1.msra.mxu0 0.0
    %2907 = vmatprep.subr.mxu0 0.0
    %2908 = vmatpush1.msra.mxu0 0.0
    %2909 = vmatprep.subr.mxu0 0.0
    %2910 = vmatpush1.msra.mxu0 0.0
    %2911 = vmatprep.subr.mxu0 0.0
    %2912 = vmatpush1.msra.mxu0 0.0
    %2913 = vmatprep.subr.mxu0 0.0
    %2914 = vmatpush1.msra.mxu0 0.0
    %2915 = vmatprep.subr.mxu0 0.0
    %2916 = vmatpush1.msra.mxu0 0.0
    %2917 = vmatprep.subr.mxu0 0.0
    %2918 = vmatpush1.msra.mxu0 0.0
    %2919 = vmatprep.subr.mxu0 0.0
    %2920 = vmatpush1.msra.mxu0 0.0
    %2921 = vmatprep.subr.mxu0 0.0
    %2922 = vmatpush1.msra.mxu0 0.0
    %2923 = vmatprep.subr.mxu0 0.0
    %2924 = vmatpush1.msra.mxu0 0.0
    %2925 = vmatprep.subr.mxu0 0.0
    %2926 = vmatpush1.msra.mxu0 0.0
    %2927 = vmatprep.subr.mxu0 0.0
    %2928 = vmatpush1.msra.mxu0 0.0
    %2929 = vmatprep.subr.mxu0 0.0
    %2930 = vmatpush1.msra.mxu0 0.0
    %2931 = vmatprep.mubr.f32.mxu0 0.0
    %2932 = vmatmul.mubr.f32.gmra.mrb[0].mxu0 %v2865
    %v2933 = vpop.f32.mrb[0].mxu0
    %v2934 = vadd.f32 %v557, %v2933
    %v2935 = vpop.f32.mrb[0].mxu0
    %2936 = vdwg.mxu0
    %v2937 = vxor.u32 %v2934, 2147483648
    %v2938 = vmul.f32 %v2937, 1.442695
    %v2939 = vpow.pop %v2938
    %v2940 = vadd.f32 %v2939, 1.0
    %v2941 = vrcp.pop %v2940
    %v2942 = vmul.f32 1.0, %v2941
    %v2943 = vtanh.pop %v2934
    %v2944 = vmul.f32 %v2942, %v2490
    %2946 = vrot.lane.b32.xlu0 %v2943, 64
    %v2947 = vpop.permute.xlu0 %2946
    %v2949 = vmul.f32 %v2942, %v2947
    %2951 = vrot.lane.b32.xlu0 %v2949, 32
    %v2952 = vpop.permute.xlu0 %2951
    %v2954 = vadd.f32 %v2944, %v2952
    %v2955 = vtanh.pop %v2954
    %2957 = vrot.lane.b32.xlu0 %v2955, 64
    %v2958 = vpop.permute.xlu0 %2957
    %v2960 = vmul.f32 %v2942, %v2958
    %v2961 = vrot.slane %v2817, 5
    %v2962 = vrot.slane %v2818, 4
    %v2963 = vsel %vm529, %v2962, %v2961
    %v2964 = vrot.slane %v2819, 3
    %v2965 = vsel %vm532, %v2964, %v2963
    %v2966 = vrot.slane %v2820, 2
    %v2967 = vsel %vm535, %v2966, %v2965
    %v2968 = vrot.slane %v2821, 1
    %v2969 = vsel %vm538, %v2968, %v2967
    %v2970 = vsel %vm541, %v2822, %v2969
    %v2971 = vrot.slane %v2823, 7
    %v2972 = vsel %vm544, %v2971, %v2970
    %v2973 = vrot.slane %v2824, 6
    %v2974 = vsel %vm547, %v2973, %v2972
    %2975 = vrot.lane.b32.xlu0 %v2974, 32
    %v2976 = vpop.permute.xlu0 %2975
    %v2977 = vsel %vm230, %v2976, 0
    %2979 = vmatprep.subr.mxu0 0.0
    %2980 = vmatpush1.msra.mxu0 %v217
    %2981 = vmatprep.subr.mxu0 0.0
    %2982 = vmatpush1.msra.mxu0 %v218
    %2983 = vmatprep.subr.mxu0 0.0
    %2984 = vmatpush1.msra.mxu0 %v219
    %2985 = vmatprep.subr.mxu0 0.0
    %2986 = vmatpush1.msra.mxu0 %v220
    %2987 = vmatprep.subr.mxu0 0.0
    %2988 = vmatpush1.msra.mxu0 0.0
    %2989 = vmatprep.subr.mxu0 0.0
    %2990 = vmatpush1.msra.mxu0 0.0
    %2991 = vmatprep.subr.mxu0 0.0
    %2992 = vmatpush1.msra.mxu0 0.0
    %2993 = vmatprep.subr.mxu0 0.0
    %2994 = vmatpush1.msra.mxu0 0.0
    %2995 = vmatprep.subr.mxu0 0.0
    %2996 = vmatpush1.msra.mxu0 0.0
    %2997 = vmatprep.subr.mxu0 0.0
    %2998 = vmatpush1.msra.mxu0 0.0
    %2999 = vmatprep.subr.mxu0 0.0
    %3000 = vmatpush1.msra.mxu0 0.0
    %3001 = vmatprep.subr.mxu0 0.0
    %3002 = vmatpush1.msra.mxu0 0.0
    %3003 = vmatprep.subr.mxu0 0.0
    %3004 = vmatpush1.msra.mxu0 0.0
    %3005 = vmatprep.subr.mxu0 0.0
    %3006 = vmatpush1.msra.mxu0 0.0
    %3007 = vmatprep.subr.mxu0 0.0
    %3008 = vmatpush1.msra.mxu0 0.0
    %3009 = vmatprep.subr.mxu0 0.0
    %3010 = vmatpush1.msra.mxu0 0.0
    %3011 = vmatprep.subr.mxu0 0.0
    %3012 = vmatpush1.msra.mxu0 0.0
    %3013 = vmatprep.subr.mxu0 0.0
    %3014 = vmatpush1.msra.mxu0 0.0
    %3015 = vmatprep.subr.mxu0 0.0
    %3016 = vmatpush1.msra.mxu0 0.0
    %3017 = vmatprep.subr.mxu0 0.0
    %3018 = vmatpush1.msra.mxu0 0.0
    %3019 = vmatprep.subr.mxu0 0.0
    %3020 = vmatpush1.msra.mxu0 0.0
    %3021 = vmatprep.subr.mxu0 0.0
    %3022 = vmatpush1.msra.mxu0 0.0
    %3023 = vmatprep.subr.mxu0 0.0
    %3024 = vmatpush1.msra.mxu0 0.0
    %3025 = vmatprep.subr.mxu0 0.0
    %3026 = vmatpush1.msra.mxu0 0.0
    %3027 = vmatprep.subr.mxu0 0.0
    %3028 = vmatpush1.msra.mxu0 0.0
    %3029 = vmatprep.subr.mxu0 0.0
    %3030 = vmatpush1.msra.mxu0 0.0
    %3031 = vmatprep.subr.mxu0 0.0
    %3032 = vmatpush1.msra.mxu0 0.0
    %3033 = vmatprep.subr.mxu0 0.0
    %3034 = vmatpush1.msra.mxu0 0.0
    %3035 = vmatprep.subr.mxu0 0.0
    %3036 = vmatpush1.msra.mxu0 0.0
    %3037 = vmatprep.subr.mxu0 0.0
    %3038 = vmatpush1.msra.mxu0 0.0
    %3039 = vmatprep.subr.mxu0 0.0
    %3040 = vmatpush1.msra.mxu0 0.0
    %3041 = vmatprep.subr.mxu0 0.0
    %3042 = vmatpush1.msra.mxu0 0.0
    %3043 = vmatprep.mubr.f32.mxu0 0.0
    %3044 = vmatmul.mubr.f32.gmra.mrb[0].mxu0 %v2977
    %v3045 = vpop.f32.mrb[0].mxu0
    %v3046 = vadd.f32 0.0, %v3045
    %v3047 = vpop.f32.mrb[0].mxu0
    %3048 = vdwg.mxu0
    %v3050 = vrot.slane %v3046, 2
    %v3051 = vrot.slane %v3046, 3
    %v3052 = vrot.slane %v3046, 4
    %v3053 = vrot.slane %v3046, 5
    %v3054 = vrot.slane %v3046, 6
    %v3055 = vrot.slane %v3046, 7
    %v3056 = vrot.slane %v3046, 1
    %v3065 = vadd.f32 %v179, %v3050
    %v3066 = vadd.f32 %v184, %v3051
    %v3067 = vadd.f32 %v189, %v3052
    %v3068 = vadd.f32 %v194, %v3053
    %v3069 = vadd.f32 %v199, %v3054
    %v3070 = vadd.f32 %v204, %v3055
    %v3071 = vadd.f32 %v209, %v3046
    %v3072 = vadd.f32 %v214, %v3056
    %v3073 = vxor.u32 %v3065, 2147483648
    %v3074 = vxor.u32 %v3066, 2147483648
    %v3075 = vxor.u32 %v3067, 2147483648
    %v3076 = vxor.u32 %v3068, 2147483648
    %v3077 = vxor.u32 %v3069, 2147483648
    %v3078 = vxor.u32 %v3070, 2147483648
    %v3079 = vxor.u32 %v3071, 2147483648
    %v3080 = vxor.u32 %v3072, 2147483648
    %v3081 = vmul.f32 %v3073, 1.442695
    %v3082 = vpow.pop %v3081
    %v3083 = vmul.f32 %v3074, 1.442695
    %v3084 = vpow.pop %v3083
    %v3085 = vmul.f32 %v3075, 1.442695
    %v3086 = vpow.pop %v3085
    %v3087 = vmul.f32 %v3076, 1.442695
    %v3088 = vpow.pop %v3087
    %v3089 = vmul.f32 %v3077, 1.442695
    %v3090 = vpow.pop %v3089
    %v3091 = vmul.f32 %v3078, 1.442695
    %v3092 = vpow.pop %v3091
    %v3093 = vmul.f32 %v3079, 1.442695
    %v3094 = vpow.pop %v3093
    %v3095 = vmul.f32 %v3080, 1.442695
    %v3096 = vpow.pop %v3095
    %v3097 = vadd.f32 %v3082, 1.0
    %v3098 = vadd.f32 %v3084, 1.0
    %v3099 = vadd.f32 %v3086, 1.0
    %v3100 = vadd.f32 %v3088, 1.0
    %v3101 = vadd.f32 %v3090, 1.0
    %v3102 = vadd.f32 %v3092, 1.0
    %v3103 = vadd.f32 %v3094, 1.0
    %v3104 = vadd.f32 %v3096, 1.0
    %v3105 = vrcp.pop %v3097
    %v3106 = vmul.f32 1.0, %v3105
    %v3107 = vrcp.pop %v3098
    %v3108 = vmul.f32 1.0, %v3107
    %v3109 = vrcp.pop %v3099
    %v3110 = vmul.f32 1.0, %v3109
    %v3111 = vrcp.pop %v3100
    %v3112 = vmul.f32 1.0, %v3111
    %v3113 = vrcp.pop %v3101
    %v3114 = vmul.f32 1.0, %v3113
    %v3115 = vrcp.pop %v3102
    %v3116 = vmul.f32 1.0, %v3115
    %v3117 = vrcp.pop %v3103
    %v3118 = vmul.f32 1.0, %v3117
    %v3119 = vrcp.pop %v3104
    %v3120 = vmul.f32 1.0, %v3119
    %v3121 = vtanh.pop %v3065
    %v3122 = vtanh.pop %v3066
    %v3123 = vtanh.pop %v3067
    %v3124 = vtanh.pop %v3068
    %v3125 = vtanh.pop %v3069
    %v3126 = vtanh.pop %v3070
    %v3127 = vtanh.pop %v3071
    %v3128 = vtanh.pop %v3072
    %v3137 = vrot.slane %v2769, 7
    %v3138 = vrot.slane %v2770, 7
    %v3139 = vrot.slane %v2771, 7
    %v3140 = vrot.slane %v2772, 7
    %v3141 = vrot.slane %v2773, 7
    %v3142 = vrot.slane %v2774, 7
    %v3143 = vrot.slane %v2775, 7
    %v3144 = vrot.slane %v2776, 7
    %v3153 = vmul.f32 %v3106, %v3137
    %v3154 = vmul.f32 %v3108, %v3138
    %v3155 = vmul.f32 %v3110, %v3139
    %v3156 = vmul.f32 %v3112, %v3140
    %v3157 = vmul.f32 %v3114, %v3141
    %v3158 = vmul.f32 %v3116, %v3142
    %v3159 = vmul.f32 %v3118, %v3143
    %v3160 = vmul.f32 %v3120, %v3144
    %3169 = vrot.lane.b32.xlu0 %v3121, 64
    %v3170 = vpop.permute.xlu0 %3169
    %3171 = vrot.lane.b32.xlu0 %v3122, 64
    %v3172 = vpop.permute.xlu0 %3171
    %3173 = vrot.lane.b32.xlu0 %v3123, 64
    %v3174 = vpop.permute.xlu0 %3173
    %3175 = vrot.lane.b32.xlu0 %v3124, 64
    %v3176 = vpop.permute.xlu0 %3175
    %3177 = vrot.lane.b32.xlu0 %v3125, 64
    %v3178 = vpop.permute.xlu0 %3177
    %3179 = vrot.lane.b32.xlu0 %v3126, 64
    %v3180 = vpop.permute.xlu0 %3179
    %3181 = vrot.lane.b32.xlu0 %v3127, 64
    %v3182 = vpop.permute.xlu0 %3181
    %3183 = vrot.lane.b32.xlu0 %v3128, 64
    %v3184 = vpop.permute.xlu0 %3183
    %v3193 = vmul.f32 %v3106, %v3170
    %v3194 = vmul.f32 %v3108, %v3172
    %v3195 = vmul.f32 %v3110, %v3174
    %v3196 = vmul.f32 %v3112, %v3176
    %v3197 = vmul.f32 %v3114, %v3178
    %v3198 = vmul.f32 %v3116, %v3180
    %v3199 = vmul.f32 %v3118, %v3182
    %v3200 = vmul.f32 %v3120, %v3184
    %3209 = vrot.lane.b32.xlu0 %v3193, 32
    %v3210 = vpop.permute.xlu0 %3209
    %3211 = vrot.lane.b32.xlu0 %v3194, 32
    %v3212 = vpop.permute.xlu0 %3211
    %3213 = vrot.lane.b32.xlu0 %v3195, 32
    %v3214 = vpop.permute.xlu0 %3213
    %3215 = vrot.lane.b32.xlu0 %v3196, 32
    %v3216 = vpop.permute.xlu0 %3215
    %3217 = vrot.lane.b32.xlu0 %v3197, 32
    %v3218 = vpop.permute.xlu0 %3217
    %3219 = vrot.lane.b32.xlu0 %v3198, 32
    %v3220 = vpop.permute.xlu0 %3219
    %3221 = vrot.lane.b32.xlu0 %v3199, 32
    %v3222 = vpop.permute.xlu0 %3221
    %3223 = vrot.lane.b32.xlu0 %v3200, 32
    %v3224 = vpop.permute.xlu0 %3223
    %v3233 = vadd.f32 %v3153, %v3210
    %v3234 = vadd.f32 %v3154, %v3212
    %v3235 = vadd.f32 %v3155, %v3214
    %v3236 = vadd.f32 %v3156, %v3216
    %v3237 = vadd.f32 %v3157, %v3218
    %v3238 = vadd.f32 %v3158, %v3220
    %v3239 = vadd.f32 %v3159, %v3222
    %v3240 = vadd.f32 %v3160, %v3224
    %v3241 = vtanh.pop %v3233
    %v3242 = vtanh.pop %v3234
    %v3243 = vtanh.pop %v3235
    %v3244 = vtanh.pop %v3236
    %v3245 = vtanh.pop %v3237
    %v3246 = vtanh.pop %v3238
    %v3247 = vtanh.pop %v3239
    %v3248 = vtanh.pop %v3240
    %3257 = vrot.lane.b32.xlu0 %v3241, 64
    %v3258 = vpop.permute.xlu0 %3257
    %3259 = vrot.lane.b32.xlu0 %v3242, 64
    %v3260 = vpop.permute.xlu0 %3259
    %3261 = vrot.lane.b32.xlu0 %v3243, 64
    %v3262 = vpop.permute.xlu0 %3261
    %3263 = vrot.lane.b32.xlu0 %v3244, 64
    %v3264 = vpop.permute.xlu0 %3263
    %3265 = vrot.lane.b32.xlu0 %v3245, 64
    %v3266 = vpop.permute.xlu0 %3265
    %3267 = vrot.lane.b32.xlu0 %v3246, 64
    %v3268 = vpop.permute.xlu0 %3267
    %3269 = vrot.lane.b32.xlu0 %v3247, 64
    %v3270 = vpop.permute.xlu0 %3269
    %3271 = vrot.lane.b32.xlu0 %v3248, 64
    %v3272 = vpop.permute.xlu0 %3271
    %v3281 = vmul.f32 %v3106, %v3258
    %v3282 = vmul.f32 %v3108, %v3260
    %v3283 = vmul.f32 %v3110, %v3262
    %v3284 = vmul.f32 %v3112, %v3264
    %v3285 = vmul.f32 %v3114, %v3266
    %v3286 = vmul.f32 %v3116, %v3268
    %v3287 = vmul.f32 %v3118, %v3270
    %v3288 = vmul.f32 %v3120, %v3272
    %v3297 = vrot.slane %v3282, 7
    %v3298 = vsel %vm547, %v3297, %v3281
    %v3299 = vrot.slane %v3283, 6
    %v3300 = vrot.slane %v3284, 5
    %v3301 = vsel %vm529, %v3300, %v3299
    %v3302 = vrot.slane %v3285, 4
    %v3303 = vsel %vm532, %v3302, %v3301
    %v3304 = vrot.slane %v3286, 3
    %v3305 = vsel %vm535, %v3304, %v3303
    %v3306 = vrot.slane %v3287, 2
    %v3307 = vsel %vm538, %v3306, %v3305
    %v3308 = vrot.slane %v3288, 1
    %v3309 = vsel %vm541, %v3308, %v3307
    %3310 = vrot.lane.b32.xlu0 %v3298, 32
    %v3311 = vpop.permute.xlu0 %3310
    %3312 = vrot.lane.b32.xlu0 %v3309, 32
    %v3313 = vpop.permute.xlu0 %3312
    %v3317 = vrot.slane %v2960, 2
    %3318 = vrot.lane.b32.xlu0 %v3317, 64
    %v3319 = vpop.permute.xlu0 %3318
    %v3321 = vsel %vm230, %v3311, %v3319
    %v3322 = vsel %vm230, %v3313, %v3319
    %vm3325 = vcmask 1041408
    %v3326 = vrot.slane %v3321, 6
    %v3327 = vrot.slane %v3322, 6
    %v3328 = vsel %vm3325, %v3326, %v3327
    %v3329 = vsel %vm559, %v3328, 0
    %3331 = vmatprep.subr.mxu0 0.0
    %3332 = vmatpush1.msra.mxu0 %v221
    %3333 = vmatprep.subr.mxu0 0.0
    %3334 = vmatpush1.msra.mxu0 %v222
    %3335 = vmatprep.subr.mxu0 0.0
    %3336 = vmatpush1.msra.mxu0 %v223
    %3337 = vmatprep.subr.mxu0 0.0
    %3338 = vmatpush1.msra.mxu0 %v224
    %3339 = vmatprep.subr.mxu0 0.0
    %3340 = vmatpush1.msra.mxu0 %v225
    %3341 = vmatprep.subr.mxu0 0.0
    %3342 = vmatpush1.msra.mxu0 %v226
    %3343 = vmatprep.subr.mxu0 0.0
    %3344 = vmatpush1.msra.mxu0 %v227
    %3345 = vmatprep.subr.mxu0 0.0
    %3346 = vmatpush1.msra.mxu0 %v228
    %3347 = vmatprep.subr.mxu0 0.0
    %3348 = vmatpush1.msra.mxu0 0.0
    %3349 = vmatprep.subr.mxu0 0.0
    %3350 = vmatpush1.msra.mxu0 0.0
    %3351 = vmatprep.subr.mxu0 0.0
    %3352 = vmatpush1.msra.mxu0 0.0
    %3353 = vmatprep.subr.mxu0 0.0
    %3354 = vmatpush1.msra.mxu0 0.0
    %3355 = vmatprep.subr.mxu0 0.0
    %3356 = vmatpush1.msra.mxu0 0.0
    %3357 = vmatprep.subr.mxu0 0.0
    %3358 = vmatpush1.msra.mxu0 0.0
    %3359 = vmatprep.subr.mxu0 0.0
    %3360 = vmatpush1.msra.mxu0 0.0
    %3361 = vmatprep.subr.mxu0 0.0
    %3362 = vmatpush1.msra.mxu0 0.0
    %3363 = vmatprep.subr.mxu0 0.0
    %3364 = vmatpush1.msra.mxu0 0.0
    %3365 = vmatprep.subr.mxu0 0.0
    %3366 = vmatpush1.msra.mxu0 0.0
    %3367 = vmatprep.subr.mxu0 0.0
    %3368 = vmatpush1.msra.mxu0 0.0
    %3369 = vmatprep.subr.mxu0 0.0
    %3370 = vmatpush1.msra.mxu0 0.0
    %3371 = vmatprep.subr.mxu0 0.0
    %3372 = vmatpush1.msra.mxu0 0.0
    %3373 = vmatprep.subr.mxu0 0.0
    %3374 = vmatpush1.msra.mxu0 0.0
    %3375 = vmatprep.subr.mxu0 0.0
    %3376 = vmatpush1.msra.mxu0 0.0
    %3377 = vmatprep.subr.mxu0 0.0
    %3378 = vmatpush1.msra.mxu0 0.0
    %3379 = vmatprep.subr.mxu0 0.0
    %3380 = vmatpush1.msra.mxu0 0.0
    %3381 = vmatprep.subr.mxu0 0.0
    %3382 = vmatpush1.msra.mxu0 0.0
    %3383 = vmatprep.subr.mxu0 0.0
    %3384 = vmatpush1.msra.mxu0 0.0
    %3385 = vmatprep.subr.mxu0 0.0
    %3386 = vmatpush1.msra.mxu0 0.0
    %3387 = vmatprep.subr.mxu0 0.0
    %3388 = vmatpush1.msra.mxu0 0.0
    %3389 = vmatprep.subr.mxu0 0.0
    %3390 = vmatpush1.msra.mxu0 0.0
    %3391 = vmatprep.subr.mxu0 0.0
    %3392 = vmatpush1.msra.mxu0 0.0
    %3393 = vmatprep.subr.mxu0 0.0
    %3394 = vmatpush1.msra.mxu0 0.0
    %3395 = vmatprep.mubr.f32.mxu0 0.0
    %3396 = vmatmul.mubr.f32.gmra.mrb[0].mxu0 %v3329
    %v3397 = vpop.f32.mrb[0].mxu0
    %v3398 = vadd.f32 %v557, %v3397
    %v3399 = vpop.f32.mrb[0].mxu0
    %3400 = vdwg.mxu0
    %v3401 = vxor.u32 %v3398, 2147483648
    %v3402 = vmul.f32 %v3401, 1.442695
    %v3403 = vpow.pop %v3402
    %v3404 = vadd.f32 %v3403, 1.0
    %v3405 = vrcp.pop %v3404
    %v3406 = vmul.f32 1.0, %v3405
    %v3407 = vtanh.pop %v3398
    %v3408 = vmul.f32 %v3406, %v2954
    %3410 = vrot.lane.b32.xlu0 %v3407, 64
    %v3411 = vpop.permute.xlu0 %3410
    %v3413 = vmul.f32 %v3406, %v3411
    %3415 = vrot.lane.b32.xlu0 %v3413, 32
    %v3416 = vpop.permute.xlu0 %3415
    %v3418 = vadd.f32 %v3408, %v3416
    %v3419 = vtanh.pop %v3418
    %3421 = vrot.lane.b32.xlu0 %v3419, 64
    %v3422 = vpop.permute.xlu0 %3421
    %v3424 = vmul.f32 %v3406, %v3422
    %v3425 = vrot.slane %v3281, 6
    %v3426 = vrot.slane %v3282, 5
    %v3427 = vsel %vm529, %v3426, %v3425
    %v3428 = vrot.slane %v3283, 4
    %v3429 = vsel %vm532, %v3428, %v3427
    %v3430 = vrot.slane %v3284, 3
    %v3431 = vsel %vm535, %v3430, %v3429
    %v3432 = vrot.slane %v3285, 2
    %v3433 = vsel %vm538, %v3432, %v3431
    %v3434 = vrot.slane %v3286, 1
    %v3435 = vsel %vm541, %v3434, %v3433
    %v3436 = vsel %vm544, %v3287, %v3435
    %v3437 = vrot.slane %v3288, 7
    %v3438 = vsel %vm547, %v3437, %v3436
    %3439 = vrot.lane.b32.xlu0 %v3438, 32
    %v3440 = vpop.permute.xlu0 %3439
    %v3441 = vsel %vm230, %v3440, 0
    %3443 = vmatprep.subr.mxu0 0.0
    %3444 = vmatpush1.msra.mxu0 %v217
    %3445 = vmatprep.subr.mxu0 0.0
    %3446 = vmatpush1.msra.mxu0 %v218
    %3447 = vmatprep.subr.mxu0 0.0
    %3448 = vmatpush1.msra.mxu0 %v219
    %3449 = vmatprep.subr.mxu0 0.0
    %3450 = vmatpush1.msra.mxu0 %v220
    %3451 = vmatprep.subr.mxu0 0.0
    %3452 = vmatpush1.msra.mxu0 0.0
    %3453 = vmatprep.subr.mxu0 0.0
    %3454 = vmatpush1.msra.mxu0 0.0
    %3455 = vmatprep.subr.mxu0 0.0
    %3456 = vmatpush1.msra.mxu0 0.0
    %3457 = vmatprep.subr.mxu0 0.0
    %3458 = vmatpush1.msra.mxu0 0.0
    %3459 = vmatprep.subr.mxu0 0.0
    %3460 = vmatpush1.msra.mxu0 0.0
    %3461 = vmatprep.subr.mxu0 0.0
    %3462 = vmatpush1.msra.mxu0 0.0
    %3463 = vmatprep.subr.mxu0 0.0
    %3464 = vmatpush1.msra.mxu0 0.0
    %3465 = vmatprep.subr.mxu0 0.0
    %3466 = vmatpush1.msra.mxu0 0.0
    %3467 = vmatprep.subr.mxu0 0.0
    %3468 = vmatpush1.msra.mxu0 0.0
    %3469 = vmatprep.subr.mxu0 0.0
    %3470 = vmatpush1.msra.mxu0 0.0
    %3471 = vmatprep.subr.mxu0 0.0
    %3472 = vmatpush1.msra.mxu0 0.0
    %3473 = vmatprep.subr.mxu0 0.0
    %3474 = vmatpush1.msra.mxu0 0.0
    %3475 = vmatprep.subr.mxu0 0.0
    %3476 = vmatpush1.msra.mxu0 0.0
    %3477 = vmatprep.subr.mxu0 0.0
    %3478 = vmatpush1.msra.mxu0 0.0
    %3479 = vmatprep.subr.mxu0 0.0
    %3480 = vmatpush1.msra.mxu0 0.0
    %3481 = vmatprep.subr.mxu0 0.0
    %3482 = vmatpush1.msra.mxu0 0.0
    %3483 = vmatprep.subr.mxu0 0.0
    %3484 = vmatpush1.msra.mxu0 0.0
    %3485 = vmatprep.subr.mxu0 0.0
    %3486 = vmatpush1.msra.mxu0 0.0
    %3487 = vmatprep.subr.mxu0 0.0
    %3488 = vmatpush1.msra.mxu0 0.0
    %3489 = vmatprep.subr.mxu0 0.0
    %3490 = vmatpush1.msra.mxu0 0.0
    %3491 = vmatprep.subr.mxu0 0.0
    %3492 = vmatpush1.msra.mxu0 0.0
    %3493 = vmatprep.subr.mxu0 0.0
    %3494 = vmatpush1.msra.mxu0 0.0
    %3495 = vmatprep.subr.mxu0 0.0
    %3496 = vmatpush1.msra.mxu0 0.0
    %3497 = vmatprep.subr.mxu0 0.0
    %3498 = vmatpush1.msra.mxu0 0.0
    %3499 = vmatprep.subr.mxu0 0.0
    %3500 = vmatpush1.msra.mxu0 0.0
    %3501 = vmatprep.subr.mxu0 0.0
    %3502 = vmatpush1.msra.mxu0 0.0
    %3503 = vmatprep.subr.mxu0 0.0
    %3504 = vmatpush1.msra.mxu0 0.0
    %3505 = vmatprep.subr.mxu0 0.0
    %3506 = vmatpush1.msra.mxu0 0.0
    %3507 = vmatprep.mubr.f32.mxu0 0.0
    %3508 = vmatmul.mubr.f32.gmra.mrb[0].mxu0 %v3441
    %v3509 = vpop.f32.mrb[0].mxu0
    %v3510 = vadd.f32 0.0, %v3509
    %v3511 = vpop.f32.mrb[0].mxu0
    %3512 = vdwg.mxu0
    %v3514 = vrot.slane %v3510, 1
    %v3515 = vrot.slane %v3510, 2
    %v3516 = vrot.slane %v3510, 3
    %v3517 = vrot.slane %v3510, 4
    %v3518 = vrot.slane %v3510, 5
    %v3519 = vrot.slane %v3510, 6
    %v3520 = vrot.slane %v3510, 7
    %v3529 = vadd.f32 %v179, %v3514
    %v3530 = vadd.f32 %v184, %v3515
    %v3531 = vadd.f32 %v189, %v3516
    %v3532 = vadd.f32 %v194, %v3517
    %v3533 = vadd.f32 %v199, %v3518
    %v3534 = vadd.f32 %v204, %v3519
    %v3535 = vadd.f32 %v209, %v3520
    %v3536 = vadd.f32 %v214, %v3510
    %v3537 = vxor.u32 %v3529, 2147483648
    %v3538 = vxor.u32 %v3530, 2147483648
    %v3539 = vxor.u32 %v3531, 2147483648
    %v3540 = vxor.u32 %v3532, 2147483648
    %v3541 = vxor.u32 %v3533, 2147483648
    %v3542 = vxor.u32 %v3534, 2147483648
    %v3543 = vxor.u32 %v3535, 2147483648
    %v3544 = vxor.u32 %v3536, 2147483648
    %v3545 = vmul.f32 %v3537, 1.442695
    %v3546 = vpow.pop %v3545
    %v3547 = vmul.f32 %v3538, 1.442695
    %v3548 = vpow.pop %v3547
    %v3549 = vmul.f32 %v3539, 1.442695
    %v3550 = vpow.pop %v3549
    %v3551 = vmul.f32 %v3540, 1.442695
    %v3552 = vpow.pop %v3551
    %v3553 = vmul.f32 %v3541, 1.442695
    %v3554 = vpow.pop %v3553
    %v3555 = vmul.f32 %v3542, 1.442695
    %v3556 = vpow.pop %v3555
    %v3557 = vmul.f32 %v3543, 1.442695
    %v3558 = vpow.pop %v3557
    %v3559 = vmul.f32 %v3544, 1.442695
    %v3560 = vpow.pop %v3559
    %v3561 = vadd.f32 %v3546, 1.0
    %v3562 = vadd.f32 %v3548, 1.0
    %v3563 = vadd.f32 %v3550, 1.0
    %v3564 = vadd.f32 %v3552, 1.0
    %v3565 = vadd.f32 %v3554, 1.0
    %v3566 = vadd.f32 %v3556, 1.0
    %v3567 = vadd.f32 %v3558, 1.0
    %v3568 = vadd.f32 %v3560, 1.0
    %v3569 = vrcp.pop %v3561
    %v3570 = vmul.f32 1.0, %v3569
    %v3571 = vrcp.pop %v3562
    %v3572 = vmul.f32 1.0, %v3571
    %v3573 = vrcp.pop %v3563
    %v3574 = vmul.f32 1.0, %v3573
    %v3575 = vrcp.pop %v3564
    %v3576 = vmul.f32 1.0, %v3575
    %v3577 = vrcp.pop %v3565
    %v3578 = vmul.f32 1.0, %v3577
    %v3579 = vrcp.pop %v3566
    %v3580 = vmul.f32 1.0, %v3579
    %v3581 = vrcp.pop %v3567
    %v3582 = vmul.f32 1.0, %v3581
    %v3583 = vrcp.pop %v3568
    %v3584 = vmul.f32 1.0, %v3583
    %v3585 = vtanh.pop %v3529
    %v3586 = vtanh.pop %v3530
    %v3587 = vtanh.pop %v3531
    %v3588 = vtanh.pop %v3532
    %v3589 = vtanh.pop %v3533
    %v3590 = vtanh.pop %v3534
    %v3591 = vtanh.pop %v3535
    %v3592 = vtanh.pop %v3536
    %v3601 = vrot.slane %v3233, 7
    %v3602 = vrot.slane %v3234, 7
    %v3603 = vrot.slane %v3235, 7
    %v3604 = vrot.slane %v3236, 7
    %v3605 = vrot.slane %v3237, 7
    %v3606 = vrot.slane %v3238, 7
    %v3607 = vrot.slane %v3239, 7
    %v3608 = vrot.slane %v3240, 7
    %v3617 = vmul.f32 %v3570, %v3601
    %v3618 = vmul.f32 %v3572, %v3602
    %v3619 = vmul.f32 %v3574, %v3603
    %v3620 = vmul.f32 %v3576, %v3604
    %v3621 = vmul.f32 %v3578, %v3605
    %v3622 = vmul.f32 %v3580, %v3606
    %v3623 = vmul.f32 %v3582, %v3607
    %v3624 = vmul.f32 %v3584, %v3608
    %3633 = vrot.lane.b32.xlu0 %v3585, 64
    %v3634 = vpop.permute.xlu0 %3633
    %3635 = vrot.lane.b32.xlu0 %v3586, 64
    %v3636 = vpop.permute.xlu0 %3635
    %3637 = vrot.lane.b32.xlu0 %v3587, 64
    %v3638 = vpop.permute.xlu0 %3637
    %3639 = vrot.lane.b32.xlu0 %v3588, 64
    %v3640 = vpop.permute.xlu0 %3639
    %3641 = vrot.lane.b32.xlu0 %v3589, 64
    %v3642 = vpop.permute.xlu0 %3641
    %3643 = vrot.lane.b32.xlu0 %v3590, 64
    %v3644 = vpop.permute.xlu0 %3643
    %3645 = vrot.lane.b32.xlu0 %v3591, 64
    %v3646 = vpop.permute.xlu0 %3645
    %3647 = vrot.lane.b32.xlu0 %v3592, 64
    %v3648 = vpop.permute.xlu0 %3647
    %v3657 = vmul.f32 %v3570, %v3634
    %v3658 = vmul.f32 %v3572, %v3636
    %v3659 = vmul.f32 %v3574, %v3638
    %v3660 = vmul.f32 %v3576, %v3640
    %v3661 = vmul.f32 %v3578, %v3642
    %v3662 = vmul.f32 %v3580, %v3644
    %v3663 = vmul.f32 %v3582, %v3646
    %v3664 = vmul.f32 %v3584, %v3648
    %3673 = vrot.lane.b32.xlu0 %v3657, 32
    %v3674 = vpop.permute.xlu0 %3673
    %3675 = vrot.lane.b32.xlu0 %v3658, 32
    %v3676 = vpop.permute.xlu0 %3675
    %3677 = vrot.lane.b32.xlu0 %v3659, 32
    %v3678 = vpop.permute.xlu0 %3677
    %3679 = vrot.lane.b32.xlu0 %v3660, 32
    %v3680 = vpop.permute.xlu0 %3679
    %3681 = vrot.lane.b32.xlu0 %v3661, 32
    %v3682 = vpop.permute.xlu0 %3681
    %3683 = vrot.lane.b32.xlu0 %v3662, 32
    %v3684 = vpop.permute.xlu0 %3683
    %3685 = vrot.lane.b32.xlu0 %v3663, 32
    %v3686 = vpop.permute.xlu0 %3685
    %3687 = vrot.lane.b32.xlu0 %v3664, 32
    %v3688 = vpop.permute.xlu0 %3687
    %v3697 = vadd.f32 %v3617, %v3674
    %v3698 = vadd.f32 %v3618, %v3676
    %v3699 = vadd.f32 %v3619, %v3678
    %v3700 = vadd.f32 %v3620, %v3680
    %v3701 = vadd.f32 %v3621, %v3682
    %v3702 = vadd.f32 %v3622, %v3684
    %v3703 = vadd.f32 %v3623, %v3686
    %v3704 = vadd.f32 %v3624, %v3688
    %v3705 = vtanh.pop %v3697
    %v3706 = vtanh.pop %v3698
    %v3707 = vtanh.pop %v3699
    %v3708 = vtanh.pop %v3700
    %v3709 = vtanh.pop %v3701
    %v3710 = vtanh.pop %v3702
    %v3711 = vtanh.pop %v3703
    %v3712 = vtanh.pop %v3704
    %3721 = vrot.lane.b32.xlu0 %v3705, 64
    %v3722 = vpop.permute.xlu0 %3721
    %3723 = vrot.lane.b32.xlu0 %v3706, 64
    %v3724 = vpop.permute.xlu0 %3723
    %3725 = vrot.lane.b32.xlu0 %v3707, 64
    %v3726 = vpop.permute.xlu0 %3725
    %3727 = vrot.lane.b32.xlu0 %v3708, 64
    %v3728 = vpop.permute.xlu0 %3727
    %3729 = vrot.lane.b32.xlu0 %v3709, 64
    %v3730 = vpop.permute.xlu0 %3729
    %3731 = vrot.lane.b32.xlu0 %v3710, 64
    %v3732 = vpop.permute.xlu0 %3731
    %3733 = vrot.lane.b32.xlu0 %v3711, 64
    %v3734 = vpop.permute.xlu0 %3733
    %3735 = vrot.lane.b32.xlu0 %v3712, 64
    %v3736 = vpop.permute.xlu0 %3735
    %v3745 = vmul.f32 %v3570, %v3722
    %v3746 = vmul.f32 %v3572, %v3724
    %v3747 = vmul.f32 %v3574, %v3726
    %v3748 = vmul.f32 %v3576, %v3728
    %v3749 = vmul.f32 %v3578, %v3730
    %v3750 = vmul.f32 %v3580, %v3732
    %v3751 = vmul.f32 %v3582, %v3734
    %v3752 = vmul.f32 %v3584, %v3736
    %v3761 = vrot.slane %v3746, 7
    %v3762 = vrot.slane %v3747, 6
    %v3763 = vsel %vm529, %v3762, %v3761
    %v3764 = vrot.slane %v3748, 5
    %v3765 = vsel %vm532, %v3764, %v3763
    %v3766 = vrot.slane %v3749, 4
    %v3767 = vsel %vm535, %v3766, %v3765
    %v3768 = vrot.slane %v3750, 3
    %v3769 = vsel %vm538, %v3768, %v3767
    %v3770 = vrot.slane %v3751, 2
    %v3771 = vsel %vm541, %v3770, %v3769
    %v3772 = vrot.slane %v3752, 1
    %v3773 = vsel %vm544, %v3772, %v3771
    %3774 = vrot.lane.b32.xlu0 %v3745, 32
    %v3775 = vpop.permute.xlu0 %3774
    %3776 = vrot.lane.b32.xlu0 %v3773, 32
    %v3777 = vpop.permute.xlu0 %3776
    %v3781 = vrot.slane %v3424, 1
    %3782 = vrot.lane.b32.xlu0 %v3781, 64
    %v3783 = vpop.permute.xlu0 %3782
    %v3785 = vsel %vm230, %v3775, %v3783
    %v3786 = vsel %vm230, %v3777, %v3783
    %vm3789 = vcmask 1040384
    %v3790 = vrot.slane %v3785, 7
    %v3791 = vrot.slane %v3786, 7
    %v3792 = vsel %vm3789, %v3790, %v3791
    %v3793 = vsel %vm559, %v3792, 0
    %3795 = vmatprep.subr.mxu0 0.0
    %3796 = vmatpush1.msra.mxu0 %v221
    %3797 = vmatprep.subr.mxu0 0.0
    %3798 = vmatpush1.msra.mxu0 %v222
    %3799 = vmatprep.subr.mxu0 0.0
    %3800 = vmatpush1.msra.mxu0 %v223
    %3801 = vmatprep.subr.mxu0 0.0
    %3802 = vmatpush1.msra.mxu0 %v224
    %3803 = vmatprep.subr.mxu0 0.0
    %3804 = vmatpush1.msra.mxu0 %v225
    %3805 = vmatprep.subr.mxu0 0.0
    %3806 = vmatpush1.msra.mxu0 %v226
    %3807 = vmatprep.subr.mxu0 0.0
    %3808 = vmatpush1.msra.mxu0 %v227
    %3809 = vmatprep.subr.mxu0 0.0
    %3810 = vmatpush1.msra.mxu0 %v228
    %3811 = vmatprep.subr.mxu0 0.0
    %3812 = vmatpush1.msra.mxu0 0.0
    %3813 = vmatprep.subr.mxu0 0.0
    %3814 = vmatpush1.msra.mxu0 0.0
    %3815 = vmatprep.subr.mxu0 0.0
    %3816 = vmatpush1.msra.mxu0 0.0
    %3817 = vmatprep.subr.mxu0 0.0
    %3818 = vmatpush1.msra.mxu0 0.0
    %3819 = vmatprep.subr.mxu0 0.0
    %3820 = vmatpush1.msra.mxu0 0.0
    %3821 = vmatprep.subr.mxu0 0.0
    %3822 = vmatpush1.msra.mxu0 0.0
    %3823 = vmatprep.subr.mxu0 0.0
    %3824 = vmatpush1.msra.mxu0 0.0
    %3825 = vmatprep.subr.mxu0 0.0
    %3826 = vmatpush1.msra.mxu0 0.0
    %3827 = vmatprep.subr.mxu0 0.0
    %3828 = vmatpush1.msra.mxu0 0.0
    %3829 = vmatprep.subr.mxu0 0.0
    %3830 = vmatpush1.msra.mxu0 0.0
    %3831 = vmatprep.subr.mxu0 0.0
    %3832 = vmatpush1.msra.mxu0 0.0
    %3833 = vmatprep.subr.mxu0 0.0
    %3834 = vmatpush1.msra.mxu0 0.0
    %3835 = vmatprep.subr.mxu0 0.0
    %3836 = vmatpush1.msra.mxu0 0.0
    %3837 = vmatprep.subr.mxu0 0.0
    %3838 = vmatpush1.msra.mxu0 0.0
    %3839 = vmatprep.subr.mxu0 0.0
    %3840 = vmatpush1.msra.mxu0 0.0
    %3841 = vmatprep.subr.mxu0 0.0
    %3842 = vmatpush1.msra.mxu0 0.0
    %3843 = vmatprep.subr.mxu0 0.0
    %3844 = vmatpush1.msra.mxu0 0.0
    %3845 = vmatprep.subr.mxu0 0.0
    %3846 = vmatpush1.msra.mxu0 0.0
    %3847 = vmatprep.subr.mxu0 0.0
    %3848 = vmatpush1.msra.mxu0 0.0
    %3849 = vmatprep.subr.mxu0 0.0
    %3850 = vmatpush1.msra.mxu0 0.0
    %3851 = vmatprep.subr.mxu0 0.0
    %3852 = vmatpush1.msra.mxu0 0.0
    %3853 = vmatprep.subr.mxu0 0.0
    %3854 = vmatpush1.msra.mxu0 0.0
    %3855 = vmatprep.subr.mxu0 0.0
    %3856 = vmatpush1.msra.mxu0 0.0
    %3857 = vmatprep.subr.mxu0 0.0
    %3858 = vmatpush1.msra.mxu0 0.0
    %3859 = vmatprep.mubr.f32.mxu0 0.0
    %3860 = vmatmul.mubr.f32.gmra.mrb[0].mxu0 %v3793
    %v3861 = vpop.f32.mrb[0].mxu0
    %v3862 = vadd.f32 %v557, %v3861
    %v3863 = vpop.f32.mrb[0].mxu0
    %3864 = vdwg.mxu0
    %v3865 = vxor.u32 %v3862, 2147483648
    %v3866 = vmul.f32 %v3865, 1.442695
    %v3867 = vpow.pop %v3866
    %v3868 = vadd.f32 %v3867, 1.0
    %v3869 = vrcp.pop %v3868
    %v3870 = vmul.f32 1.0, %v3869
    %v3871 = vtanh.pop %v3862
    %v3872 = vmul.f32 %v3870, %v3418
    %3874 = vrot.lane.b32.xlu0 %v3871, 64
    %v3875 = vpop.permute.xlu0 %3874
    %v3877 = vmul.f32 %v3870, %v3875
    %3879 = vrot.lane.b32.xlu0 %v3877, 32
    %v3880 = vpop.permute.xlu0 %3879
    %v3882 = vadd.f32 %v3872, %v3880
    %v3883 = vtanh.pop %v3882
    %3885 = vrot.lane.b32.xlu0 %v3883, 64
    %v3886 = vpop.permute.xlu0 %3885
    %v3888 = vmul.f32 %v3870, %v3886
    %v3889 = vld [vmem:[%s6] sm:$0xff]
    %v3890 = vld [vmem:[%s6 + $0x8] sm:$0xff]
    %v3891 = vld [vmem:[%s6 + $0x10] sm:$0xff]
    %v3892 = vld [vmem:[%s6 + $0x18] sm:$0xff]
    %v3893 = vld [vmem:[%s7] sm:$0x1]
    %v3895 = vlaneseq
    %v3896 = vshrl.u32 %v3895, 7
    %v3897 = vsub.s32 0, %v3896
    %v3898 = vrot.slane %v3893, %v3897
    %3901 = vrot.lane.b32.xlu0 %v3888, 32
    %v3902 = vpop.permute.xlu0 %3901
    %v3903 = vsel %vm230, %v3902, 0
    %3905 = vmatprep.subr.mxu0 0.0
    %3906 = vmatpush1.msra.mxu0 %v3889
    %3907 = vmatprep.subr.mxu0 0.0
    %3908 = vmatpush1.msra.mxu0 %v3890
    %3909 = vmatprep.subr.mxu0 0.0
    %3910 = vmatpush1.msra.mxu0 %v3891
    %3911 = vmatprep.subr.mxu0 0.0
    %3912 = vmatpush1.msra.mxu0 %v3892
    %3913 = vmatprep.subr.mxu0 0.0
    %3914 = vmatpush1.msra.mxu0 0.0
    %3915 = vmatprep.subr.mxu0 0.0
    %3916 = vmatpush1.msra.mxu0 0.0
    %3917 = vmatprep.subr.mxu0 0.0
    %3918 = vmatpush1.msra.mxu0 0.0
    %3919 = vmatprep.subr.mxu0 0.0
    %3920 = vmatpush1.msra.mxu0 0.0
    %3921 = vmatprep.subr.mxu0 0.0
    %3922 = vmatpush1.msra.mxu0 0.0
    %3923 = vmatprep.subr.mxu0 0.0
    %3924 = vmatpush1.msra.mxu0 0.0
    %3925 = vmatprep.subr.mxu0 0.0
    %3926 = vmatpush1.msra.mxu0 0.0
    %3927 = vmatprep.subr.mxu0 0.0
    %3928 = vmatpush1.msra.mxu0 0.0
    %3929 = vmatprep.subr.mxu0 0.0
    %3930 = vmatpush1.msra.mxu0 0.0
    %3931 = vmatprep.subr.mxu0 0.0
    %3932 = vmatpush1.msra.mxu0 0.0
    %3933 = vmatprep.subr.mxu0 0.0
    %3934 = vmatpush1.msra.mxu0 0.0
    %3935 = vmatprep.subr.mxu0 0.0
    %3936 = vmatpush1.msra.mxu0 0.0
    %3937 = vmatprep.subr.mxu0 0.0
    %3938 = vmatpush1.msra.mxu0 0.0
    %3939 = vmatprep.subr.mxu0 0.0
    %3940 = vmatpush1.msra.mxu0 0.0
    %3941 = vmatprep.subr.mxu0 0.0
    %3942 = vmatpush1.msra.mxu0 0.0
    %3943 = vmatprep.subr.mxu0 0.0
    %3944 = vmatpush1.msra.mxu0 0.0
    %3945 = vmatprep.subr.mxu0 0.0
    %3946 = vmatpush1.msra.mxu0 0.0
    %3947 = vmatprep.subr.mxu0 0.0
    %3948 = vmatpush1.msra.mxu0 0.0
    %3949 = vmatprep.subr.mxu0 0.0
    %3950 = vmatpush1.msra.mxu0 0.0
    %3951 = vmatprep.subr.mxu0 0.0
    %3952 = vmatpush1.msra.mxu0 0.0
    %3953 = vmatprep.subr.mxu0 0.0
    %3954 = vmatpush1.msra.mxu0 0.0
    %3955 = vmatprep.subr.mxu0 0.0
    %3956 = vmatpush1.msra.mxu0 0.0
    %3957 = vmatprep.subr.mxu0 0.0
    %3958 = vmatpush1.msra.mxu0 0.0
    %3959 = vmatprep.subr.mxu0 0.0
    %3960 = vmatpush1.msra.mxu0 0.0
    %3961 = vmatprep.subr.mxu0 0.0
    %3962 = vmatpush1.msra.mxu0 0.0
    %3963 = vmatprep.subr.mxu0 0.0
    %3964 = vmatpush1.msra.mxu0 0.0
    %3965 = vmatprep.subr.mxu0 0.0
    %3966 = vmatpush1.msra.mxu0 0.0
    %3967 = vmatprep.subr.mxu0 0.0
    %3968 = vmatpush1.msra.mxu0 0.0
    %3969 = vmatprep.mubr.f32.mxu0 0.0
    %3970 = vmatmul.mubr.f32.gmra.mrb[0].mxu0 %v3903
    %v3971 = vpop.f32.mrb[0].mxu0
    %v3972 = vadd.f32 %v3898, %v3971
    %v3973 = vpop.f32.mrb[0].mxu0
    %3974 = vdwg.mxu0
    %vm3975 = vcmask 15360
    %3976 = vst.msk [vmem:[%s8] sm:$0xff] %vm3975, %v3972
    // Predicated region
    $region46: #{lstm_forward.1} parent=1 // pred_check
      _
    $region47: #{lstm_forward.1} parent=1 // pred_check_branch
      %3978 = sbr.rel (0) target = $region49
    $region48: #{lstm_forward.1} parent=1 // pred_region
      _
    $region49: #{lstm_forward.1} parent=1 // pred_fallthru
      _
    // Predicated region
    $region50: #{lstm_forward.1} parent=1 // pred_check
      _
    $region51: #{lstm_forward.1} parent=1 // pred_check_branch
      %3980 = sbr.rel (0) target = $region53
    $region52: #{lstm_forward.1} parent=1 // pred_region
      _
    $region53: #{lstm_forward.1} parent=1 // pred_fallthru
      _
    %3981 = vsyncpa [#allocation3], 1
    %3982 = vsyncpa [#allocation5], 1

</llo_original>
